<compile_context>
chip_gen: v5e
topology: v5e:2x2
jax: 0.10.0
libtpu: 0.0.40
codegen_flags: <defaults>
</compile_context>

<pallas_src>
import jax
import jax.numpy as jnp
import numpy as np
from jax import lax
from jax.experimental import pallas as pl
from jax.experimental.pallas import tpu as pltpu

N, CIN, H, W = 2, 4, 16, 16          # batch, in-channels, spatial
COUT, KH, KW, PAD = 8, 3, 3, 1       # conv params
F_FC = 32                            # fc out features (fc in features = W)
KK = CIN * KH * KW                   # 36 conv taps per output pixel
PATCH_ROWS = KK * H                  # 576 rows of the per-batch patch matrix
M_FC = N * COUT * H                  # 256 rows of the batched FC matmul


def muzero_kernel(xp_ref, cwh_ref, fw_ref, bias_ref, o_ref, patch_ref, fcin_ref):
    # xp_ref   : (N, CIN, H+2, W+2)      VMEM  padded NCHW input (whole batch)
    # cwh_ref  : (COUT*H, KK*H)=(128,576) VMEM  kron(conv_w.reshape(COUT,36), I_H)
    # fw_ref   : (W, F_FC)               VMEM  fc weight, pre-transposed
    # bias_ref : (N*COUT*H, F_FC)        VMEM  conv bias folded into fc bias (full slab)
    # o_ref    : (N*COUT*H, F_FC)        VMEM  flat output; wrapper reshapes to NCHW'
    # patch_ref: (N, KK*H, W)            VMEM scratch, im2col patches (lanes = W)
    # fcin_ref : (N*COUT*H, W)           VMEM scratch, conv result (lanes = W)

    # --- im2col: every shifted window loaded exactly once, stored tile-aligned ----
    for n in range(N):
        for ci in range(CIN):
            for kh in range(KH):
                for kw in range(KW):
                    k = (ci * KH + kh) * KW + kw            # matches conv_w.reshape(COUT, 36)
                    patch_ref[n, k * H:(k + 1) * H, :] = \
                        xp_ref[n, ci, kh:kh + H, kw:kw + W]

    # --- conv on the MXU; output lands directly as rows=(c,h), lanes=W ------------
    cwh = cwh_ref[...]                                      # (128, 576)
    for n in range(N):
        conv_n = jnp.dot(cwh, patch_ref[n],                 # (128, 576) @ (576, 16)
                         preferred_element_type=jnp.float32)
        fcin_ref[n * COUT * H:(n + 1) * COUT * H, :] = conv_n

    # --- one batched FC matmul for the whole call + folded bias -------------------
    y = jnp.dot(fcin_ref[...], fw_ref[...],                 # (256, 16) @ (16, 32)
                preferred_element_type=jnp.float32)
    o_ref[...] = y + bias_ref[...]


@jax.jit
def muzero_forward(state, conv_w, conv_b, fc_w, fc_b):
    # Wrapper-side layout/weight plumbing (pure XLA, one-time per call):
    xp = jnp.pad(state, ((0, 0), (0, 0), (PAD, PAD), (PAD, PAD)))
    cw2 = conv_w.reshape(COUT, KK)                                   # (8, 36)
    # kron(cw2, I_H)[(c*H+h), (k*H+h')] = cw2[c,k] * delta(h,h')  -> conv-as-matmul
    # with the result already laid out as (c*H+h) rows x W lanes (no in-kernel relayout).
    cwh = jnp.kron(cw2, jnp.eye(H, dtype=jnp.float32))               # (128, 576)
    fw = fc_w.T                                                      # (W, F_FC)
    # Fold conv bias through the FC:  (acc + cb) @ fw + fb == acc @ fw + cb*fw.sum(0) + fb
    bias2 = conv_b[:, None] * jnp.sum(fw, axis=0)[None, :] + fc_b[None, :]   # (COUT, F_FC)
    bias_slab = jnp.broadcast_to(
        bias2[None, :, None, :], (N, COUT, H, F_FC)).reshape(M_FC, F_FC)

    cost = pl.CostEstimate(
        flops=2 * N * COUT * H * W * (KK + F_FC),
        transcendentals=0,
        bytes_accessed=(xp.size + cwh.size + fw.size + bias_slab.size + M_FC * F_FC) * 4,
    )

    out2d = pl.pallas_call(
        muzero_kernel,
        out_shape=jax.ShapeDtypeStruct((M_FC, F_FC), jnp.float32),
        in_specs=[pl.BlockSpec(memory_space=pltpu.MemorySpace.VMEM)] * 4,
        out_specs=pl.BlockSpec(memory_space=pltpu.MemorySpace.VMEM),
        scratch_shapes=[
            pltpu.VMEM((N, PATCH_ROWS, W), jnp.float32),   # im2col patches
            pltpu.VMEM((M_FC, W), jnp.float32),            # conv result / FC lhs
        ],
        cost_estimate=cost,
    )(xp, cwh, fw, bias_slab)

    # Rows are ordered (n, c, h) -> plain leading-dim reshape back to (N, COUT, H, F_FC).
    return out2d.reshape(N, COUT, H, F_FC)


def reference(state, conv_w, conv_b, fc_w, fc_b):
    conv = lax.conv_general_dilated(
        state, conv_w, window_strides=(1, 1),
        padding=((PAD, PAD), (PAD, PAD)),
        dimension_numbers=("NCHW", "OIHW", "NCHW"),
        precision=lax.Precision.HIGHEST)
    conv = conv + conv_b.reshape(1, COUT, 1, 1)
    return jnp.matmul(conv, fc_w.T, precision=lax.Precision.HIGHEST) + fc_b


if __name__ == "__main__":
    key = jax.random.PRNGKey(0)
    k1, k2, k3, k4, k5 = jax.random.split(key, 5)

    state = jax.random.normal(k1, (N, CIN, H, W), dtype=jnp.float32)

    # Deterministic "PyTorch-default-like" init (uniform +-1/sqrt(fan_in)).
    cbound = 1.0 / np.sqrt(CIN * KH * KW)
    conv_w = jax.random.uniform(k2, (COUT, CIN, KH, KW), jnp.float32, -cbound, cbound)
    conv_b = jax.random.uniform(k3, (COUT,), jnp.float32, -cbound, cbound)
    fbound = 1.0 / np.sqrt(W)
    fc_w = jax.random.uniform(k4, (F_FC, W), jnp.float32, -fbound, fbound)
    fc_b = jax.random.uniform(k5, (F_FC,), jnp.float32, -fbound, fbound)

    out = muzero_forward(state, conv_w, conv_b, fc_w, fc_b)
    out = jax.block_until_ready(out)

    ref = reference(state, conv_w, conv_b, fc_w, fc_b)
    np.testing.assert_allclose(np.asarray(out), np.asarray(ref),
                               rtol=2e-3, atol=2e-3)
    print("KERNEL_OK")
</pallas_src>

<mosaic_0001>
module attributes {stable_mosaic.version = 11 : i64} {
  func.func @muzero_kernel(%arg0: memref<2x4x18x18xf32, #tpu.memory_space<vmem>>, %arg1: memref<128x576xf32, #tpu.memory_space<vmem>>, %arg2: memref<16x32xf32, #tpu.memory_space<vmem>>, %arg3: memref<256x32xf32, #tpu.memory_space<vmem>>, %arg4: memref<256x32xf32, #tpu.memory_space<vmem>>, %arg5: memref<2x576x16xf32, #tpu.memory_space<vmem>>, %arg6: memref<256x16xf32, #tpu.memory_space<vmem>>) attributes {dimension_semantics = [], scalar_prefetch = 0 : i64, scratch_operands = 2 : i64, tpu.core_type = #tpu.core_type<tc>} {
    %c0 = arith.constant 0 : index
    %c0_0 = arith.constant 0 : index
    %c0_1 = arith.constant 0 : index
    %c0_2 = arith.constant 0 : index
    %0 = vector.load %arg0[%c0, %c0_0, %c0_1, %c0_2] : memref<2x4x18x18xf32, #tpu.memory_space<vmem>>, vector<1x1x16x16xf32>
    %1 = vector.shape_cast %0 : vector<1x1x16x16xf32> to vector<16x16xf32>
    %c0_3 = arith.constant 0 : index
    %c0_4 = arith.constant 0 : index
    %c0_5 = arith.constant 0 : index
    %2 = vector.load %arg5[%c0_3, %c0_4, %c0_5] : memref<2x576x16xf32, #tpu.memory_space<vmem>>, vector<1x16x16xf32>
    %3 = vector.shape_cast %2 : vector<1x16x16xf32> to vector<16x16xf32>
    %4 = vector.shape_cast %1 : vector<16x16xf32> to vector<1x16x16xf32>
    tpu.vector_store %arg5[%c0_3, %c0_4, %c0_5], %4 {strides = array<i32>} : memref<2x576x16xf32, #tpu.memory_space<vmem>>, vector<1x16x16xf32>,
    %c0_6 = arith.constant 0 : index
    %c0_7 = arith.constant 0 : index
    %c0_8 = arith.constant 0 : index
    %c1 = arith.constant 1 : index
    %5 = vector.load %arg0[%c0_6, %c0_7, %c0_8, %c1] : memref<2x4x18x18xf32, #tpu.memory_space<vmem>>, vector<1x1x16x16xf32>
    %6 = vector.shape_cast %5 : vector<1x1x16x16xf32> to vector<16x16xf32>
    %c0_9 = arith.constant 0 : index
    %c16 = arith.constant 16 : index
    %c0_10 = arith.constant 0 : index
    %7 = vector.load %arg5[%c0_9, %c16, %c0_10] : memref<2x576x16xf32, #tpu.memory_space<vmem>>, vector<1x16x16xf32>
    %8 = vector.shape_cast %7 : vector<1x16x16xf32> to vector<16x16xf32>
    %9 = vector.shape_cast %6 : vector<16x16xf32> to vector<1x16x16xf32>
    tpu.vector_store %arg5[%c0_9, %c16, %c0_10], %9 {strides = array<i32>} : memref<2x576x16xf32, #tpu.memory_space<vmem>>, vector<1x16x16xf32>,
    %c0_11 = arith.constant 0 : index
    %c0_12 = arith.constant 0 : index
    %c0_13 = arith.constant 0 : index
    %c2 = arith.constant 2 : index
    %10 = vector.load %arg0[%c0_11, %c0_12, %c0_13, %c2] : memref<2x4x18x18xf32, #tpu.memory_space<vmem>>, vector<1x1x16x16xf32>
    %11 = vector.shape_cast %10 : vector<1x1x16x16xf32> to vector<16x16xf32>
    %c0_14 = arith.constant 0 : index
    %c32 = arith.constant 32 : index
    %c0_15 = arith.constant 0 : index
    %12 = vector.load %arg5[%c0_14, %c32, %c0_15] : memref<2x576x16xf32, #tpu.memory_space<vmem>>, vector<1x16x16xf32>
    %13 = vector.shape_cast %12 : vector<1x16x16xf32> to vector<16x16xf32>
    %14 = vector.shape_cast %11 : vector<16x16xf32> to vector<1x16x16xf32>
    tpu.vector_store %arg5[%c0_14, %c32, %c0_15], %14 {strides = array<i32>} : memref<2x576x16xf32, #tpu.memory_space<vmem>>, vector<1x16x16xf32>,
    %c0_16 = arith.constant 0 : index
    %c0_17 = arith.constant 0 : index
    %c1_18 = arith.constant 1 : index
    %c0_19 = arith.constant 0 : index
    %15 = vector.load %arg0[%c0_16, %c0_17, %c1_18, %c0_19] : memref<2x4x18x18xf32, #tpu.memory_space<vmem>>, vector<1x1x16x16xf32>
    %16 = vector.shape_cast %15 : vector<1x1x16x16xf32> to vector<16x16xf32>
    %c0_20 = arith.constant 0 : index
    %c48 = arith.constant 48 : index
    %c0_21 = arith.constant 0 : index
    %17 = vector.load %arg5[%c0_20, %c48, %c0_21] : memref<2x576x16xf32, #tpu.memory_space<vmem>>, vector<1x16x16xf32>
    %18 = vector.shape_cast %17 : vector<1x16x16xf32> to vector<16x16xf32>
    %19 = vector.shape_cast %16 : vector<16x16xf32> to vector<1x16x16xf32>
    tpu.vector_store %arg5[%c0_20, %c48, %c0_21], %19 {strides = array<i32>} : memref<2x576x16xf32, #tpu.memory_space<vmem>>, vector<1x16x16xf32>,
    %c0_22 = arith.constant 0 : index
    %c0_23 = arith.constant 0 : index
    %c1_24 = arith.constant 1 : index
    %c1_25 = arith.constant 1 : index
    %20 = vector.load %arg0[%c0_22, %c0_23, %c1_24, %c1_25] : memref<2x4x18x18xf32, #tpu.memory_space<vmem>>, vector<1x1x16x16xf32>
    %21 = vector.shape_cast %20 : vector<1x1x16x16xf32> to vector<16x16xf32>
    %c0_26 = arith.constant 0 : index
    %c64 = arith.constant 64 : index
    %c0_27 = arith.constant 0 : index
    %22 = vector.load %arg5[%c0_26, %c64, %c0_27] : memref<2x576x16xf32, #tpu.memory_space<vmem>>, vector<1x16x16xf32>
    %23 = vector.shape_cast %22 : vector<1x16x16xf32> to vector<16x16xf32>
    %24 = vector.shape_cast %21 : vector<16x16xf32> to vector<1x16x16xf32>
    tpu.vector_store %arg5[%c0_26, %c64, %c0_27], %24 {strides = array<i32>} : memref<2x576x16xf32, #tpu.memory_space<vmem>>, vector<1x16x16xf32>,
    %c0_28 = arith.constant 0 : index
    %c0_29 = arith.constant 0 : index
    %c1_30 = arith.constant 1 : index
    %c2_31 = arith.constant 2 : index
    %25 = vector.load %arg0[%c0_28, %c0_29, %c1_30, %c2_31] : memref<2x4x18x18xf32, #tpu.memory_space<vmem>>, vector<1x1x16x16xf32>
    %26 = vector.shape_cast %25 : vector<1x1x16x16xf32> to vector<16x16xf32>
    %c0_32 = arith.constant 0 : index
    %c80 = arith.constant 80 : index
    %c0_33 = arith.constant 0 : index
    %27 = vector.load %arg5[%c0_32, %c80, %c0_33] : memref<2x576x16xf32, #tpu.memory_space<vmem>>, vector<1x16x16xf32>
    %28 = vector.shape_cast %27 : vector<1x16x16xf32> to vector<16x16xf32>
    %29 = vector.shape_cast %26 : vector<16x16xf32> to vector<1x16x16xf32>
    tpu.vector_store %arg5[%c0_32, %c80, %c0_33], %29 {strides = array<i32>} : memref<2x576x16xf32, #tpu.memory_space<vmem>>, vector<1x16x16xf32>,
    %c0_34 = arith.constant 0 : index
    %c0_35 = arith.constant 0 : index
    %c2_36 = arith.constant 2 : index
    %c0_37 = arith.constant 0 : index
    %30 = vector.load %arg0[%c0_34, %c0_35, %c2_36, %c0_37] : memref<2x4x18x18xf32, #tpu.memory_space<vmem>>, vector<1x1x16x16xf32>
    %31 = vector.shape_cast %30 : vector<1x1x16x16xf32> to vector<16x16xf32>
    %c0_38 = arith.constant 0 : index
    %c96 = arith.constant 96 : index
    %c0_39 = arith.constant 0 : index
    %32 = vector.load %arg5[%c0_38, %c96, %c0_39] : memref<2x576x16xf32, #tpu.memory_space<vmem>>, vector<1x16x16xf32>
    %33 = vector.shape_cast %32 : vector<1x16x16xf32> to vector<16x16xf32>
    %34 = vector.shape_cast %31 : vector<16x16xf32> to vector<1x16x16xf32>
    tpu.vector_store %arg5[%c0_38, %c96, %c0_39], %34 {strides = array<i32>} : memref<2x576x16xf32, #tpu.memory_space<vmem>>, vector<1x16x16xf32>,
    %c0_40 = arith.constant 0 : index
    %c0_41 = arith.constant 0 : index
    %c2_42 = arith.constant 2 : index
    %c1_43 = arith.constant 1 : index
    %35 = vector.load %arg0[%c0_40, %c0_41, %c2_42, %c1_43] : memref<2x4x18x18xf32, #tpu.memory_space<vmem>>, vector<1x1x16x16xf32>
    %36 = vector.shape_cast %35 : vector<1x1x16x16xf32> to vector<16x16xf32>
    %c0_44 = arith.constant 0 : index
    %c112 = arith.constant 112 : index
    %c0_45 = arith.constant 0 : index
    %37 = vector.load %arg5[%c0_44, %c112, %c0_45] : memref<2x576x16xf32, #tpu.memory_space<vmem>>, vector<1x16x16xf32>
    %38 = vector.shape_cast %37 : vector<1x16x16xf32> to vector<16x16xf32>
    %39 = vector.shape_cast %36 : vector<16x16xf32> to vector<1x16x16xf32>
    tpu.vector_store %arg5[%c0_44, %c112, %c0_45], %39 {strides = array<i32>} : memref<2x576x16xf32, #tpu.memory_space<vmem>>, vector<1x16x16xf32>,
    %c0_46 = arith.constant 0 : index
    %c0_47 = arith.constant 0 : index
    %c2_48 = arith.constant 2 : index
    %c2_49 = arith.constant 2 : index
    %40 = vector.load %arg0[%c0_46, %c0_47, %c2_48, %c2_49] : memref<2x4x18x18xf32, #tpu.memory_space<vmem>>, vector<1x1x16x16xf32>
    %41 = vector.shape_cast %40 : vector<1x1x16x16xf32> to vector<16x16xf32>
    %c0_50 = arith.constant 0 : index
    %c128 = arith.constant 128 : index
    %c0_51 = arith.constant 0 : index
    %42 = vector.load %arg5[%c0_50, %c128, %c0_51] : memref<2x576x16xf32, #tpu.memory_space<vmem>>, vector<1x16x16xf32>
    %43 = vector.shape_cast %42 : vector<1x16x16xf32> to vector<16x16xf32>
    %44 = vector.shape_cast %41 : vector<16x16xf32> to vector<1x16x16xf32>
    tpu.vector_store %arg5[%c0_50, %c128, %c0_51], %44 {strides = array<i32>} : memref<2x576x16xf32, #tpu.memory_space<vmem>>, vector<1x16x16xf32>,
    %c0_52 = arith.constant 0 : index
    %c1_53 = arith.constant 1 : index
    %c0_54 = arith.constant 0 : index
    %c0_55 = arith.constant 0 : index
    %45 = vector.load %arg0[%c0_52, %c1_53, %c0_54, %c0_55] : memref<2x4x18x18xf32, #tpu.memory_space<vmem>>, vector<1x1x16x16xf32>
    %46 = vector.shape_cast %45 : vector<1x1x16x16xf32> to vector<16x16xf32>
    %c0_56 = arith.constant 0 : index
    %c144 = arith.constant 144 : index
    %c0_57 = arith.constant 0 : index
    %47 = vector.load %arg5[%c0_56, %c144, %c0_57] : memref<2x576x16xf32, #tpu.memory_space<vmem>>, vector<1x16x16xf32>
    %48 = vector.shape_cast %47 : vector<1x16x16xf32> to vector<16x16xf32>
    %49 = vector.shape_cast %46 : vector<16x16xf32> to vector<1x16x16xf32>
    tpu.vector_store %arg5[%c0_56, %c144, %c0_57], %49 {strides = array<i32>} : memref<2x576x16xf32, #tpu.memory_space<vmem>>, vector<1x16x16xf32>,
    %c0_58 = arith.constant 0 : index
    %c1_59 = arith.constant 1 : index
    %c0_60 = arith.constant 0 : index
    %c1_61 = arith.constant 1 : index
    %50 = vector.load %arg0[%c0_58, %c1_59, %c0_60, %c1_61] : memref<2x4x18x18xf32, #tpu.memory_space<vmem>>, vector<1x1x16x16xf32>
    %51 = vector.shape_cast %50 : vector<1x1x16x16xf32> to vector<16x16xf32>
    %c0_62 = arith.constant 0 : index
    %c160 = arith.constant 160 : index
    %c0_63 = arith.constant 0 : index
    %52 = vector.load %arg5[%c0_62, %c160, %c0_63] : memref<2x576x16xf32, #tpu.memory_space<vmem>>, vector<1x16x16xf32>
    %53 = vector.shape_cast %52 : vector<1x16x16xf32> to vector<16x16xf32>
    %54 = vector.shape_cast %51 : vector<16x16xf32> to vector<1x16x16xf32>
    tpu.vector_store %arg5[%c0_62, %c160, %c0_63], %54 {strides = array<i32>} : memref<2x576x16xf32, #tpu.memory_space<vmem>>, vector<1x16x16xf32>,
    %c0_64 = arith.constant 0 : index
    %c1_65 = arith.constant 1 : index
    %c0_66 = arith.constant 0 : index
    %c2_67 = arith.constant 2 : index
    %55 = vector.load %arg0[%c0_64, %c1_65, %c0_66, %c2_67] : memref<2x4x18x18xf32, #tpu.memory_space<vmem>>, vector<1x1x16x16xf32>
    %56 = vector.shape_cast %55 : vector<1x1x16x16xf32> to vector<16x16xf32>
    %c0_68 = arith.constant 0 : index
    %c176 = arith.constant 176 : index
    %c0_69 = arith.constant 0 : index
    %57 = vector.load %arg5[%c0_68, %c176, %c0_69] : memref<2x576x16xf32, #tpu.memory_space<vmem>>, vector<1x16x16xf32>
    %58 = vector.shape_cast %57 : vector<1x16x16xf32> to vector<16x16xf32>
    %59 = vector.shape_cast %56 : vector<16x16xf32> to vector<1x16x16xf32>
    tpu.vector_store %arg5[%c0_68, %c176, %c0_69], %59 {strides = array<i32>} : memref<2x576x16xf32, #tpu.memory_space<vmem>>, vector<1x16x16xf32>,
    %c0_70 = arith.constant 0 : index
    %c1_71 = arith.constant 1 : index
    %c1_72 = arith.constant 1 : index
    %c0_73 = arith.constant 0 : index
    %60 = vector.load %arg0[%c0_70, %c1_71, %c1_72, %c0_73] : memref<2x4x18x18xf32, #tpu.memory_space<vmem>>, vector<1x1x16x16xf32>
    %61 = vector.shape_cast %60 : vector<1x1x16x16xf32> to vector<16x16xf32>
    %c0_74 = arith.constant 0 : index
    %c192 = arith.constant 192 : index
    %c0_75 = arith.constant 0 : index
    %62 = vector.load %arg5[%c0_74, %c192, %c0_75] : memref<2x576x16xf32, #tpu.memory_space<vmem>>, vector<1x16x16xf32>
    %63 = vector.shape_cast %62 : vector<1x16x16xf32> to vector<16x16xf32>
    %64 = vector.shape_cast %61 : vector<16x16xf32> to vector<1x16x16xf32>
    tpu.vector_store %arg5[%c0_74, %c192, %c0_75], %64 {strides = array<i32>} : memref<2x576x16xf32, #tpu.memory_space<vmem>>, vector<1x16x16xf32>,
    %c0_76 = arith.constant 0 : index
    %c1_77 = arith.constant 1 : index
    %c1_78 = arith.constant 1 : index
    %c1_79 = arith.constant 1 : index
    %65 = vector.load %arg0[%c0_76, %c1_77, %c1_78, %c1_79] : memref<2x4x18x18xf32, #tpu.memory_space<vmem>>, vector<1x1x16x16xf32>
    %66 = vector.shape_cast %65 : vector<1x1x16x16xf32> to vector<16x16xf32>
    %c0_80 = arith.constant 0 : index
    %c208 = arith.constant 208 : index
    %c0_81 = arith.constant 0 : index
    %67 = vector.load %arg5[%c0_80, %c208, %c0_81] : memref<2x576x16xf32, #tpu.memory_space<vmem>>, vector<1x16x16xf32>
    %68 = vector.shape_cast %67 : vector<1x16x16xf32> to vector<16x16xf32>
    %69 = vector.shape_cast %66 : vector<16x16xf32> to vector<1x16x16xf32>
    tpu.vector_store %arg5[%c0_80, %c208, %c0_81], %69 {strides = array<i32>} : memref<2x576x16xf32, #tpu.memory_space<vmem>>, vector<1x16x16xf32>,
    %c0_82 = arith.constant 0 : index
    %c1_83 = arith.constant 1 : index
    %c1_84 = arith.constant 1 : index
    %c2_85 = arith.constant 2 : index
    %70 = vector.load %arg0[%c0_82, %c1_83, %c1_84, %c2_85] : memref<2x4x18x18xf32, #tpu.memory_space<vmem>>, vector<1x1x16x16xf32>
    %71 = vector.shape_cast %70 : vector<1x1x16x16xf32> to vector<16x16xf32>
    %c0_86 = arith.constant 0 : index
    %c224 = arith.constant 224 : index
    %c0_87 = arith.constant 0 : index
    %72 = vector.load %arg5[%c0_86, %c224, %c0_87] : memref<2x576x16xf32, #tpu.memory_space<vmem>>, vector<1x16x16xf32>
    %73 = vector.shape_cast %72 : vector<1x16x16xf32> to vector<16x16xf32>
    %74 = vector.shape_cast %71 : vector<16x16xf32> to vector<1x16x16xf32>
    tpu.vector_store %arg5[%c0_86, %c224, %c0_87], %74 {strides = array<i32>} : memref<2x576x16xf32, #tpu.memory_space<vmem>>, vector<1x16x16xf32>,
    %c0_88 = arith.constant 0 : index
    %c1_89 = arith.constant 1 : index
    %c2_90 = arith.constant 2 : index
    %c0_91 = arith.constant 0 : index
    %75 = vector.load %arg0[%c0_88, %c1_89, %c2_90, %c0_91] : memref<2x4x18x18xf32, #tpu.memory_space<vmem>>, vector<1x1x16x16xf32>
    %76 = vector.shape_cast %75 : vector<1x1x16x16xf32> to vector<16x16xf32>
    %c0_92 = arith.constant 0 : index
    %c240 = arith.constant 240 : index
    %c0_93 = arith.constant 0 : index
    %77 = vector.load %arg5[%c0_92, %c240, %c0_93] : memref<2x576x16xf32, #tpu.memory_space<vmem>>, vector<1x16x16xf32>
    %78 = vector.shape_cast %77 : vector<1x16x16xf32> to vector<16x16xf32>
    %79 = vector.shape_cast %76 : vector<16x16xf32> to vector<1x16x16xf32>
    tpu.vector_store %arg5[%c0_92, %c240, %c0_93], %79 {strides = array<i32>} : memref<2x576x16xf32, #tpu.memory_space<vmem>>, vector<1x16x16xf32>,
    %c0_94 = arith.constant 0 : index
    %c1_95 = arith.constant 1 : index
    %c2_96 = arith.constant 2 : index
    %c1_97 = arith.constant 1 : index
    %80 = vector.load %arg0[%c0_94, %c1_95, %c2_96, %c1_97] : memref<2x4x18x18xf32, #tpu.memory_space<vmem>>, vector<1x1x16x16xf32>
    %81 = vector.shape_cast %80 : vector<1x1x16x16xf32> to vector<16x16xf32>
    %c0_98 = arith.constant 0 : index
    %c256 = arith.constant 256 : index
    %c0_99 = arith.constant 0 : index
    %82 = vector.load %arg5[%c0_98, %c256, %c0_99] : memref<2x576x16xf32, #tpu.memory_space<vmem>>, vector<1x16x16xf32>
    %83 = vector.shape_cast %82 : vector<1x16x16xf32> to vector<16x16xf32>
    %84 = vector.shape_cast %81 : vector<16x16xf32> to vector<1x16x16xf32>
    tpu.vector_store %arg5[%c0_98, %c256, %c0_99], %84 {strides = array<i32>} : memref<2x576x16xf32, #tpu.memory_space<vmem>>, vector<1x16x16xf32>,
    %c0_100 = arith.constant 0 : index
    %c1_101 = arith.constant 1 : index
    %c2_102 = arith.constant 2 : index
    %c2_103 = arith.constant 2 : index
    %85 = vector.load %arg0[%c0_100, %c1_101, %c2_102, %c2_103] : memref<2x4x18x18xf32, #tpu.memory_space<vmem>>, vector<1x1x16x16xf32>
    %86 = vector.shape_cast %85 : vector<1x1x16x16xf32> to vector<16x16xf32>
    %c0_104 = arith.constant 0 : index
    %c272 = arith.constant 272 : index
    %c0_105 = arith.constant 0 : index
    %87 = vector.load %arg5[%c0_104, %c272, %c0_105] : memref<2x576x16xf32, #tpu.memory_space<vmem>>, vector<1x16x16xf32>
    %88 = vector.shape_cast %87 : vector<1x16x16xf32> to vector<16x16xf32>
    %89 = vector.shape_cast %86 : vector<16x16xf32> to vector<1x16x16xf32>
    tpu.vector_store %arg5[%c0_104, %c272, %c0_105], %89 {strides = array<i32>} : memref<2x576x16xf32, #tpu.memory_space<vmem>>, vector<1x16x16xf32>,
    %c0_106 = arith.constant 0 : index
    %c2_107 = arith.constant 2 : index
    %c0_108 = arith.constant 0 : index
    %c0_109 = arith.constant 0 : index
    %90 = vector.load %arg0[%c0_106, %c2_107, %c0_108, %c0_109] : memref<2x4x18x18xf32, #tpu.memory_space<vmem>>, vector<1x1x16x16xf32>
    %91 = vector.shape_cast %90 : vector<1x1x16x16xf32> to vector<16x16xf32>
    %c0_110 = arith.constant 0 : index
    %c288 = arith.constant 288 : index
    %c0_111 = arith.constant 0 : index
    %92 = vector.load %arg5[%c0_110, %c288, %c0_111] : memref<2x576x16xf32, #tpu.memory_space<vmem>>, vector<1x16x16xf32>
    %93 = vector.shape_cast %92 : vector<1x16x16xf32> to vector<16x16xf32>
    %94 = vector.shape_cast %91 : vector<16x16xf32> to vector<1x16x16xf32>
    tpu.vector_store %arg5[%c0_110, %c288, %c0_111], %94 {strides = array<i32>} : memref<2x576x16xf32, #tpu.memory_space<vmem>>, vector<1x16x16xf32>,
    %c0_112 = arith.constant 0 : index
    %c2_113 = arith.constant 2 : index
    %c0_114 = arith.constant 0 : index
    %c1_115 = arith.constant 1 : index
    %95 = vector.load %arg0[%c0_112, %c2_113, %c0_114, %c1_115] : memref<2x4x18x18xf32, #tpu.memory_space<vmem>>, vector<1x1x16x16xf32>
    %96 = vector.shape_cast %95 : vector<1x1x16x16xf32> to vector<16x16xf32>
    %c0_116 = arith.constant 0 : index
    %c304 = arith.constant 304 : index
    %c0_117 = arith.constant 0 : index
    %97 = vector.load %arg5[%c0_116, %c304, %c0_117] : memref<2x576x16xf32, #tpu.memory_space<vmem>>, vector<1x16x16xf32>
    %98 = vector.shape_cast %97 : vector<1x16x16xf32> to vector<16x16xf32>
    %99 = vector.shape_cast %96 : vector<16x16xf32> to vector<1x16x16xf32>
    tpu.vector_store %arg5[%c0_116, %c304, %c0_117], %99 {strides = array<i32>} : memref<2x576x16xf32, #tpu.memory_space<vmem>>, vector<1x16x16xf32>,
    %c0_118 = arith.constant 0 : index
    %c2_119 = arith.constant 2 : index
    %c0_120 = arith.constant 0 : index
    %c2_121 = arith.constant 2 : index
    %100 = vector.load %arg0[%c0_118, %c2_119, %c0_120, %c2_121] : memref<2x4x18x18xf32, #tpu.memory_space<vmem>>, vector<1x1x16x16xf32>
    %101 = vector.shape_cast %100 : vector<1x1x16x16xf32> to vector<16x16xf32>
    %c0_122 = arith.constant 0 : index
    %c320 = arith.constant 320 : index
    %c0_123 = arith.constant 0 : index
    %102 = vector.load %arg5[%c0_122, %c320, %c0_123] : memref<2x576x16xf32, #tpu.memory_space<vmem>>, vector<1x16x16xf32>
    %103 = vector.shape_cast %102 : vector<1x16x16xf32> to vector<16x16xf32>
    %104 = vector.shape_cast %101 : vector<16x16xf32> to vector<1x16x16xf32>
    tpu.vector_store %arg5[%c0_122, %c320, %c0_123], %104 {strides = array<i32>} : memref<2x576x16xf32, #tpu.memory_space<vmem>>, vector<1x16x16xf32>,
    %c0_124 = arith.constant 0 : index
    %c2_125 = arith.constant 2 : index
    %c1_126 = arith.constant 1 : index
    %c0_127 = arith.constant 0 : index
    %105 = vector.load %arg0[%c0_124, %c2_125, %c1_126, %c0_127] : memref<2x4x18x18xf32, #tpu.memory_space<vmem>>, vector<1x1x16x16xf32>
    %106 = vector.shape_cast %105 : vector<1x1x16x16xf32> to vector<16x16xf32>
    %c0_128 = arith.constant 0 : index
    %c336 = arith.constant 336 : index
    %c0_129 = arith.constant 0 : index
    %107 = vector.load %arg5[%c0_128, %c336, %c0_129] : memref<2x576x16xf32, #tpu.memory_space<vmem>>, vector<1x16x16xf32>
    %108 = vector.shape_cast %107 : vector<1x16x16xf32> to vector<16x16xf32>
    %109 = vector.shape_cast %106 : vector<16x16xf32> to vector<1x16x16xf32>
    tpu.vector_store %arg5[%c0_128, %c336, %c0_129], %109 {strides = array<i32>} : memref<2x576x16xf32, #tpu.memory_space<vmem>>, vector<1x16x16xf32>,
    %c0_130 = arith.constant 0 : index
    %c2_131 = arith.constant 2 : index
    %c1_132 = arith.constant 1 : index
    %c1_133 = arith.constant 1 : index
    %110 = vector.load %arg0[%c0_130, %c2_131, %c1_132, %c1_133] : memref<2x4x18x18xf32, #tpu.memory_space<vmem>>, vector<1x1x16x16xf32>
    %111 = vector.shape_cast %110 : vector<1x1x16x16xf32> to vector<16x16xf32>
    %c0_134 = arith.constant 0 : index
    %c352 = arith.constant 352 : index
    %c0_135 = arith.constant 0 : index
    %112 = vector.load %arg5[%c0_134, %c352, %c0_135] : memref<2x576x16xf32, #tpu.memory_space<vmem>>, vector<1x16x16xf32>
    %113 = vector.shape_cast %112 : vector<1x16x16xf32> to vector<16x16xf32>
    %114 = vector.shape_cast %111 : vector<16x16xf32> to vector<1x16x16xf32>
    tpu.vector_store %arg5[%c0_134, %c352, %c0_135], %114 {strides = array<i32>} : memref<2x576x16xf32, #tpu.memory_space<vmem>>, vector<1x16x16xf32>,
    %c0_136 = arith.constant 0 : index
    %c2_137 = arith.constant 2 : index
    %c1_138 = arith.constant 1 : index
    %c2_139 = arith.constant 2 : index
    %115 = vector.load %arg0[%c0_136, %c2_137, %c1_138, %c2_139] : memref<2x4x18x18xf32, #tpu.memory_space<vmem>>, vector<1x1x16x16xf32>
    %116 = vector.shape_cast %115 : vector<1x1x16x16xf32> to vector<16x16xf32>
    %c0_140 = arith.constant 0 : index
    %c368 = arith.constant 368 : index
    %c0_141 = arith.constant 0 : index
    %117 = vector.load %arg5[%c0_140, %c368, %c0_141] : memref<2x576x16xf32, #tpu.memory_space<vmem>>, vector<1x16x16xf32>
    %118 = vector.shape_cast %117 : vector<1x16x16xf32> to vector<16x16xf32>
    %119 = vector.shape_cast %116 : vector<16x16xf32> to vector<1x16x16xf32>
    tpu.vector_store %arg5[%c0_140, %c368, %c0_141], %119 {strides = array<i32>} : memref<2x576x16xf32, #tpu.memory_space<vmem>>, vector<1x16x16xf32>,
    %c0_142 = arith.constant 0 : index
    %c2_143 = arith.constant 2 : index
    %c2_144 = arith.constant 2 : index
    %c0_145 = arith.constant 0 : index
    %120 = vector.load %arg0[%c0_142, %c2_143, %c2_144, %c0_145] : memref<2x4x18x18xf32, #tpu.memory_space<vmem>>, vector<1x1x16x16xf32>
    %121 = vector.shape_cast %120 : vector<1x1x16x16xf32> to vector<16x16xf32>
    %c0_146 = arith.constant 0 : index
    %c384 = arith.constant 384 : index
    %c0_147 = arith.constant 0 : index
    %122 = vector.load %arg5[%c0_146, %c384, %c0_147] : memref<2x576x16xf32, #tpu.memory_space<vmem>>, vector<1x16x16xf32>
    %123 = vector.shape_cast %122 : vector<1x16x16xf32> to vector<16x16xf32>
    %124 = vector.shape_cast %121 : vector<16x16xf32> to vector<1x16x16xf32>
    tpu.vector_store %arg5[%c0_146, %c384, %c0_147], %124 {strides = array<i32>} : memref<2x576x16xf32, #tpu.memory_space<vmem>>, vector<1x16x16xf32>,
    %c0_148 = arith.constant 0 : index
    %c2_149 = arith.constant 2 : index
    %c2_150 = arith.constant 2 : index
    %c1_151 = arith.constant 1 : index
    %125 = vector.load %arg0[%c0_148, %c2_149, %c2_150, %c1_151] : memref<2x4x18x18xf32, #tpu.memory_space<vmem>>, vector<1x1x16x16xf32>
    %126 = vector.shape_cast %125 : vector<1x1x16x16xf32> to vector<16x16xf32>
    %c0_152 = arith.constant 0 : index
    %c400 = arith.constant 400 : index
    %c0_153 = arith.constant 0 : index
    %127 = vector.load %arg5[%c0_152, %c400, %c0_153] : memref<2x576x16xf32, #tpu.memory_space<vmem>>, vector<1x16x16xf32>
    %128 = vector.shape_cast %127 : vector<1x16x16xf32> to vector<16x16xf32>
    %129 = vector.shape_cast %126 : vector<16x16xf32> to vector<1x16x16xf32>
    tpu.vector_store %arg5[%c0_152, %c400, %c0_153], %129 {strides = array<i32>} : memref<2x576x16xf32, #tpu.memory_space<vmem>>, vector<1x16x16xf32>,
    %c0_154 = arith.constant 0 : index
    %c2_155 = arith.constant 2 : index
    %c2_156 = arith.constant 2 : index
    %c2_157 = arith.constant 2 : index
    %130 = vector.load %arg0[%c0_154, %c2_155, %c2_156, %c2_157] : memref<2x4x18x18xf32, #tpu.memory_space<vmem>>, vector<1x1x16x16xf32>
    %131 = vector.shape_cast %130 : vector<1x1x16x16xf32> to vector<16x16xf32>
    %c0_158 = arith.constant 0 : index
    %c416 = arith.constant 416 : index
    %c0_159 = arith.constant 0 : index
    %132 = vector.load %arg5[%c0_158, %c416, %c0_159] : memref<2x576x16xf32, #tpu.memory_space<vmem>>, vector<1x16x16xf32>
    %133 = vector.shape_cast %132 : vector<1x16x16xf32> to vector<16x16xf32>
    %134 = vector.shape_cast %131 : vector<16x16xf32> to vector<1x16x16xf32>
    tpu.vector_store %arg5[%c0_158, %c416, %c0_159], %134 {strides = array<i32>} : memref<2x576x16xf32, #tpu.memory_space<vmem>>, vector<1x16x16xf32>,
    %c0_160 = arith.constant 0 : index
    %c3 = arith.constant 3 : index
    %c0_161 = arith.constant 0 : index
    %c0_162 = arith.constant 0 : index
    %135 = vector.load %arg0[%c0_160, %c3, %c0_161, %c0_162] : memref<2x4x18x18xf32, #tpu.memory_space<vmem>>, vector<1x1x16x16xf32>
    %136 = vector.shape_cast %135 : vector<1x1x16x16xf32> to vector<16x16xf32>
    %c0_163 = arith.constant 0 : index
    %c432 = arith.constant 432 : index
    %c0_164 = arith.constant 0 : index
    %137 = vector.load %arg5[%c0_163, %c432, %c0_164] : memref<2x576x16xf32, #tpu.memory_space<vmem>>, vector<1x16x16xf32>
    %138 = vector.shape_cast %137 : vector<1x16x16xf32> to vector<16x16xf32>
    %139 = vector.shape_cast %136 : vector<16x16xf32> to vector<1x16x16xf32>
    tpu.vector_store %arg5[%c0_163, %c432, %c0_164], %139 {strides = array<i32>} : memref<2x576x16xf32, #tpu.memory_space<vmem>>, vector<1x16x16xf32>,
    %c0_165 = arith.constant 0 : index
    %c3_166 = arith.constant 3 : index
    %c0_167 = arith.constant 0 : index
    %c1_168 = arith.constant 1 : index
    %140 = vector.load %arg0[%c0_165, %c3_166, %c0_167, %c1_168] : memref<2x4x18x18xf32, #tpu.memory_space<vmem>>, vector<1x1x16x16xf32>
    %141 = vector.shape_cast %140 : vector<1x1x16x16xf32> to vector<16x16xf32>
    %c0_169 = arith.constant 0 : index
    %c448 = arith.constant 448 : index
    %c0_170 = arith.constant 0 : index
    %142 = vector.load %arg5[%c0_169, %c448, %c0_170] : memref<2x576x16xf32, #tpu.memory_space<vmem>>, vector<1x16x16xf32>
    %143 = vector.shape_cast %142 : vector<1x16x16xf32> to vector<16x16xf32>
    %144 = vector.shape_cast %141 : vector<16x16xf32> to vector<1x16x16xf32>
    tpu.vector_store %arg5[%c0_169, %c448, %c0_170], %144 {strides = array<i32>} : memref<2x576x16xf32, #tpu.memory_space<vmem>>, vector<1x16x16xf32>,
    %c0_171 = arith.constant 0 : index
    %c3_172 = arith.constant 3 : index
    %c0_173 = arith.constant 0 : index
    %c2_174 = arith.constant 2 : index
    %145 = vector.load %arg0[%c0_171, %c3_172, %c0_173, %c2_174] : memref<2x4x18x18xf32, #tpu.memory_space<vmem>>, vector<1x1x16x16xf32>
    %146 = vector.shape_cast %145 : vector<1x1x16x16xf32> to vector<16x16xf32>
    %c0_175 = arith.constant 0 : index
    %c464 = arith.constant 464 : index
    %c0_176 = arith.constant 0 : index
    %147 = vector.load %arg5[%c0_175, %c464, %c0_176] : memref<2x576x16xf32, #tpu.memory_space<vmem>>, vector<1x16x16xf32>
    %148 = vector.shape_cast %147 : vector<1x16x16xf32> to vector<16x16xf32>
    %149 = vector.shape_cast %146 : vector<16x16xf32> to vector<1x16x16xf32>
    tpu.vector_store %arg5[%c0_175, %c464, %c0_176], %149 {strides = array<i32>} : memref<2x576x16xf32, #tpu.memory_space<vmem>>, vector<1x16x16xf32>,
    %c0_177 = arith.constant 0 : index
    %c3_178 = arith.constant 3 : index
    %c1_179 = arith.constant 1 : index
    %c0_180 = arith.constant 0 : index
    %150 = vector.load %arg0[%c0_177, %c3_178, %c1_179, %c0_180] : memref<2x4x18x18xf32, #tpu.memory_space<vmem>>, vector<1x1x16x16xf32>
    %151 = vector.shape_cast %150 : vector<1x1x16x16xf32> to vector<16x16xf32>
    %c0_181 = arith.constant 0 : index
    %c480 = arith.constant 480 : index
    %c0_182 = arith.constant 0 : index
    %152 = vector.load %arg5[%c0_181, %c480, %c0_182] : memref<2x576x16xf32, #tpu.memory_space<vmem>>, vector<1x16x16xf32>
    %153 = vector.shape_cast %152 : vector<1x16x16xf32> to vector<16x16xf32>
    %154 = vector.shape_cast %151 : vector<16x16xf32> to vector<1x16x16xf32>
    tpu.vector_store %arg5[%c0_181, %c480, %c0_182], %154 {strides = array<i32>} : memref<2x576x16xf32, #tpu.memory_space<vmem>>, vector<1x16x16xf32>,
    %c0_183 = arith.constant 0 : index
    %c3_184 = arith.constant 3 : index
    %c1_185 = arith.constant 1 : index
    %c1_186 = arith.constant 1 : index
    %155 = vector.load %arg0[%c0_183, %c3_184, %c1_185, %c1_186] : memref<2x4x18x18xf32, #tpu.memory_space<vmem>>, vector<1x1x16x16xf32>
    %156 = vector.shape_cast %155 : vector<1x1x16x16xf32> to vector<16x16xf32>
    %c0_187 = arith.constant 0 : index
    %c496 = arith.constant 496 : index
    %c0_188 = arith.constant 0 : index
    %157 = vector.load %arg5[%c0_187, %c496, %c0_188] : memref<2x576x16xf32, #tpu.memory_space<vmem>>, vector<1x16x16xf32>
    %158 = vector.shape_cast %157 : vector<1x16x16xf32> to vector<16x16xf32>
    %159 = vector.shape_cast %156 : vector<16x16xf32> to vector<1x16x16xf32>
    tpu.vector_store %arg5[%c0_187, %c496, %c0_188], %159 {strides = array<i32>} : memref<2x576x16xf32, #tpu.memory_space<vmem>>, vector<1x16x16xf32>,
    %c0_189 = arith.constant 0 : index
    %c3_190 = arith.constant 3 : index
    %c1_191 = arith.constant 1 : index
    %c2_192 = arith.constant 2 : index
    %160 = vector.load %arg0[%c0_189, %c3_190, %c1_191, %c2_192] : memref<2x4x18x18xf32, #tpu.memory_space<vmem>>, vector<1x1x16x16xf32>
    %161 = vector.shape_cast %160 : vector<1x1x16x16xf32> to vector<16x16xf32>
    %c0_193 = arith.constant 0 : index
    %c512 = arith.constant 512 : index
    %c0_194 = arith.constant 0 : index
    %162 = vector.load %arg5[%c0_193, %c512, %c0_194] : memref<2x576x16xf32, #tpu.memory_space<vmem>>, vector<1x16x16xf32>
    %163 = vector.shape_cast %162 : vector<1x16x16xf32> to vector<16x16xf32>
    %164 = vector.shape_cast %161 : vector<16x16xf32> to vector<1x16x16xf32>
    tpu.vector_store %arg5[%c0_193, %c512, %c0_194], %164 {strides = array<i32>} : memref<2x576x16xf32, #tpu.memory_space<vmem>>, vector<1x16x16xf32>,
    %c0_195 = arith.constant 0 : index
    %c3_196 = arith.constant 3 : index
    %c2_197 = arith.constant 2 : index
    %c0_198 = arith.constant 0 : index
    %165 = vector.load %arg0[%c0_195, %c3_196, %c2_197, %c0_198] : memref<2x4x18x18xf32, #tpu.memory_space<vmem>>, vector<1x1x16x16xf32>
    %166 = vector.shape_cast %165 : vector<1x1x16x16xf32> to vector<16x16xf32>
    %c0_199 = arith.constant 0 : index
    %c528 = arith.constant 528 : index
    %c0_200 = arith.constant 0 : index
    %167 = vector.load %arg5[%c0_199, %c528, %c0_200] : memref<2x576x16xf32, #tpu.memory_space<vmem>>, vector<1x16x16xf32>
    %168 = vector.shape_cast %167 : vector<1x16x16xf32> to vector<16x16xf32>
    %169 = vector.shape_cast %166 : vector<16x16xf32> to vector<1x16x16xf32>
    tpu.vector_store %arg5[%c0_199, %c528, %c0_200], %169 {strides = array<i32>} : memref<2x576x16xf32, #tpu.memory_space<vmem>>, vector<1x16x16xf32>,
    %c0_201 = arith.constant 0 : index
    %c3_202 = arith.constant 3 : index
    %c2_203 = arith.constant 2 : index
    %c1_204 = arith.constant 1 : index
    %170 = vector.load %arg0[%c0_201, %c3_202, %c2_203, %c1_204] : memref<2x4x18x18xf32, #tpu.memory_space<vmem>>, vector<1x1x16x16xf32>
    %171 = vector.shape_cast %170 : vector<1x1x16x16xf32> to vector<16x16xf32>
    %c0_205 = arith.constant 0 : index
    %c544 = arith.constant 544 : index
    %c0_206 = arith.constant 0 : index
    %172 = vector.load %arg5[%c0_205, %c544, %c0_206] : memref<2x576x16xf32, #tpu.memory_space<vmem>>, vector<1x16x16xf32>
    %173 = vector.shape_cast %172 : vector<1x16x16xf32> to vector<16x16xf32>
    %174 = vector.shape_cast %171 : vector<16x16xf32> to vector<1x16x16xf32>
    tpu.vector_store %arg5[%c0_205, %c544, %c0_206], %174 {strides = array<i32>} : memref<2x576x16xf32, #tpu.memory_space<vmem>>, vector<1x16x16xf32>,
    %c0_207 = arith.constant 0 : index
    %c3_208 = arith.constant 3 : index
    %c2_209 = arith.constant 2 : index
    %c2_210 = arith.constant 2 : index
    %175 = vector.load %arg0[%c0_207, %c3_208, %c2_209, %c2_210] : memref<2x4x18x18xf32, #tpu.memory_space<vmem>>, vector<1x1x16x16xf32>
    %176 = vector.shape_cast %175 : vector<1x1x16x16xf32> to vector<16x16xf32>
    %c0_211 = arith.constant 0 : index
    %c560 = arith.constant 560 : index
    %c0_212 = arith.constant 0 : index
    %177 = vector.load %arg5[%c0_211, %c560, %c0_212] : memref<2x576x16xf32, #tpu.memory_space<vmem>>, vector<1x16x16xf32>
    %178 = vector.shape_cast %177 : vector<1x16x16xf32> to vector<16x16xf32>
    %179 = vector.shape_cast %176 : vector<16x16xf32> to vector<1x16x16xf32>
    tpu.vector_store %arg5[%c0_211, %c560, %c0_212], %179 {strides = array<i32>} : memref<2x576x16xf32, #tpu.memory_space<vmem>>, vector<1x16x16xf32>,
    %c1_213 = arith.constant 1 : index
    %c0_214 = arith.constant 0 : index
    %c0_215 = arith.constant 0 : index
    %c0_216 = arith.constant 0 : index
    %180 = vector.load %arg0[%c1_213, %c0_214, %c0_215, %c0_216] : memref<2x4x18x18xf32, #tpu.memory_space<vmem>>, vector<1x1x16x16xf32>
    %181 = vector.shape_cast %180 : vector<1x1x16x16xf32> to vector<16x16xf32>
    %c1_217 = arith.constant 1 : index
    %c0_218 = arith.constant 0 : index
    %c0_219 = arith.constant 0 : index
    %182 = vector.load %arg5[%c1_217, %c0_218, %c0_219] : memref<2x576x16xf32, #tpu.memory_space<vmem>>, vector<1x16x16xf32>
    %183 = vector.shape_cast %182 : vector<1x16x16xf32> to vector<16x16xf32>
    %184 = vector.shape_cast %181 : vector<16x16xf32> to vector<1x16x16xf32>
    tpu.vector_store %arg5[%c1_217, %c0_218, %c0_219], %184 {strides = array<i32>} : memref<2x576x16xf32, #tpu.memory_space<vmem>>, vector<1x16x16xf32>,
    %c1_220 = arith.constant 1 : index
    %c0_221 = arith.constant 0 : index
    %c0_222 = arith.constant 0 : index
    %c1_223 = arith.constant 1 : index
    %185 = vector.load %arg0[%c1_220, %c0_221, %c0_222, %c1_223] : memref<2x4x18x18xf32, #tpu.memory_space<vmem>>, vector<1x1x16x16xf32>
    %186 = vector.shape_cast %185 : vector<1x1x16x16xf32> to vector<16x16xf32>
    %c1_224 = arith.constant 1 : index
    %c16_225 = arith.constant 16 : index
    %c0_226 = arith.constant 0 : index
    %187 = vector.load %arg5[%c1_224, %c16_225, %c0_226] : memref<2x576x16xf32, #tpu.memory_space<vmem>>, vector<1x16x16xf32>
    %188 = vector.shape_cast %187 : vector<1x16x16xf32> to vector<16x16xf32>
    %189 = vector.shape_cast %186 : vector<16x16xf32> to vector<1x16x16xf32>
    tpu.vector_store %arg5[%c1_224, %c16_225, %c0_226], %189 {strides = array<i32>} : memref<2x576x16xf32, #tpu.memory_space<vmem>>, vector<1x16x16xf32>,
    %c1_227 = arith.constant 1 : index
    %c0_228 = arith.constant 0 : index
    %c0_229 = arith.constant 0 : index
    %c2_230 = arith.constant 2 : index
    %190 = vector.load %arg0[%c1_227, %c0_228, %c0_229, %c2_230] : memref<2x4x18x18xf32, #tpu.memory_space<vmem>>, vector<1x1x16x16xf32>
    %191 = vector.shape_cast %190 : vector<1x1x16x16xf32> to vector<16x16xf32>
    %c1_231 = arith.constant 1 : index
    %c32_232 = arith.constant 32 : index
    %c0_233 = arith.constant 0 : index
    %192 = vector.load %arg5[%c1_231, %c32_232, %c0_233] : memref<2x576x16xf32, #tpu.memory_space<vmem>>, vector<1x16x16xf32>
    %193 = vector.shape_cast %192 : vector<1x16x16xf32> to vector<16x16xf32>
    %194 = vector.shape_cast %191 : vector<16x16xf32> to vector<1x16x16xf32>
    tpu.vector_store %arg5[%c1_231, %c32_232, %c0_233], %194 {strides = array<i32>} : memref<2x576x16xf32, #tpu.memory_space<vmem>>, vector<1x16x16xf32>,
    %c1_234 = arith.constant 1 : index
    %c0_235 = arith.constant 0 : index
    %c1_236 = arith.constant 1 : index
    %c0_237 = arith.constant 0 : index
    %195 = vector.load %arg0[%c1_234, %c0_235, %c1_236, %c0_237] : memref<2x4x18x18xf32, #tpu.memory_space<vmem>>, vector<1x1x16x16xf32>
    %196 = vector.shape_cast %195 : vector<1x1x16x16xf32> to vector<16x16xf32>
    %c1_238 = arith.constant 1 : index
    %c48_239 = arith.constant 48 : index
    %c0_240 = arith.constant 0 : index
    %197 = vector.load %arg5[%c1_238, %c48_239, %c0_240] : memref<2x576x16xf32, #tpu.memory_space<vmem>>, vector<1x16x16xf32>
    %198 = vector.shape_cast %197 : vector<1x16x16xf32> to vector<16x16xf32>
    %199 = vector.shape_cast %196 : vector<16x16xf32> to vector<1x16x16xf32>
    tpu.vector_store %arg5[%c1_238, %c48_239, %c0_240], %199 {strides = array<i32>} : memref<2x576x16xf32, #tpu.memory_space<vmem>>, vector<1x16x16xf32>,
    %c1_241 = arith.constant 1 : index
    %c0_242 = arith.constant 0 : index
    %c1_243 = arith.constant 1 : index
    %c1_244 = arith.constant 1 : index
    %200 = vector.load %arg0[%c1_241, %c0_242, %c1_243, %c1_244] : memref<2x4x18x18xf32, #tpu.memory_space<vmem>>, vector<1x1x16x16xf32>
    %201 = vector.shape_cast %200 : vector<1x1x16x16xf32> to vector<16x16xf32>
    %c1_245 = arith.constant 1 : index
    %c64_246 = arith.constant 64 : index
    %c0_247 = arith.constant 0 : index
    %202 = vector.load %arg5[%c1_245, %c64_246, %c0_247] : memref<2x576x16xf32, #tpu.memory_space<vmem>>, vector<1x16x16xf32>
    %203 = vector.shape_cast %202 : vector<1x16x16xf32> to vector<16x16xf32>
    %204 = vector.shape_cast %201 : vector<16x16xf32> to vector<1x16x16xf32>
    tpu.vector_store %arg5[%c1_245, %c64_246, %c0_247], %204 {strides = array<i32>} : memref<2x576x16xf32, #tpu.memory_space<vmem>>, vector<1x16x16xf32>,
    %c1_248 = arith.constant 1 : index
    %c0_249 = arith.constant 0 : index
    %c1_250 = arith.constant 1 : index
    %c2_251 = arith.constant 2 : index
    %205 = vector.load %arg0[%c1_248, %c0_249, %c1_250, %c2_251] : memref<2x4x18x18xf32, #tpu.memory_space<vmem>>, vector<1x1x16x16xf32>
    %206 = vector.shape_cast %205 : vector<1x1x16x16xf32> to vector<16x16xf32>
    %c1_252 = arith.constant 1 : index
    %c80_253 = arith.constant 80 : index
    %c0_254 = arith.constant 0 : index
    %207 = vector.load %arg5[%c1_252, %c80_253, %c0_254] : memref<2x576x16xf32, #tpu.memory_space<vmem>>, vector<1x16x16xf32>
    %208 = vector.shape_cast %207 : vector<1x16x16xf32> to vector<16x16xf32>
    %209 = vector.shape_cast %206 : vector<16x16xf32> to vector<1x16x16xf32>
    tpu.vector_store %arg5[%c1_252, %c80_253, %c0_254], %209 {strides = array<i32>} : memref<2x576x16xf32, #tpu.memory_space<vmem>>, vector<1x16x16xf32>,
    %c1_255 = arith.constant 1 : index
    %c0_256 = arith.constant 0 : index
    %c2_257 = arith.constant 2 : index
    %c0_258 = arith.constant 0 : index
    %210 = vector.load %arg0[%c1_255, %c0_256, %c2_257, %c0_258] : memref<2x4x18x18xf32, #tpu.memory_space<vmem>>, vector<1x1x16x16xf32>
    %211 = vector.shape_cast %210 : vector<1x1x16x16xf32> to vector<16x16xf32>
    %c1_259 = arith.constant 1 : index
    %c96_260 = arith.constant 96 : index
    %c0_261 = arith.constant 0 : index
    %212 = vector.load %arg5[%c1_259, %c96_260, %c0_261] : memref<2x576x16xf32, #tpu.memory_space<vmem>>, vector<1x16x16xf32>
    %213 = vector.shape_cast %212 : vector<1x16x16xf32> to vector<16x16xf32>
    %214 = vector.shape_cast %211 : vector<16x16xf32> to vector<1x16x16xf32>
    tpu.vector_store %arg5[%c1_259, %c96_260, %c0_261], %214 {strides = array<i32>} : memref<2x576x16xf32, #tpu.memory_space<vmem>>, vector<1x16x16xf32>,
    %c1_262 = arith.constant 1 : index
    %c0_263 = arith.constant 0 : index
    %c2_264 = arith.constant 2 : index
    %c1_265 = arith.constant 1 : index
    %215 = vector.load %arg0[%c1_262, %c0_263, %c2_264, %c1_265] : memref<2x4x18x18xf32, #tpu.memory_space<vmem>>, vector<1x1x16x16xf32>
    %216 = vector.shape_cast %215 : vector<1x1x16x16xf32> to vector<16x16xf32>
    %c1_266 = arith.constant 1 : index
    %c112_267 = arith.constant 112 : index
    %c0_268 = arith.constant 0 : index
    %217 = vector.load %arg5[%c1_266, %c112_267, %c0_268] : memref<2x576x16xf32, #tpu.memory_space<vmem>>, vector<1x16x16xf32>
    %218 = vector.shape_cast %217 : vector<1x16x16xf32> to vector<16x16xf32>
    %219 = vector.shape_cast %216 : vector<16x16xf32> to vector<1x16x16xf32>
    tpu.vector_store %arg5[%c1_266, %c112_267, %c0_268], %219 {strides = array<i32>} : memref<2x576x16xf32, #tpu.memory_space<vmem>>, vector<1x16x16xf32>,
    %c1_269 = arith.constant 1 : index
    %c0_270 = arith.constant 0 : index
    %c2_271 = arith.constant 2 : index
    %c2_272 = arith.constant 2 : index
    %220 = vector.load %arg0[%c1_269, %c0_270, %c2_271, %c2_272] : memref<2x4x18x18xf32, #tpu.memory_space<vmem>>, vector<1x1x16x16xf32>
    %221 = vector.shape_cast %220 : vector<1x1x16x16xf32> to vector<16x16xf32>
    %c1_273 = arith.constant 1 : index
    %c128_274 = arith.constant 128 : index
    %c0_275 = arith.constant 0 : index
    %222 = vector.load %arg5[%c1_273, %c128_274, %c0_275] : memref<2x576x16xf32, #tpu.memory_space<vmem>>, vector<1x16x16xf32>
    %223 = vector.shape_cast %222 : vector<1x16x16xf32> to vector<16x16xf32>
    %224 = vector.shape_cast %221 : vector<16x16xf32> to vector<1x16x16xf32>
    tpu.vector_store %arg5[%c1_273, %c128_274, %c0_275], %224 {strides = array<i32>} : memref<2x576x16xf32, #tpu.memory_space<vmem>>, vector<1x16x16xf32>,
    %c1_276 = arith.constant 1 : index
    %c1_277 = arith.constant 1 : index
    %c0_278 = arith.constant 0 : index
    %c0_279 = arith.constant 0 : index
    %225 = vector.load %arg0[%c1_276, %c1_277, %c0_278, %c0_279] : memref<2x4x18x18xf32, #tpu.memory_space<vmem>>, vector<1x1x16x16xf32>
    %226 = vector.shape_cast %225 : vector<1x1x16x16xf32> to vector<16x16xf32>
    %c1_280 = arith.constant 1 : index
    %c144_281 = arith.constant 144 : index
    %c0_282 = arith.constant 0 : index
    %227 = vector.load %arg5[%c1_280, %c144_281, %c0_282] : memref<2x576x16xf32, #tpu.memory_space<vmem>>, vector<1x16x16xf32>
    %228 = vector.shape_cast %227 : vector<1x16x16xf32> to vector<16x16xf32>
    %229 = vector.shape_cast %226 : vector<16x16xf32> to vector<1x16x16xf32>
    tpu.vector_store %arg5[%c1_280, %c144_281, %c0_282], %229 {strides = array<i32>} : memref<2x576x16xf32, #tpu.memory_space<vmem>>, vector<1x16x16xf32>,
    %c1_283 = arith.constant 1 : index
    %c1_284 = arith.constant 1 : index
    %c0_285 = arith.constant 0 : index
    %c1_286 = arith.constant 1 : index
    %230 = vector.load %arg0[%c1_283, %c1_284, %c0_285, %c1_286] : memref<2x4x18x18xf32, #tpu.memory_space<vmem>>, vector<1x1x16x16xf32>
    %231 = vector.shape_cast %230 : vector<1x1x16x16xf32> to vector<16x16xf32>
    %c1_287 = arith.constant 1 : index
    %c160_288 = arith.constant 160 : index
    %c0_289 = arith.constant 0 : index
    %232 = vector.load %arg5[%c1_287, %c160_288, %c0_289] : memref<2x576x16xf32, #tpu.memory_space<vmem>>, vector<1x16x16xf32>
    %233 = vector.shape_cast %232 : vector<1x16x16xf32> to vector<16x16xf32>
    %234 = vector.shape_cast %231 : vector<16x16xf32> to vector<1x16x16xf32>
    tpu.vector_store %arg5[%c1_287, %c160_288, %c0_289], %234 {strides = array<i32>} : memref<2x576x16xf32, #tpu.memory_space<vmem>>, vector<1x16x16xf32>,
    %c1_290 = arith.constant 1 : index
    %c1_291 = arith.constant 1 : index
    %c0_292 = arith.constant 0 : index
    %c2_293 = arith.constant 2 : index
    %235 = vector.load %arg0[%c1_290, %c1_291, %c0_292, %c2_293] : memref<2x4x18x18xf32, #tpu.memory_space<vmem>>, vector<1x1x16x16xf32>
    %236 = vector.shape_cast %235 : vector<1x1x16x16xf32> to vector<16x16xf32>
    %c1_294 = arith.constant 1 : index
    %c176_295 = arith.constant 176 : index
    %c0_296 = arith.constant 0 : index
    %237 = vector.load %arg5[%c1_294, %c176_295, %c0_296] : memref<2x576x16xf32, #tpu.memory_space<vmem>>, vector<1x16x16xf32>
    %238 = vector.shape_cast %237 : vector<1x16x16xf32> to vector<16x16xf32>
    %239 = vector.shape_cast %236 : vector<16x16xf32> to vector<1x16x16xf32>
    tpu.vector_store %arg5[%c1_294, %c176_295, %c0_296], %239 {strides = array<i32>} : memref<2x576x16xf32, #tpu.memory_space<vmem>>, vector<1x16x16xf32>,
    %c1_297 = arith.constant 1 : index
    %c1_298 = arith.constant 1 : index
    %c1_299 = arith.constant 1 : index
    %c0_300 = arith.constant 0 : index
    %240 = vector.load %arg0[%c1_297, %c1_298, %c1_299, %c0_300] : memref<2x4x18x18xf32, #tpu.memory_space<vmem>>, vector<1x1x16x16xf32>
    %241 = vector.shape_cast %240 : vector<1x1x16x16xf32> to vector<16x16xf32>
    %c1_301 = arith.constant 1 : index
    %c192_302 = arith.constant 192 : index
    %c0_303 = arith.constant 0 : index
    %242 = vector.load %arg5[%c1_301, %c192_302, %c0_303] : memref<2x576x16xf32, #tpu.memory_space<vmem>>, vector<1x16x16xf32>
    %243 = vector.shape_cast %242 : vector<1x16x16xf32> to vector<16x16xf32>
    %244 = vector.shape_cast %241 : vector<16x16xf32> to vector<1x16x16xf32>
    tpu.vector_store %arg5[%c1_301, %c192_302, %c0_303], %244 {strides = array<i32>} : memref<2x576x16xf32, #tpu.memory_space<vmem>>, vector<1x16x16xf32>,
    %c1_304 = arith.constant 1 : index
    %c1_305 = arith.constant 1 : index
    %c1_306 = arith.constant 1 : index
    %c1_307 = arith.constant 1 : index
    %245 = vector.load %arg0[%c1_304, %c1_305, %c1_306, %c1_307] : memref<2x4x18x18xf32, #tpu.memory_space<vmem>>, vector<1x1x16x16xf32>
    %246 = vector.shape_cast %245 : vector<1x1x16x16xf32> to vector<16x16xf32>
    %c1_308 = arith.constant 1 : index
    %c208_309 = arith.constant 208 : index
    %c0_310 = arith.constant 0 : index
    %247 = vector.load %arg5[%c1_308, %c208_309, %c0_310] : memref<2x576x16xf32, #tpu.memory_space<vmem>>, vector<1x16x16xf32>
    %248 = vector.shape_cast %247 : vector<1x16x16xf32> to vector<16x16xf32>
    %249 = vector.shape_cast %246 : vector<16x16xf32> to vector<1x16x16xf32>
    tpu.vector_store %arg5[%c1_308, %c208_309, %c0_310], %249 {strides = array<i32>} : memref<2x576x16xf32, #tpu.memory_space<vmem>>, vector<1x16x16xf32>,
    %c1_311 = arith.constant 1 : index
    %c1_312 = arith.constant 1 : index
    %c1_313 = arith.constant 1 : index
    %c2_314 = arith.constant 2 : index
    %250 = vector.load %arg0[%c1_311, %c1_312, %c1_313, %c2_314] : memref<2x4x18x18xf32, #tpu.memory_space<vmem>>, vector<1x1x16x16xf32>
    %251 = vector.shape_cast %250 : vector<1x1x16x16xf32> to vector<16x16xf32>
    %c1_315 = arith.constant 1 : index
    %c224_316 = arith.constant 224 : index
    %c0_317 = arith.constant 0 : index
    %252 = vector.load %arg5[%c1_315, %c224_316, %c0_317] : memref<2x576x16xf32, #tpu.memory_space<vmem>>, vector<1x16x16xf32>
    %253 = vector.shape_cast %252 : vector<1x16x16xf32> to vector<16x16xf32>
    %254 = vector.shape_cast %251 : vector<16x16xf32> to vector<1x16x16xf32>
    tpu.vector_store %arg5[%c1_315, %c224_316, %c0_317], %254 {strides = array<i32>} : memref<2x576x16xf32, #tpu.memory_space<vmem>>, vector<1x16x16xf32>,
    %c1_318 = arith.constant 1 : index
    %c1_319 = arith.constant 1 : index
    %c2_320 = arith.constant 2 : index
    %c0_321 = arith.constant 0 : index
    %255 = vector.load %arg0[%c1_318, %c1_319, %c2_320, %c0_321] : memref<2x4x18x18xf32, #tpu.memory_space<vmem>>, vector<1x1x16x16xf32>
    %256 = vector.shape_cast %255 : vector<1x1x16x16xf32> to vector<16x16xf32>
    %c1_322 = arith.constant 1 : index
    %c240_323 = arith.constant 240 : index
    %c0_324 = arith.constant 0 : index
    %257 = vector.load %arg5[%c1_322, %c240_323, %c0_324] : memref<2x576x16xf32, #tpu.memory_space<vmem>>, vector<1x16x16xf32>
    %258 = vector.shape_cast %257 : vector<1x16x16xf32> to vector<16x16xf32>
    %259 = vector.shape_cast %256 : vector<16x16xf32> to vector<1x16x16xf32>
    tpu.vector_store %arg5[%c1_322, %c240_323, %c0_324], %259 {strides = array<i32>} : memref<2x576x16xf32, #tpu.memory_space<vmem>>, vector<1x16x16xf32>,
    %c1_325 = arith.constant 1 : index
    %c1_326 = arith.constant 1 : index
    %c2_327 = arith.constant 2 : index
    %c1_328 = arith.constant 1 : index
    %260 = vector.load %arg0[%c1_325, %c1_326, %c2_327, %c1_328] : memref<2x4x18x18xf32, #tpu.memory_space<vmem>>, vector<1x1x16x16xf32>
    %261 = vector.shape_cast %260 : vector<1x1x16x16xf32> to vector<16x16xf32>
    %c1_329 = arith.constant 1 : index
    %c256_330 = arith.constant 256 : index
    %c0_331 = arith.constant 0 : index
    %262 = vector.load %arg5[%c1_329, %c256_330, %c0_331] : memref<2x576x16xf32, #tpu.memory_space<vmem>>, vector<1x16x16xf32>
    %263 = vector.shape_cast %262 : vector<1x16x16xf32> to vector<16x16xf32>
    %264 = vector.shape_cast %261 : vector<16x16xf32> to vector<1x16x16xf32>
    tpu.vector_store %arg5[%c1_329, %c256_330, %c0_331], %264 {strides = array<i32>} : memref<2x576x16xf32, #tpu.memory_space<vmem>>, vector<1x16x16xf32>,
    %c1_332 = arith.constant 1 : index
    %c1_333 = arith.constant 1 : index
    %c2_334 = arith.constant 2 : index
    %c2_335 = arith.constant 2 : index
    %265 = vector.load %arg0[%c1_332, %c1_333, %c2_334, %c2_335] : memref<2x4x18x18xf32, #tpu.memory_space<vmem>>, vector<1x1x16x16xf32>
    %266 = vector.shape_cast %265 : vector<1x1x16x16xf32> to vector<16x16xf32>
    %c1_336 = arith.constant 1 : index
    %c272_337 = arith.constant 272 : index
    %c0_338 = arith.constant 0 : index
    %267 = vector.load %arg5[%c1_336, %c272_337, %c0_338] : memref<2x576x16xf32, #tpu.memory_space<vmem>>, vector<1x16x16xf32>
    %268 = vector.shape_cast %267 : vector<1x16x16xf32> to vector<16x16xf32>
    %269 = vector.shape_cast %266 : vector<16x16xf32> to vector<1x16x16xf32>
    tpu.vector_store %arg5[%c1_336, %c272_337, %c0_338], %269 {strides = array<i32>} : memref<2x576x16xf32, #tpu.memory_space<vmem>>, vector<1x16x16xf32>,
    %c1_339 = arith.constant 1 : index
    %c2_340 = arith.constant 2 : index
    %c0_341 = arith.constant 0 : index
    %c0_342 = arith.constant 0 : index
    %270 = vector.load %arg0[%c1_339, %c2_340, %c0_341, %c0_342] : memref<2x4x18x18xf32, #tpu.memory_space<vmem>>, vector<1x1x16x16xf32>
    %271 = vector.shape_cast %270 : vector<1x1x16x16xf32> to vector<16x16xf32>
    %c1_343 = arith.constant 1 : index
    %c288_344 = arith.constant 288 : index
    %c0_345 = arith.constant 0 : index
    %272 = vector.load %arg5[%c1_343, %c288_344, %c0_345] : memref<2x576x16xf32, #tpu.memory_space<vmem>>, vector<1x16x16xf32>
    %273 = vector.shape_cast %272 : vector<1x16x16xf32> to vector<16x16xf32>
    %274 = vector.shape_cast %271 : vector<16x16xf32> to vector<1x16x16xf32>
    tpu.vector_store %arg5[%c1_343, %c288_344, %c0_345], %274 {strides = array<i32>} : memref<2x576x16xf32, #tpu.memory_space<vmem>>, vector<1x16x16xf32>,
    %c1_346 = arith.constant 1 : index
    %c2_347 = arith.constant 2 : index
    %c0_348 = arith.constant 0 : index
    %c1_349 = arith.constant 1 : index
    %275 = vector.load %arg0[%c1_346, %c2_347, %c0_348, %c1_349] : memref<2x4x18x18xf32, #tpu.memory_space<vmem>>, vector<1x1x16x16xf32>
    %276 = vector.shape_cast %275 : vector<1x1x16x16xf32> to vector<16x16xf32>
    %c1_350 = arith.constant 1 : index
    %c304_351 = arith.constant 304 : index
    %c0_352 = arith.constant 0 : index
    %277 = vector.load %arg5[%c1_350, %c304_351, %c0_352] : memref<2x576x16xf32, #tpu.memory_space<vmem>>, vector<1x16x16xf32>
    %278 = vector.shape_cast %277 : vector<1x16x16xf32> to vector<16x16xf32>
    %279 = vector.shape_cast %276 : vector<16x16xf32> to vector<1x16x16xf32>
    tpu.vector_store %arg5[%c1_350, %c304_351, %c0_352], %279 {strides = array<i32>} : memref<2x576x16xf32, #tpu.memory_space<vmem>>, vector<1x16x16xf32>,
    %c1_353 = arith.constant 1 : index
    %c2_354 = arith.constant 2 : index
    %c0_355 = arith.constant 0 : index
    %c2_356 = arith.constant 2 : index
    %280 = vector.load %arg0[%c1_353, %c2_354, %c0_355, %c2_356] : memref<2x4x18x18xf32, #tpu.memory_space<vmem>>, vector<1x1x16x16xf32>
    %281 = vector.shape_cast %280 : vector<1x1x16x16xf32> to vector<16x16xf32>
    %c1_357 = arith.constant 1 : index
    %c320_358 = arith.constant 320 : index
    %c0_359 = arith.constant 0 : index
    %282 = vector.load %arg5[%c1_357, %c320_358, %c0_359] : memref<2x576x16xf32, #tpu.memory_space<vmem>>, vector<1x16x16xf32>
    %283 = vector.shape_cast %282 : vector<1x16x16xf32> to vector<16x16xf32>
    %284 = vector.shape_cast %281 : vector<16x16xf32> to vector<1x16x16xf32>
    tpu.vector_store %arg5[%c1_357, %c320_358, %c0_359], %284 {strides = array<i32>} : memref<2x576x16xf32, #tpu.memory_space<vmem>>, vector<1x16x16xf32>,
    %c1_360 = arith.constant 1 : index
    %c2_361 = arith.constant 2 : index
    %c1_362 = arith.constant 1 : index
    %c0_363 = arith.constant 0 : index
    %285 = vector.load %arg0[%c1_360, %c2_361, %c1_362, %c0_363] : memref<2x4x18x18xf32, #tpu.memory_space<vmem>>, vector<1x1x16x16xf32>
    %286 = vector.shape_cast %285 : vector<1x1x16x16xf32> to vector<16x16xf32>
    %c1_364 = arith.constant 1 : index
    %c336_365 = arith.constant 336 : index
    %c0_366 = arith.constant 0 : index
    %287 = vector.load %arg5[%c1_364, %c336_365, %c0_366] : memref<2x576x16xf32, #tpu.memory_space<vmem>>, vector<1x16x16xf32>
    %288 = vector.shape_cast %287 : vector<1x16x16xf32> to vector<16x16xf32>
    %289 = vector.shape_cast %286 : vector<16x16xf32> to vector<1x16x16xf32>
    tpu.vector_store %arg5[%c1_364, %c336_365, %c0_366], %289 {strides = array<i32>} : memref<2x576x16xf32, #tpu.memory_space<vmem>>, vector<1x16x16xf32>,
    %c1_367 = arith.constant 1 : index
    %c2_368 = arith.constant 2 : index
    %c1_369 = arith.constant 1 : index
    %c1_370 = arith.constant 1 : index
    %290 = vector.load %arg0[%c1_367, %c2_368, %c1_369, %c1_370] : memref<2x4x18x18xf32, #tpu.memory_space<vmem>>, vector<1x1x16x16xf32>
    %291 = vector.shape_cast %290 : vector<1x1x16x16xf32> to vector<16x16xf32>
    %c1_371 = arith.constant 1 : index
    %c352_372 = arith.constant 352 : index
    %c0_373 = arith.constant 0 : index
    %292 = vector.load %arg5[%c1_371, %c352_372, %c0_373] : memref<2x576x16xf32, #tpu.memory_space<vmem>>, vector<1x16x16xf32>
    %293 = vector.shape_cast %292 : vector<1x16x16xf32> to vector<16x16xf32>
    %294 = vector.shape_cast %291 : vector<16x16xf32> to vector<1x16x16xf32>
    tpu.vector_store %arg5[%c1_371, %c352_372, %c0_373], %294 {strides = array<i32>} : memref<2x576x16xf32, #tpu.memory_space<vmem>>, vector<1x16x16xf32>,
    %c1_374 = arith.constant 1 : index
    %c2_375 = arith.constant 2 : index
    %c1_376 = arith.constant 1 : index
    %c2_377 = arith.constant 2 : index
    %295 = vector.load %arg0[%c1_374, %c2_375, %c1_376, %c2_377] : memref<2x4x18x18xf32, #tpu.memory_space<vmem>>, vector<1x1x16x16xf32>
    %296 = vector.shape_cast %295 : vector<1x1x16x16xf32> to vector<16x16xf32>
    %c1_378 = arith.constant 1 : index
    %c368_379 = arith.constant 368 : index
    %c0_380 = arith.constant 0 : index
    %297 = vector.load %arg5[%c1_378, %c368_379, %c0_380] : memref<2x576x16xf32, #tpu.memory_space<vmem>>, vector<1x16x16xf32>
    %298 = vector.shape_cast %297 : vector<1x16x16xf32> to vector<16x16xf32>
    %299 = vector.shape_cast %296 : vector<16x16xf32> to vector<1x16x16xf32>
    tpu.vector_store %arg5[%c1_378, %c368_379, %c0_380], %299 {strides = array<i32>} : memref<2x576x16xf32, #tpu.memory_space<vmem>>, vector<1x16x16xf32>,
    %c1_381 = arith.constant 1 : index
    %c2_382 = arith.constant 2 : index
    %c2_383 = arith.constant 2 : index
    %c0_384 = arith.constant 0 : index
    %300 = vector.load %arg0[%c1_381, %c2_382, %c2_383, %c0_384] : memref<2x4x18x18xf32, #tpu.memory_space<vmem>>, vector<1x1x16x16xf32>
    %301 = vector.shape_cast %300 : vector<1x1x16x16xf32> to vector<16x16xf32>
    %c1_385 = arith.constant 1 : index
    %c384_386 = arith.constant 384 : index
    %c0_387 = arith.constant 0 : index
    %302 = vector.load %arg5[%c1_385, %c384_386, %c0_387] : memref<2x576x16xf32, #tpu.memory_space<vmem>>, vector<1x16x16xf32>
    %303 = vector.shape_cast %302 : vector<1x16x16xf32> to vector<16x16xf32>
    %304 = vector.shape_cast %301 : vector<16x16xf32> to vector<1x16x16xf32>
    tpu.vector_store %arg5[%c1_385, %c384_386, %c0_387], %304 {strides = array<i32>} : memref<2x576x16xf32, #tpu.memory_space<vmem>>, vector<1x16x16xf32>,
    %c1_388 = arith.constant 1 : index
    %c2_389 = arith.constant 2 : index
    %c2_390 = arith.constant 2 : index
    %c1_391 = arith.constant 1 : index
    %305 = vector.load %arg0[%c1_388, %c2_389, %c2_390, %c1_391] : memref<2x4x18x18xf32, #tpu.memory_space<vmem>>, vector<1x1x16x16xf32>
    %306 = vector.shape_cast %305 : vector<1x1x16x16xf32> to vector<16x16xf32>
    %c1_392 = arith.constant 1 : index
    %c400_393 = arith.constant 400 : index
    %c0_394 = arith.constant 0 : index
    %307 = vector.load %arg5[%c1_392, %c400_393, %c0_394] : memref<2x576x16xf32, #tpu.memory_space<vmem>>, vector<1x16x16xf32>
    %308 = vector.shape_cast %307 : vector<1x16x16xf32> to vector<16x16xf32>
    %309 = vector.shape_cast %306 : vector<16x16xf32> to vector<1x16x16xf32>
    tpu.vector_store %arg5[%c1_392, %c400_393, %c0_394], %309 {strides = array<i32>} : memref<2x576x16xf32, #tpu.memory_space<vmem>>, vector<1x16x16xf32>,
    %c1_395 = arith.constant 1 : index
    %c2_396 = arith.constant 2 : index
    %c2_397 = arith.constant 2 : index
    %c2_398 = arith.constant 2 : index
    %310 = vector.load %arg0[%c1_395, %c2_396, %c2_397, %c2_398] : memref<2x4x18x18xf32, #tpu.memory_space<vmem>>, vector<1x1x16x16xf32>
    %311 = vector.shape_cast %310 : vector<1x1x16x16xf32> to vector<16x16xf32>
    %c1_399 = arith.constant 1 : index
    %c416_400 = arith.constant 416 : index
    %c0_401 = arith.constant 0 : index
    %312 = vector.load %arg5[%c1_399, %c416_400, %c0_401] : memref<2x576x16xf32, #tpu.memory_space<vmem>>, vector<1x16x16xf32>
    %313 = vector.shape_cast %312 : vector<1x16x16xf32> to vector<16x16xf32>
    %314 = vector.shape_cast %311 : vector<16x16xf32> to vector<1x16x16xf32>
    tpu.vector_store %arg5[%c1_399, %c416_400, %c0_401], %314 {strides = array<i32>} : memref<2x576x16xf32, #tpu.memory_space<vmem>>, vector<1x16x16xf32>,
    %c1_402 = arith.constant 1 : index
    %c3_403 = arith.constant 3 : index
    %c0_404 = arith.constant 0 : index
    %c0_405 = arith.constant 0 : index
    %315 = vector.load %arg0[%c1_402, %c3_403, %c0_404, %c0_405] : memref<2x4x18x18xf32, #tpu.memory_space<vmem>>, vector<1x1x16x16xf32>
    %316 = vector.shape_cast %315 : vector<1x1x16x16xf32> to vector<16x16xf32>
    %c1_406 = arith.constant 1 : index
    %c432_407 = arith.constant 432 : index
    %c0_408 = arith.constant 0 : index
    %317 = vector.load %arg5[%c1_406, %c432_407, %c0_408] : memref<2x576x16xf32, #tpu.memory_space<vmem>>, vector<1x16x16xf32>
    %318 = vector.shape_cast %317 : vector<1x16x16xf32> to vector<16x16xf32>
    %319 = vector.shape_cast %316 : vector<16x16xf32> to vector<1x16x16xf32>
    tpu.vector_store %arg5[%c1_406, %c432_407, %c0_408], %319 {strides = array<i32>} : memref<2x576x16xf32, #tpu.memory_space<vmem>>, vector<1x16x16xf32>,
    %c1_409 = arith.constant 1 : index
    %c3_410 = arith.constant 3 : index
    %c0_411 = arith.constant 0 : index
    %c1_412 = arith.constant 1 : index
    %320 = vector.load %arg0[%c1_409, %c3_410, %c0_411, %c1_412] : memref<2x4x18x18xf32, #tpu.memory_space<vmem>>, vector<1x1x16x16xf32>
    %321 = vector.shape_cast %320 : vector<1x1x16x16xf32> to vector<16x16xf32>
    %c1_413 = arith.constant 1 : index
    %c448_414 = arith.constant 448 : index
    %c0_415 = arith.constant 0 : index
    %322 = vector.load %arg5[%c1_413, %c448_414, %c0_415] : memref<2x576x16xf32, #tpu.memory_space<vmem>>, vector<1x16x16xf32>
    %323 = vector.shape_cast %322 : vector<1x16x16xf32> to vector<16x16xf32>
    %324 = vector.shape_cast %321 : vector<16x16xf32> to vector<1x16x16xf32>
    tpu.vector_store %arg5[%c1_413, %c448_414, %c0_415], %324 {strides = array<i32>} : memref<2x576x16xf32, #tpu.memory_space<vmem>>, vector<1x16x16xf32>,
    %c1_416 = arith.constant 1 : index
    %c3_417 = arith.constant 3 : index
    %c0_418 = arith.constant 0 : index
    %c2_419 = arith.constant 2 : index
    %325 = vector.load %arg0[%c1_416, %c3_417, %c0_418, %c2_419] : memref<2x4x18x18xf32, #tpu.memory_space<vmem>>, vector<1x1x16x16xf32>
    %326 = vector.shape_cast %325 : vector<1x1x16x16xf32> to vector<16x16xf32>
    %c1_420 = arith.constant 1 : index
    %c464_421 = arith.constant 464 : index
    %c0_422 = arith.constant 0 : index
    %327 = vector.load %arg5[%c1_420, %c464_421, %c0_422] : memref<2x576x16xf32, #tpu.memory_space<vmem>>, vector<1x16x16xf32>
    %328 = vector.shape_cast %327 : vector<1x16x16xf32> to vector<16x16xf32>
    %329 = vector.shape_cast %326 : vector<16x16xf32> to vector<1x16x16xf32>
    tpu.vector_store %arg5[%c1_420, %c464_421, %c0_422], %329 {strides = array<i32>} : memref<2x576x16xf32, #tpu.memory_space<vmem>>, vector<1x16x16xf32>,
    %c1_423 = arith.constant 1 : index
    %c3_424 = arith.constant 3 : index
    %c1_425 = arith.constant 1 : index
    %c0_426 = arith.constant 0 : index
    %330 = vector.load %arg0[%c1_423, %c3_424, %c1_425, %c0_426] : memref<2x4x18x18xf32, #tpu.memory_space<vmem>>, vector<1x1x16x16xf32>
    %331 = vector.shape_cast %330 : vector<1x1x16x16xf32> to vector<16x16xf32>
    %c1_427 = arith.constant 1 : index
    %c480_428 = arith.constant 480 : index
    %c0_429 = arith.constant 0 : index
    %332 = vector.load %arg5[%c1_427, %c480_428, %c0_429] : memref<2x576x16xf32, #tpu.memory_space<vmem>>, vector<1x16x16xf32>
    %333 = vector.shape_cast %332 : vector<1x16x16xf32> to vector<16x16xf32>
    %334 = vector.shape_cast %331 : vector<16x16xf32> to vector<1x16x16xf32>
    tpu.vector_store %arg5[%c1_427, %c480_428, %c0_429], %334 {strides = array<i32>} : memref<2x576x16xf32, #tpu.memory_space<vmem>>, vector<1x16x16xf32>,
    %c1_430 = arith.constant 1 : index
    %c3_431 = arith.constant 3 : index
    %c1_432 = arith.constant 1 : index
    %c1_433 = arith.constant 1 : index
    %335 = vector.load %arg0[%c1_430, %c3_431, %c1_432, %c1_433] : memref<2x4x18x18xf32, #tpu.memory_space<vmem>>, vector<1x1x16x16xf32>
    %336 = vector.shape_cast %335 : vector<1x1x16x16xf32> to vector<16x16xf32>
    %c1_434 = arith.constant 1 : index
    %c496_435 = arith.constant 496 : index
    %c0_436 = arith.constant 0 : index
    %337 = vector.load %arg5[%c1_434, %c496_435, %c0_436] : memref<2x576x16xf32, #tpu.memory_space<vmem>>, vector<1x16x16xf32>
    %338 = vector.shape_cast %337 : vector<1x16x16xf32> to vector<16x16xf32>
    %339 = vector.shape_cast %336 : vector<16x16xf32> to vector<1x16x16xf32>
    tpu.vector_store %arg5[%c1_434, %c496_435, %c0_436], %339 {strides = array<i32>} : memref<2x576x16xf32, #tpu.memory_space<vmem>>, vector<1x16x16xf32>,
    %c1_437 = arith.constant 1 : index
    %c3_438 = arith.constant 3 : index
    %c1_439 = arith.constant 1 : index
    %c2_440 = arith.constant 2 : index
    %340 = vector.load %arg0[%c1_437, %c3_438, %c1_439, %c2_440] : memref<2x4x18x18xf32, #tpu.memory_space<vmem>>, vector<1x1x16x16xf32>
    %341 = vector.shape_cast %340 : vector<1x1x16x16xf32> to vector<16x16xf32>
    %c1_441 = arith.constant 1 : index
    %c512_442 = arith.constant 512 : index
    %c0_443 = arith.constant 0 : index
    %342 = vector.load %arg5[%c1_441, %c512_442, %c0_443] : memref<2x576x16xf32, #tpu.memory_space<vmem>>, vector<1x16x16xf32>
    %343 = vector.shape_cast %342 : vector<1x16x16xf32> to vector<16x16xf32>
    %344 = vector.shape_cast %341 : vector<16x16xf32> to vector<1x16x16xf32>
    tpu.vector_store %arg5[%c1_441, %c512_442, %c0_443], %344 {strides = array<i32>} : memref<2x576x16xf32, #tpu.memory_space<vmem>>, vector<1x16x16xf32>,
    %c1_444 = arith.constant 1 : index
    %c3_445 = arith.constant 3 : index
    %c2_446 = arith.constant 2 : index
    %c0_447 = arith.constant 0 : index
    %345 = vector.load %arg0[%c1_444, %c3_445, %c2_446, %c0_447] : memref<2x4x18x18xf32, #tpu.memory_space<vmem>>, vector<1x1x16x16xf32>
    %346 = vector.shape_cast %345 : vector<1x1x16x16xf32> to vector<16x16xf32>
    %c1_448 = arith.constant 1 : index
    %c528_449 = arith.constant 528 : index
    %c0_450 = arith.constant 0 : index
    %347 = vector.load %arg5[%c1_448, %c528_449, %c0_450] : memref<2x576x16xf32, #tpu.memory_space<vmem>>, vector<1x16x16xf32>
    %348 = vector.shape_cast %347 : vector<1x16x16xf32> to vector<16x16xf32>
    %349 = vector.shape_cast %346 : vector<16x16xf32> to vector<1x16x16xf32>
    tpu.vector_store %arg5[%c1_448, %c528_449, %c0_450], %349 {strides = array<i32>} : memref<2x576x16xf32, #tpu.memory_space<vmem>>, vector<1x16x16xf32>,
    %c1_451 = arith.constant 1 : index
    %c3_452 = arith.constant 3 : index
    %c2_453 = arith.constant 2 : index
    %c1_454 = arith.constant 1 : index
    %350 = vector.load %arg0[%c1_451, %c3_452, %c2_453, %c1_454] : memref<2x4x18x18xf32, #tpu.memory_space<vmem>>, vector<1x1x16x16xf32>
    %351 = vector.shape_cast %350 : vector<1x1x16x16xf32> to vector<16x16xf32>
    %c1_455 = arith.constant 1 : index
    %c544_456 = arith.constant 544 : index
    %c0_457 = arith.constant 0 : index
    %352 = vector.load %arg5[%c1_455, %c544_456, %c0_457] : memref<2x576x16xf32, #tpu.memory_space<vmem>>, vector<1x16x16xf32>
    %353 = vector.shape_cast %352 : vector<1x16x16xf32> to vector<16x16xf32>
    %354 = vector.shape_cast %351 : vector<16x16xf32> to vector<1x16x16xf32>
    tpu.vector_store %arg5[%c1_455, %c544_456, %c0_457], %354 {strides = array<i32>} : memref<2x576x16xf32, #tpu.memory_space<vmem>>, vector<1x16x16xf32>,
    %c1_458 = arith.constant 1 : index
    %c3_459 = arith.constant 3 : index
    %c2_460 = arith.constant 2 : index
    %c2_461 = arith.constant 2 : index
    %355 = vector.load %arg0[%c1_458, %c3_459, %c2_460, %c2_461] : memref<2x4x18x18xf32, #tpu.memory_space<vmem>>, vector<1x1x16x16xf32>
    %356 = vector.shape_cast %355 : vector<1x1x16x16xf32> to vector<16x16xf32>
    %c1_462 = arith.constant 1 : index
    %c560_463 = arith.constant 560 : index
    %c0_464 = arith.constant 0 : index
    %357 = vector.load %arg5[%c1_462, %c560_463, %c0_464] : memref<2x576x16xf32, #tpu.memory_space<vmem>>, vector<1x16x16xf32>
    %358 = vector.shape_cast %357 : vector<1x16x16xf32> to vector<16x16xf32>
    %359 = vector.shape_cast %356 : vector<16x16xf32> to vector<1x16x16xf32>
    tpu.vector_store %arg5[%c1_462, %c560_463, %c0_464], %359 {strides = array<i32>} : memref<2x576x16xf32, #tpu.memory_space<vmem>>, vector<1x16x16xf32>,
    %c0_465 = arith.constant 0 : index
    %c0_466 = arith.constant 0 : index
    %360 = vector.load %arg1[%c0_465, %c0_466] : memref<128x576xf32, #tpu.memory_space<vmem>>, vector<128x576xf32>
    %c0_467 = arith.constant 0 : index
    %c0_468 = arith.constant 0 : index
    %c0_469 = arith.constant 0 : index
    %361 = vector.load %arg5[%c0_467, %c0_468, %c0_469] : memref<2x576x16xf32, #tpu.memory_space<vmem>>, vector<1x576x16xf32>
    %362 = vector.shape_cast %361 : vector<1x576x16xf32> to vector<576x16xf32>
    %cst = arith.constant dense<0.000000e+00> : vector<128x16xf32>
    %363 = tpu.matmul %360, %362, %cst {dimension_numbers = #tpu.dot_dimension_numbers<[1], [0], [0], [1], [0, 0, 1, 1], [], []>} : vector<128x576xf32>, vector<576x16xf32>, vector<128x16xf32> -> vector<128x16xf32>
    %c0_470 = arith.constant 0 : index
    %c0_471 = arith.constant 0 : index
    %364 = vector.load %arg6[%c0_470, %c0_471] : memref<256x16xf32, #tpu.memory_space<vmem>>, vector<128x16xf32>
    tpu.vector_store %arg6[%c0_470, %c0_471], %363 {strides = array<i32>} : memref<256x16xf32, #tpu.memory_space<vmem>>, vector<128x16xf32>,
    %c1_472 = arith.constant 1 : index
    %c0_473 = arith.constant 0 : index
    %c0_474 = arith.constant 0 : index
    %365 = vector.load %arg5[%c1_472, %c0_473, %c0_474] : memref<2x576x16xf32, #tpu.memory_space<vmem>>, vector<1x576x16xf32>
    %366 = vector.shape_cast %365 : vector<1x576x16xf32> to vector<576x16xf32>
    %cst_475 = arith.constant dense<0.000000e+00> : vector<128x16xf32>
    %367 = tpu.matmul %360, %366, %cst_475 {dimension_numbers = #tpu.dot_dimension_numbers<[1], [0], [0], [1], [0, 0, 1, 1], [], []>} : vector<128x576xf32>, vector<576x16xf32>, vector<128x16xf32> -> vector<128x16xf32>
    %c128_476 = arith.constant 128 : index
    %c0_477 = arith.constant 0 : index
    %368 = vector.load %arg6[%c128_476, %c0_477] : memref<256x16xf32, #tpu.memory_space<vmem>>, vector<128x16xf32>
    tpu.vector_store %arg6[%c128_476, %c0_477], %367 {strides = array<i32>} : memref<256x16xf32, #tpu.memory_space<vmem>>, vector<128x16xf32>,
    %c0_478 = arith.constant 0 : index
    %c0_479 = arith.constant 0 : index
    %369 = vector.load %arg6[%c0_478, %c0_479] : memref<256x16xf32, #tpu.memory_space<vmem>>, vector<256x16xf32>
    %c0_480 = arith.constant 0 : index
    %c0_481 = arith.constant 0 : index
    %370 = vector.load %arg2[%c0_480, %c0_481] : memref<16x32xf32, #tpu.memory_space<vmem>>, vector<16x32xf32>
    %cst_482 = arith.constant dense<0.000000e+00> : vector<256x32xf32>
    %371 = tpu.matmul %369, %370, %cst_482 {dimension_numbers = #tpu.dot_dimension_numbers<[1], [0], [0], [1], [0, 0, 1, 1], [], []>} : vector<256x16xf32>, vector<16x32xf32>, vector<256x32xf32> -> vector<256x32xf32>
    %c0_483 = arith.constant 0 : index
    %c0_484 = arith.constant 0 : index
    %372 = vector.load %arg3[%c0_483, %c0_484] : memref<256x32xf32, #tpu.memory_space<vmem>>, vector<256x32xf32>
    %373 = arith.addf %371, %372 : vector<256x32xf32>
    %c0_485 = arith.constant 0 : index
    %c0_486 = arith.constant 0 : index
    %374 = vector.load %arg4[%c0_485, %c0_486] : memref<256x32xf32, #tpu.memory_space<vmem>>, vector<256x32xf32>
    tpu.vector_store %arg4[%c0_485, %c0_486], %373 {strides = array<i32>} : memref<256x32xf32, #tpu.memory_space<vmem>>, vector<256x32xf32>,
    return
  }
}

</mosaic_0001>

<llo_original>
// kernel: mul.1
$region0: #{mul.1}
  %s0 = inlined_call_operand.vmem [shape: f32[8,4,3,3], index: 0, kind: input, shape index: {}]
  %s1 = inlined_call_operand.vmem [shape: f32[8,36], index: 1, kind: output, shape index: {}]
  $region1: #{mul.1} parent=0
    #allocation0 [shape = 'u8[49152]{0}', space=vmem, size = 0xc000, scoped, tag = 'scoped mem for input reshape']
    %s3 = ssub.s32 16, 1
    %s4 = scalar_lea.vmem %s0, 44
    %v5 = vld [vmem:[%s4] sm:%s3]
    %s6 = scalar_lea.vmem [#allocation0], 88
    %7 = vst [vmem:[%s6] sm:%s3] %v5
    %s8 = scalar_lea.vmem %s0, 40
    %v9 = vld [vmem:[%s8] sm:%s3]
    %s10 = scalar_lea.vmem [#allocation0], 80
    %11 = vst [vmem:[%s10] sm:%s3] %v9
    %s12 = scalar_lea.vmem %s0, 36
    %v13 = vld [vmem:[%s12] sm:%s3]
    %s14 = scalar_lea.vmem [#allocation0], 72
    %15 = vst [vmem:[%s14] sm:%s3] %v13
    %s16 = scalar_lea.vmem %s0, 32
    %v17 = vld [vmem:[%s16] sm:%s3]
    %s18 = scalar_lea.vmem [#allocation0], 64
    %19 = vst [vmem:[%s18] sm:%s3] %v17
    %s20 = scalar_lea.vmem %s0, 28
    %v21 = vld [vmem:[%s20] sm:%s3]
    %s22 = scalar_lea.vmem [#allocation0], 56
    %23 = vst [vmem:[%s22] sm:%s3] %v21
    %s24 = scalar_lea.vmem %s0, 24
    %v25 = vld [vmem:[%s24] sm:%s3]
    %s26 = scalar_lea.vmem [#allocation0], 48
    %27 = vst [vmem:[%s26] sm:%s3] %v25
    %s28 = scalar_lea.vmem %s0, 20
    %v29 = vld [vmem:[%s28] sm:%s3]
    %s30 = scalar_lea.vmem [#allocation0], 40
    %31 = vst [vmem:[%s30] sm:%s3] %v29
    %s32 = scalar_lea.vmem %s0, 16
    %v33 = vld [vmem:[%s32] sm:%s3]
    %s34 = scalar_lea.vmem [#allocation0], 32
    %35 = vst [vmem:[%s34] sm:%s3] %v33
    %s36 = scalar_lea.vmem %s0, 12
    %v37 = vld [vmem:[%s36] sm:%s3]
    %s38 = scalar_lea.vmem [#allocation0], 24
    %39 = vst [vmem:[%s38] sm:%s3] %v37
    %s40 = scalar_lea.vmem %s0, 8
    %v41 = vld [vmem:[%s40] sm:%s3]
    %s42 = scalar_lea.vmem [#allocation0], 16
    %43 = vst [vmem:[%s42] sm:%s3] %v41
    %s44 = scalar_lea.vmem %s0, 4
    %v45 = vld [vmem:[%s44] sm:%s3]
    %s46 = scalar_lea.vmem [#allocation0], 8
    %47 = vst [vmem:[%s46] sm:%s3] %v45
    %v48 = vld [vmem:[%s0] sm:%s3]
    %49 = vst [vmem:[#allocation0] sm:%s3] %v48
    %v50 = vld [vmem:[#allocation0] sm:$0x7]
    %vm51 = vcmask 64512
    %52 = vst.msk [vmem:[%s1] sm:$0x7] %vm51, %v50
    %s53 = scalar_lea.vmem [#allocation0], 8
    %v54 = vld [vmem:[%s53] sm:$0x7]
    %vm55 = vcmask 64512
    %s56 = scalar_lea.vmem %s1, 3
    %57 = vst.msk [vmem:[%s56] sm:$0x7] %vm55, %v54
    %s58 = scalar_lea.vmem [#allocation0], 16
    %v59 = vld [vmem:[%s58] sm:$0x7]
    %vm60 = vcmask 64512
    %s61 = scalar_lea.vmem %s1, 6
    %62 = vst.msk [vmem:[%s61] sm:$0x7] %vm60, %v59
    %s63 = scalar_lea.vmem [#allocation0], 24
    %v64 = vld [vmem:[%s63] sm:$0x7]
    %vm65 = vcmask 64512
    %s66 = scalar_lea.vmem %s1, 9
    %67 = vst.msk [vmem:[%s66] sm:$0x7] %vm65, %v64
    %s68 = scalar_lea.vmem [#allocation0], 32
    %v69 = vld [vmem:[%s68] sm:$0x7]
    %vm70 = vcmask 64512
    %s71 = scalar_lea.vmem %s1, 12
    %72 = vst.msk [vmem:[%s71] sm:$0x7] %vm70, %v69
    %s73 = scalar_lea.vmem [#allocation0], 40
    %v74 = vld [vmem:[%s73] sm:$0x7]
    %vm75 = vcmask 64512
    %s76 = scalar_lea.vmem %s1, 15
    %77 = vst.msk [vmem:[%s76] sm:$0x7] %vm75, %v74
    %s78 = scalar_lea.vmem [#allocation0], 48
    %v79 = vld [vmem:[%s78] sm:$0x7]
    %vm80 = vcmask 64512
    %s81 = scalar_lea.vmem %s1, 18
    %82 = vst.msk [vmem:[%s81] sm:$0x7] %vm80, %v79
    %s83 = scalar_lea.vmem [#allocation0], 56
    %v84 = vld [vmem:[%s83] sm:$0x7]
    %vm85 = vcmask 64512
    %s86 = scalar_lea.vmem %s1, 21
    %87 = vst.msk [vmem:[%s86] sm:$0x7] %vm85, %v84
    %s88 = scalar_lea.vmem [#allocation0], 64
    %v89 = vld [vmem:[%s88] sm:$0x7]
    %vm90 = vcmask 64512
    %s91 = scalar_lea.vmem %s1, 24
    %92 = vst.msk [vmem:[%s91] sm:$0x7] %vm90, %v89
    %s93 = scalar_lea.vmem [#allocation0], 72
    %v94 = vld [vmem:[%s93] sm:$0x7]
    %vm95 = vcmask 64512
    %s96 = scalar_lea.vmem %s1, 27
    %97 = vst.msk [vmem:[%s96] sm:$0x7] %vm95, %v94
    %s98 = scalar_lea.vmem [#allocation0], 80
    %v99 = vld [vmem:[%s98] sm:$0x7]
    %vm100 = vcmask 64512
    %s101 = scalar_lea.vmem %s1, 30
    %102 = vst.msk [vmem:[%s101] sm:$0x7] %vm100, %v99
    %s103 = scalar_lea.vmem [#allocation0], 88
    %v104 = vld [vmem:[%s103] sm:$0x7]
    %vm105 = vcmask 64512
    %s106 = scalar_lea.vmem %s1, 33
    %107 = vst.msk [vmem:[%s106] sm:$0x7] %vm105, %v104

// kernel: muzero_forward.1
$region0: #{muzero_forward.1}
  #allocation0 [shape = 'u32[]', space=smem, size = 0x4, offset = 0x4, fixed_abs, tag = 'smem constant byte address 0x4 - core index']
  #allocation1 [shape = 'u32[72,128]{1,0:T(1,128)}', space=vmem, size = 0x9000, scoped, tag = 'internal scratch']
  #allocation2 [shape = 'f32[2,576,16]{2,1,0:T(8,128)}', space=vmem, size = 0x90000, scoped, tag = 'scratch operand']
  #allocation3 [shape = 'f32[256,16]{1,0:T(8,128)}', space=vmem, size = 0x20000, scoped, tag = 'scratch operand']
  %s0 = inlined_call_operand.vmem [shape: f32[2,4,18,18], index: 0, kind: input, shape index: {}]
  %s1 = inlined_call_operand.vmem [shape: f32[128,576], index: 1, kind: input, shape index: {}]
  %s2 = inlined_call_operand.vmem [shape: f32[16,32], index: 2, kind: input, shape index: {}]
  %s3 = inlined_call_operand.vmem [shape: f32[256,32], index: 3, kind: input, shape index: {}]
  %s4 = inlined_call_operand.hbm [shape: f32[256,32], index: 4, kind: output, shape index: {}]
  %s5 = sld [smem:[#allocation0]]
  $region26: #{muzero_forward.1} parent=0
    _
  %s7 = ssub.s32 1, %s5
  %s8 = scalar_select 0, %s7, %s5
  $region1: #{muzero_forward.1} parent=0
    #allocation4 [shape = 'u8[131072]{0}', space=vmem, size = 0x20000, scoped, tag = 'output window, operand 0, single buffered']
    #allocation5 [shape = 's32[1]{0}', space=sflag, size = 0x4, scoped, tag = 'scoped memory for muzero_forward.1']
    %9 = vsyncpa [#allocation5], 0
    // Predicated region
    $region2: #{muzero_forward.1} parent=1 // pred_check
      _
    $region3: #{muzero_forward.1} parent=1 // pred_check_branch
      %11 = sbr.rel (0) target = $region5
    $region4: #{muzero_forward.1} parent=1 // pred_region
      _
    $region5: #{muzero_forward.1} parent=1 // pred_fallthru
      _
    // Predicated region
    $region6: #{muzero_forward.1} parent=1 // pred_check
      _
    $region7: #{muzero_forward.1} parent=1 // pred_check_branch
      %13 = sbr.rel (0) target = $region9
    $region8: #{muzero_forward.1} parent=1 // pred_region
      _
    $region9: #{muzero_forward.1} parent=1 // pred_fallthru
      _
    // Predicated region
    $region10: #{muzero_forward.1} parent=1 // pred_check
      _
    $region11: #{muzero_forward.1} parent=1 // pred_check_branch
      %15 = sbr.rel (0) target = $region13
    $region12: #{muzero_forward.1} parent=1 // pred_region
      _
    $region13: #{muzero_forward.1} parent=1 // pred_fallthru
      _
    // Predicated region
    $region14: #{muzero_forward.1} parent=1 // pred_check
      _
    $region15: #{muzero_forward.1} parent=1 // pred_check_branch
      %17 = sbr.rel (0) target = $region17
    $region16: #{muzero_forward.1} parent=1 // pred_region
      _
    $region17: #{muzero_forward.1} parent=1 // pred_fallthru
      _
    %v18 = vld [vmem:[%s0] sm:$0xff]
    %v19 = vld [vmem:[%s0 + $0x8] sm:$0xff]
    %vm20 = vcmask 130048
    %21 = vst.msk [vmem:[#allocation2] sm:$0xff] %vm20, %v18
    %22 = vst.msk [vmem:[#allocation2 + $0x8] sm:$0xff] %vm20, %v19
    %v23 = vld [vmem:[%s0] sm:$0xff]
    %v24 = vld [vmem:[%s0 + $0x8] sm:$0xff]
    %27 = vrot.lane.b32.xlu0 %v23, 127
    %v28 = vpop.permute.xlu0 %27
    %29 = vrot.lane.b32.xlu0 %v24, 127
    %v30 = vpop.permute.xlu0 %29
    %33 = vst.msk [vmem:[#allocation2 + $0x10] sm:$0xff] %vm20, %v28
    %34 = vst.msk [vmem:[#allocation2 + $0x18] sm:$0xff] %vm20, %v30
    %v35 = vld [vmem:[%s0] sm:$0xff]
    %v36 = vld [vmem:[%s0 + $0x8] sm:$0xff]
    %39 = vrot.lane.b32.xlu0 %v35, 126
    %v40 = vpop.permute.xlu0 %39
    %41 = vrot.lane.b32.xlu0 %v36, 126
    %v42 = vpop.permute.xlu0 %41
    %45 = vst.msk [vmem:[#allocation2 + $0x20] sm:$0xff] %vm20, %v40
    %46 = vst.msk [vmem:[#allocation2 + $0x28] sm:$0xff] %vm20, %v42
    %v47 = vld [vmem:[%s0 + $0x1] sm:$0xff]
    %v48 = vld [vmem:[%s0 + $0x9] sm:$0xff]
    %49 = vst.msk [vmem:[#allocation2 + $0x30] sm:$0xff] %vm20, %v47
    %50 = vst.msk [vmem:[#allocation2 + $0x38] sm:$0xff] %vm20, %v48
    %v51 = vld [vmem:[%s0 + $0x1] sm:$0xff]
    %v52 = vld [vmem:[%s0 + $0x9] sm:$0xff]
    %55 = vrot.lane.b32.xlu0 %v51, 127
    %v56 = vpop.permute.xlu0 %55
    %57 = vrot.lane.b32.xlu0 %v52, 127
    %v58 = vpop.permute.xlu0 %57
    %61 = vst.msk [vmem:[#allocation2 + $0x40] sm:$0xff] %vm20, %v56
    %62 = vst.msk [vmem:[#allocation2 + $0x48] sm:$0xff] %vm20, %v58
    %v63 = vld [vmem:[%s0 + $0x1] sm:$0xff]
    %v64 = vld [vmem:[%s0 + $0x9] sm:$0xff]
    %67 = vrot.lane.b32.xlu0 %v63, 126
    %v68 = vpop.permute.xlu0 %67
    %69 = vrot.lane.b32.xlu0 %v64, 126
    %v70 = vpop.permute.xlu0 %69
    %73 = vst.msk [vmem:[#allocation2 + $0x50] sm:$0xff] %vm20, %v68
    %74 = vst.msk [vmem:[#allocation2 + $0x58] sm:$0xff] %vm20, %v70
    %v75 = vld [vmem:[%s0 + $0x2] sm:$0xff]
    %v76 = vld [vmem:[%s0 + $0xa] sm:$0xff]
    %77 = vst.msk [vmem:[#allocation2 + $0x60] sm:$0xff] %vm20, %v75
    %78 = vst.msk [vmem:[#allocation2 + $0x68] sm:$0xff] %vm20, %v76
    %v79 = vld [vmem:[%s0 + $0x2] sm:$0xff]
    %v80 = vld [vmem:[%s0 + $0xa] sm:$0xff]
    %83 = vrot.lane.b32.xlu0 %v79, 127
    %v84 = vpop.permute.xlu0 %83
    %85 = vrot.lane.b32.xlu0 %v80, 127
    %v86 = vpop.permute.xlu0 %85
    %89 = vst.msk [vmem:[#allocation2 + $0x70] sm:$0xff] %vm20, %v84
    %90 = vst.msk [vmem:[#allocation2 + $0x78] sm:$0xff] %vm20, %v86
    %v91 = vld [vmem:[%s0 + $0x2] sm:$0xff]
    %v92 = vld [vmem:[%s0 + $0xa] sm:$0xff]
    %95 = vrot.lane.b32.xlu0 %v91, 126
    %v96 = vpop.permute.xlu0 %95
    %97 = vrot.lane.b32.xlu0 %v92, 126
    %v98 = vpop.permute.xlu0 %97
    %101 = vst.msk [vmem:[#allocation2 + $0x80] sm:$0xff] %vm20, %v96
    %102 = vst.msk [vmem:[#allocation2 + $0x88] sm:$0xff] %vm20, %v98
    %s103 = scalar_lea.vmem %s0, 24
    %v104 = vld [vmem:[%s103] sm:$0xff]
    %v105 = vld [vmem:[%s103 + $0x8] sm:$0xff]
    %106 = vst.msk [vmem:[#allocation2 + $0x90] sm:$0xff] %vm20, %v104
    %107 = vst.msk [vmem:[#allocation2 + $0x98] sm:$0xff] %vm20, %v105
    %v108 = vld [vmem:[%s103] sm:$0xff]
    %v109 = vld [vmem:[%s103 + $0x8] sm:$0xff]
    %112 = vrot.lane.b32.xlu0 %v108, 127
    %v113 = vpop.permute.xlu0 %112
    %114 = vrot.lane.b32.xlu0 %v109, 127
    %v115 = vpop.permute.xlu0 %114
    %118 = vst.msk [vmem:[#allocation2 + $0xa0] sm:$0xff] %vm20, %v113
    %119 = vst.msk [vmem:[#allocation2 + $0xa8] sm:$0xff] %vm20, %v115
    %v120 = vld [vmem:[%s103] sm:$0xff]
    %v121 = vld [vmem:[%s103 + $0x8] sm:$0xff]
    %124 = vrot.lane.b32.xlu0 %v120, 126
    %v125 = vpop.permute.xlu0 %124
    %126 = vrot.lane.b32.xlu0 %v121, 126
    %v127 = vpop.permute.xlu0 %126
    %130 = vst.msk [vmem:[#allocation2 + $0xb0] sm:$0xff] %vm20, %v125
    %131 = vst.msk [vmem:[#allocation2 + $0xb8] sm:$0xff] %vm20, %v127
    %v132 = vld [vmem:[%s103 + $0x1] sm:$0xff]
    %v133 = vld [vmem:[%s103 + $0x9] sm:$0xff]
    %134 = vst.msk [vmem:[#allocation2 + $0xc0] sm:$0xff] %vm20, %v132
    %135 = vst.msk [vmem:[#allocation2 + $0xc8] sm:$0xff] %vm20, %v133
    %v136 = vld [vmem:[%s103 + $0x1] sm:$0xff]
    %v137 = vld [vmem:[%s103 + $0x9] sm:$0xff]
    %140 = vrot.lane.b32.xlu0 %v136, 127
    %v141 = vpop.permute.xlu0 %140
    %142 = vrot.lane.b32.xlu0 %v137, 127
    %v143 = vpop.permute.xlu0 %142
    %146 = vst.msk [vmem:[#allocation2 + $0xd0] sm:$0xff] %vm20, %v141
    %147 = vst.msk [vmem:[#allocation2 + $0xd8] sm:$0xff] %vm20, %v143
    %v148 = vld [vmem:[%s103 + $0x1] sm:$0xff]
    %v149 = vld [vmem:[%s103 + $0x9] sm:$0xff]
    %152 = vrot.lane.b32.xlu0 %v148, 126
    %v153 = vpop.permute.xlu0 %152
    %154 = vrot.lane.b32.xlu0 %v149, 126
    %v155 = vpop.permute.xlu0 %154
    %158 = vst.msk [vmem:[#allocation2 + $0xe0] sm:$0xff] %vm20, %v153
    %159 = vst.msk [vmem:[#allocation2 + $0xe8] sm:$0xff] %vm20, %v155
    %v160 = vld [vmem:[%s103 + $0x2] sm:$0xff]
    %v161 = vld [vmem:[%s103 + $0xa] sm:$0xff]
    %162 = vst.msk [vmem:[#allocation2 + $0xf0] sm:$0xff] %vm20, %v160
    %163 = vst.msk [vmem:[#allocation2 + $0xf8] sm:$0xff] %vm20, %v161
    %v164 = vld [vmem:[%s103 + $0x2] sm:$0xff]
    %v165 = vld [vmem:[%s103 + $0xa] sm:$0xff]
    %168 = vrot.lane.b32.xlu0 %v164, 127
    %v169 = vpop.permute.xlu0 %168
    %170 = vrot.lane.b32.xlu0 %v165, 127
    %v171 = vpop.permute.xlu0 %170
    %174 = vst.msk [vmem:[#allocation2 + $0x100] sm:$0xff] %vm20, %v169
    %175 = vst.msk [vmem:[#allocation2 + $0x108] sm:$0xff] %vm20, %v171
    %v176 = vld [vmem:[%s103 + $0x2] sm:$0xff]
    %v177 = vld [vmem:[%s103 + $0xa] sm:$0xff]
    %180 = vrot.lane.b32.xlu0 %v176, 126
    %v181 = vpop.permute.xlu0 %180
    %182 = vrot.lane.b32.xlu0 %v177, 126
    %v183 = vpop.permute.xlu0 %182
    %186 = vst.msk [vmem:[#allocation2 + $0x110] sm:$0xff] %vm20, %v181
    %187 = vst.msk [vmem:[#allocation2 + $0x118] sm:$0xff] %vm20, %v183
    %s188 = scalar_lea.vmem %s0, 48
    %v189 = vld [vmem:[%s188] sm:$0xff]
    %v190 = vld [vmem:[%s188 + $0x8] sm:$0xff]
    %191 = vst.msk [vmem:[#allocation2 + $0x120] sm:$0xff] %vm20, %v189
    %192 = vst.msk [vmem:[#allocation2 + $0x128] sm:$0xff] %vm20, %v190
    %v193 = vld [vmem:[%s188] sm:$0xff]
    %v194 = vld [vmem:[%s188 + $0x8] sm:$0xff]
    %197 = vrot.lane.b32.xlu0 %v193, 127
    %v198 = vpop.permute.xlu0 %197
    %199 = vrot.lane.b32.xlu0 %v194, 127
    %v200 = vpop.permute.xlu0 %199
    %203 = vst.msk [vmem:[#allocation2 + $0x130] sm:$0xff] %vm20, %v198
    %204 = vst.msk [vmem:[#allocation2 + $0x138] sm:$0xff] %vm20, %v200
    %v205 = vld [vmem:[%s188] sm:$0xff]
    %v206 = vld [vmem:[%s188 + $0x8] sm:$0xff]
    %209 = vrot.lane.b32.xlu0 %v205, 126
    %v210 = vpop.permute.xlu0 %209
    %211 = vrot.lane.b32.xlu0 %v206, 126
    %v212 = vpop.permute.xlu0 %211
    %215 = vst.msk [vmem:[#allocation2 + $0x140] sm:$0xff] %vm20, %v210
    %216 = vst.msk [vmem:[#allocation2 + $0x148] sm:$0xff] %vm20, %v212
    %v217 = vld [vmem:[%s188 + $0x1] sm:$0xff]
    %v218 = vld [vmem:[%s188 + $0x9] sm:$0xff]
    %219 = vst.msk [vmem:[#allocation2 + $0x150] sm:$0xff] %vm20, %v217
    %220 = vst.msk [vmem:[#allocation2 + $0x158] sm:$0xff] %vm20, %v218
    %v221 = vld [vmem:[%s188 + $0x1] sm:$0xff]
    %v222 = vld [vmem:[%s188 + $0x9] sm:$0xff]
    %225 = vrot.lane.b32.xlu0 %v221, 127
    %v226 = vpop.permute.xlu0 %225
    %227 = vrot.lane.b32.xlu0 %v222, 127
    %v228 = vpop.permute.xlu0 %227
    %231 = vst.msk [vmem:[#allocation2 + $0x160] sm:$0xff] %vm20, %v226
    %232 = vst.msk [vmem:[#allocation2 + $0x168] sm:$0xff] %vm20, %v228
    %v233 = vld [vmem:[%s188 + $0x1] sm:$0xff]
    %v234 = vld [vmem:[%s188 + $0x9] sm:$0xff]
    %237 = vrot.lane.b32.xlu0 %v233, 126
    %v238 = vpop.permute.xlu0 %237
    %239 = vrot.lane.b32.xlu0 %v234, 126
    %v240 = vpop.permute.xlu0 %239
    %243 = vst.msk [vmem:[#allocation2 + $0x170] sm:$0xff] %vm20, %v238
    %244 = vst.msk [vmem:[#allocation2 + $0x178] sm:$0xff] %vm20, %v240
    %v245 = vld [vmem:[%s188 + $0x2] sm:$0xff]
    %v246 = vld [vmem:[%s188 + $0xa] sm:$0xff]
    %247 = vst.msk [vmem:[#allocation2 + $0x180] sm:$0xff] %vm20, %v245
    %248 = vst.msk [vmem:[#allocation2 + $0x188] sm:$0xff] %vm20, %v246
    %v249 = vld [vmem:[%s188 + $0x2] sm:$0xff]
    %v250 = vld [vmem:[%s188 + $0xa] sm:$0xff]
    %253 = vrot.lane.b32.xlu0 %v249, 127
    %v254 = vpop.permute.xlu0 %253
    %255 = vrot.lane.b32.xlu0 %v250, 127
    %v256 = vpop.permute.xlu0 %255
    %259 = vst.msk [vmem:[#allocation2 + $0x190] sm:$0xff] %vm20, %v254
    %260 = vst.msk [vmem:[#allocation2 + $0x198] sm:$0xff] %vm20, %v256
    %v261 = vld [vmem:[%s188 + $0x2] sm:$0xff]
    %v262 = vld [vmem:[%s188 + $0xa] sm:$0xff]
    %265 = vrot.lane.b32.xlu0 %v261, 126
    %v266 = vpop.permute.xlu0 %265
    %267 = vrot.lane.b32.xlu0 %v262, 126
    %v268 = vpop.permute.xlu0 %267
    %271 = vst.msk [vmem:[#allocation2 + $0x1a0] sm:$0xff] %vm20, %v266
    %272 = vst.msk [vmem:[#allocation2 + $0x1a8] sm:$0xff] %vm20, %v268
    %s273 = scalar_lea.vmem %s0, 72
    %v274 = vld [vmem:[%s273] sm:$0xff]
    %v275 = vld [vmem:[%s273 + $0x8] sm:$0xff]
    %276 = vst.msk [vmem:[#allocation2 + $0x1b0] sm:$0xff] %vm20, %v274
    %277 = vst.msk [vmem:[#allocation2 + $0x1b8] sm:$0xff] %vm20, %v275
    %v278 = vld [vmem:[%s273] sm:$0xff]
    %v279 = vld [vmem:[%s273 + $0x8] sm:$0xff]
    %282 = vrot.lane.b32.xlu0 %v278, 127
    %v283 = vpop.permute.xlu0 %282
    %284 = vrot.lane.b32.xlu0 %v279, 127
    %v285 = vpop.permute.xlu0 %284
    %288 = vst.msk [vmem:[#allocation2 + $0x1c0] sm:$0xff] %vm20, %v283
    %289 = vst.msk [vmem:[#allocation2 + $0x1c8] sm:$0xff] %vm20, %v285
    %v290 = vld [vmem:[%s273] sm:$0xff]
    %v291 = vld [vmem:[%s273 + $0x8] sm:$0xff]
    %294 = vrot.lane.b32.xlu0 %v290, 126
    %v295 = vpop.permute.xlu0 %294
    %296 = vrot.lane.b32.xlu0 %v291, 126
    %v297 = vpop.permute.xlu0 %296
    %300 = vst.msk [vmem:[#allocation2 + $0x1d0] sm:$0xff] %vm20, %v295
    %301 = vst.msk [vmem:[#allocation2 + $0x1d8] sm:$0xff] %vm20, %v297
    %v302 = vld [vmem:[%s273 + $0x1] sm:$0xff]
    %v303 = vld [vmem:[%s273 + $0x9] sm:$0xff]
    %304 = vst.msk [vmem:[#allocation2 + $0x1e0] sm:$0xff] %vm20, %v302
    %305 = vst.msk [vmem:[#allocation2 + $0x1e8] sm:$0xff] %vm20, %v303
    %v306 = vld [vmem:[%s273 + $0x1] sm:$0xff]
    %v307 = vld [vmem:[%s273 + $0x9] sm:$0xff]
    %310 = vrot.lane.b32.xlu0 %v306, 127
    %v311 = vpop.permute.xlu0 %310
    %312 = vrot.lane.b32.xlu0 %v307, 127
    %v313 = vpop.permute.xlu0 %312
    %316 = vst.msk [vmem:[#allocation2 + $0x1f0] sm:$0xff] %vm20, %v311
    %317 = vst.msk [vmem:[#allocation2 + $0x1f8] sm:$0xff] %vm20, %v313
    %v318 = vld [vmem:[%s273 + $0x1] sm:$0xff]
    %v319 = vld [vmem:[%s273 + $0x9] sm:$0xff]
    %322 = vrot.lane.b32.xlu0 %v318, 126
    %v323 = vpop.permute.xlu0 %322
    %324 = vrot.lane.b32.xlu0 %v319, 126
    %v325 = vpop.permute.xlu0 %324
    %328 = vst.msk [vmem:[#allocation2 + $0x200] sm:$0xff] %vm20, %v323
    %329 = vst.msk [vmem:[#allocation2 + $0x208] sm:$0xff] %vm20, %v325
    %v330 = vld [vmem:[%s273 + $0x2] sm:$0xff]
    %v331 = vld [vmem:[%s273 + $0xa] sm:$0xff]
    %332 = vst.msk [vmem:[#allocation2 + $0x210] sm:$0xff] %vm20, %v330
    %333 = vst.msk [vmem:[#allocation2 + $0x218] sm:$0xff] %vm20, %v331
    %v334 = vld [vmem:[%s273 + $0x2] sm:$0xff]
    %v335 = vld [vmem:[%s273 + $0xa] sm:$0xff]
    %338 = vrot.lane.b32.xlu0 %v334, 127
    %v339 = vpop.permute.xlu0 %338
    %340 = vrot.lane.b32.xlu0 %v335, 127
    %v341 = vpop.permute.xlu0 %340
    %344 = vst.msk [vmem:[#allocation2 + $0x220] sm:$0xff] %vm20, %v339
    %345 = vst.msk [vmem:[#allocation2 + $0x228] sm:$0xff] %vm20, %v341
    %v346 = vld [vmem:[%s273 + $0x2] sm:$0xff]
    %v347 = vld [vmem:[%s273 + $0xa] sm:$0xff]
    %350 = vrot.lane.b32.xlu0 %v346, 126
    %v351 = vpop.permute.xlu0 %350
    %352 = vrot.lane.b32.xlu0 %v347, 126
    %v353 = vpop.permute.xlu0 %352
    %356 = vst.msk [vmem:[#allocation2 + $0x230] sm:$0xff] %vm20, %v351
    %357 = vst.msk [vmem:[#allocation2 + $0x238] sm:$0xff] %vm20, %v353
    %s358 = scalar_lea.vmem %s0, 96
    %v359 = vld [vmem:[%s358] sm:$0xff]
    %v360 = vld [vmem:[%s358 + $0x8] sm:$0xff]
    %s361 = scalar_lea.vmem [#allocation2], 576
    %362 = vst.msk [vmem:[%s361] sm:$0xff] %vm20, %v359
    %363 = vst.msk [vmem:[%s361 + $0x8] sm:$0xff] %vm20, %v360
    %v364 = vld [vmem:[%s358] sm:$0xff]
    %v365 = vld [vmem:[%s358 + $0x8] sm:$0xff]
    %368 = vrot.lane.b32.xlu0 %v364, 127
    %v369 = vpop.permute.xlu0 %368
    %370 = vrot.lane.b32.xlu0 %v365, 127
    %v371 = vpop.permute.xlu0 %370
    %374 = vst.msk [vmem:[%s361 + $0x10] sm:$0xff] %vm20, %v369
    %375 = vst.msk [vmem:[%s361 + $0x18] sm:$0xff] %vm20, %v371
    %v376 = vld [vmem:[%s358] sm:$0xff]
    %v377 = vld [vmem:[%s358 + $0x8] sm:$0xff]
    %380 = vrot.lane.b32.xlu0 %v376, 126
    %v381 = vpop.permute.xlu0 %380
    %382 = vrot.lane.b32.xlu0 %v377, 126
    %v383 = vpop.permute.xlu0 %382
    %386 = vst.msk [vmem:[%s361 + $0x20] sm:$0xff] %vm20, %v381
    %387 = vst.msk [vmem:[%s361 + $0x28] sm:$0xff] %vm20, %v383
    %v388 = vld [vmem:[%s358 + $0x1] sm:$0xff]
    %v389 = vld [vmem:[%s358 + $0x9] sm:$0xff]
    %390 = vst.msk [vmem:[%s361 + $0x30] sm:$0xff] %vm20, %v388
    %391 = vst.msk [vmem:[%s361 + $0x38] sm:$0xff] %vm20, %v389
    %v392 = vld [vmem:[%s358 + $0x1] sm:$0xff]
    %v393 = vld [vmem:[%s358 + $0x9] sm:$0xff]
    %396 = vrot.lane.b32.xlu0 %v392, 127
    %v397 = vpop.permute.xlu0 %396
    %398 = vrot.lane.b32.xlu0 %v393, 127
    %v399 = vpop.permute.xlu0 %398
    %402 = vst.msk [vmem:[%s361 + $0x40] sm:$0xff] %vm20, %v397
    %403 = vst.msk [vmem:[%s361 + $0x48] sm:$0xff] %vm20, %v399
    %v404 = vld [vmem:[%s358 + $0x1] sm:$0xff]
    %v405 = vld [vmem:[%s358 + $0x9] sm:$0xff]
    %408 = vrot.lane.b32.xlu0 %v404, 126
    %v409 = vpop.permute.xlu0 %408
    %410 = vrot.lane.b32.xlu0 %v405, 126
    %v411 = vpop.permute.xlu0 %410
    %414 = vst.msk [vmem:[%s361 + $0x50] sm:$0xff] %vm20, %v409
    %415 = vst.msk [vmem:[%s361 + $0x58] sm:$0xff] %vm20, %v411
    %v416 = vld [vmem:[%s358 + $0x2] sm:$0xff]
    %v417 = vld [vmem:[%s358 + $0xa] sm:$0xff]
    %418 = vst.msk [vmem:[%s361 + $0x60] sm:$0xff] %vm20, %v416
    %419 = vst.msk [vmem:[%s361 + $0x68] sm:$0xff] %vm20, %v417
    %v420 = vld [vmem:[%s358 + $0x2] sm:$0xff]
    %v421 = vld [vmem:[%s358 + $0xa] sm:$0xff]
    %424 = vrot.lane.b32.xlu0 %v420, 127
    %v425 = vpop.permute.xlu0 %424
    %426 = vrot.lane.b32.xlu0 %v421, 127
    %v427 = vpop.permute.xlu0 %426
    %430 = vst.msk [vmem:[%s361 + $0x70] sm:$0xff] %vm20, %v425
    %431 = vst.msk [vmem:[%s361 + $0x78] sm:$0xff] %vm20, %v427
    %v432 = vld [vmem:[%s358 + $0x2] sm:$0xff]
    %v433 = vld [vmem:[%s358 + $0xa] sm:$0xff]
    %436 = vrot.lane.b32.xlu0 %v432, 126
    %v437 = vpop.permute.xlu0 %436
    %438 = vrot.lane.b32.xlu0 %v433, 126
    %v439 = vpop.permute.xlu0 %438
    %442 = vst.msk [vmem:[%s361 + $0x80] sm:$0xff] %vm20, %v437
    %443 = vst.msk [vmem:[%s361 + $0x88] sm:$0xff] %vm20, %v439
    %s444 = scalar_lea.vmem %s0, 120
    %v445 = vld [vmem:[%s444] sm:$0xff]
    %v446 = vld [vmem:[%s444 + $0x8] sm:$0xff]
    %447 = vst.msk [vmem:[%s361 + $0x90] sm:$0xff] %vm20, %v445
    %448 = vst.msk [vmem:[%s361 + $0x98] sm:$0xff] %vm20, %v446
    %v449 = vld [vmem:[%s444] sm:$0xff]
    %v450 = vld [vmem:[%s444 + $0x8] sm:$0xff]
    %453 = vrot.lane.b32.xlu0 %v449, 127
    %v454 = vpop.permute.xlu0 %453
    %455 = vrot.lane.b32.xlu0 %v450, 127
    %v456 = vpop.permute.xlu0 %455
    %459 = vst.msk [vmem:[%s361 + $0xa0] sm:$0xff] %vm20, %v454
    %460 = vst.msk [vmem:[%s361 + $0xa8] sm:$0xff] %vm20, %v456
    %v461 = vld [vmem:[%s444] sm:$0xff]
    %v462 = vld [vmem:[%s444 + $0x8] sm:$0xff]
    %465 = vrot.lane.b32.xlu0 %v461, 126
    %v466 = vpop.permute.xlu0 %465
    %467 = vrot.lane.b32.xlu0 %v462, 126
    %v468 = vpop.permute.xlu0 %467
    %471 = vst.msk [vmem:[%s361 + $0xb0] sm:$0xff] %vm20, %v466
    %472 = vst.msk [vmem:[%s361 + $0xb8] sm:$0xff] %vm20, %v468
    %v473 = vld [vmem:[%s444 + $0x1] sm:$0xff]
    %v474 = vld [vmem:[%s444 + $0x9] sm:$0xff]
    %475 = vst.msk [vmem:[%s361 + $0xc0] sm:$0xff] %vm20, %v473
    %476 = vst.msk [vmem:[%s361 + $0xc8] sm:$0xff] %vm20, %v474
    %v477 = vld [vmem:[%s444 + $0x1] sm:$0xff]
    %v478 = vld [vmem:[%s444 + $0x9] sm:$0xff]
    %481 = vrot.lane.b32.xlu0 %v477, 127
    %v482 = vpop.permute.xlu0 %481
    %483 = vrot.lane.b32.xlu0 %v478, 127
    %v484 = vpop.permute.xlu0 %483
    %487 = vst.msk [vmem:[%s361 + $0xd0] sm:$0xff] %vm20, %v482
    %488 = vst.msk [vmem:[%s361 + $0xd8] sm:$0xff] %vm20, %v484
    %v489 = vld [vmem:[%s444 + $0x1] sm:$0xff]
    %v490 = vld [vmem:[%s444 + $0x9] sm:$0xff]
    %493 = vrot.lane.b32.xlu0 %v489, 126
    %v494 = vpop.permute.xlu0 %493
    %495 = vrot.lane.b32.xlu0 %v490, 126
    %v496 = vpop.permute.xlu0 %495
    %499 = vst.msk [vmem:[%s361 + $0xe0] sm:$0xff] %vm20, %v494
    %500 = vst.msk [vmem:[%s361 + $0xe8] sm:$0xff] %vm20, %v496
    %v501 = vld [vmem:[%s444 + $0x2] sm:$0xff]
    %v502 = vld [vmem:[%s444 + $0xa] sm:$0xff]
    %503 = vst.msk [vmem:[%s361 + $0xf0] sm:$0xff] %vm20, %v501
    %504 = vst.msk [vmem:[%s361 + $0xf8] sm:$0xff] %vm20, %v502
    %v505 = vld [vmem:[%s444 + $0x2] sm:$0xff]
    %v506 = vld [vmem:[%s444 + $0xa] sm:$0xff]
    %509 = vrot.lane.b32.xlu0 %v505, 127
    %v510 = vpop.permute.xlu0 %509
    %511 = vrot.lane.b32.xlu0 %v506, 127
    %v512 = vpop.permute.xlu0 %511
    %515 = vst.msk [vmem:[%s361 + $0x100] sm:$0xff] %vm20, %v510
    %516 = vst.msk [vmem:[%s361 + $0x108] sm:$0xff] %vm20, %v512
    %v517 = vld [vmem:[%s444 + $0x2] sm:$0xff]
    %v518 = vld [vmem:[%s444 + $0xa] sm:$0xff]
    %521 = vrot.lane.b32.xlu0 %v517, 126
    %v522 = vpop.permute.xlu0 %521
    %523 = vrot.lane.b32.xlu0 %v518, 126
    %v524 = vpop.permute.xlu0 %523
    %527 = vst.msk [vmem:[%s361 + $0x110] sm:$0xff] %vm20, %v522
    %528 = vst.msk [vmem:[%s361 + $0x118] sm:$0xff] %vm20, %v524
    %s529 = scalar_lea.vmem %s0, 144
    %v530 = vld [vmem:[%s529] sm:$0xff]
    %v531 = vld [vmem:[%s529 + $0x8] sm:$0xff]
    %532 = vst.msk [vmem:[%s361 + $0x120] sm:$0xff] %vm20, %v530
    %533 = vst.msk [vmem:[%s361 + $0x128] sm:$0xff] %vm20, %v531
    %v534 = vld [vmem:[%s529] sm:$0xff]
    %v535 = vld [vmem:[%s529 + $0x8] sm:$0xff]
    %538 = vrot.lane.b32.xlu0 %v534, 127
    %v539 = vpop.permute.xlu0 %538
    %540 = vrot.lane.b32.xlu0 %v535, 127
    %v541 = vpop.permute.xlu0 %540
    %544 = vst.msk [vmem:[%s361 + $0x130] sm:$0xff] %vm20, %v539
    %545 = vst.msk [vmem:[%s361 + $0x138] sm:$0xff] %vm20, %v541
    %v546 = vld [vmem:[%s529] sm:$0xff]
    %v547 = vld [vmem:[%s529 + $0x8] sm:$0xff]
    %550 = vrot.lane.b32.xlu0 %v546, 126
    %v551 = vpop.permute.xlu0 %550
    %552 = vrot.lane.b32.xlu0 %v547, 126
    %v553 = vpop.permute.xlu0 %552
    %556 = vst.msk [vmem:[%s361 + $0x140] sm:$0xff] %vm20, %v551
    %557 = vst.msk [vmem:[%s361 + $0x148] sm:$0xff] %vm20, %v553
    %v558 = vld [vmem:[%s529 + $0x1] sm:$0xff]
    %v559 = vld [vmem:[%s529 + $0x9] sm:$0xff]
    %560 = vst.msk [vmem:[%s361 + $0x150] sm:$0xff] %vm20, %v558
    %561 = vst.msk [vmem:[%s361 + $0x158] sm:$0xff] %vm20, %v559
    %v562 = vld [vmem:[%s529 + $0x1] sm:$0xff]
    %v563 = vld [vmem:[%s529 + $0x9] sm:$0xff]
    %566 = vrot.lane.b32.xlu0 %v562, 127
    %v567 = vpop.permute.xlu0 %566
    %568 = vrot.lane.b32.xlu0 %v563, 127
    %v569 = vpop.permute.xlu0 %568
    %572 = vst.msk [vmem:[%s361 + $0x160] sm:$0xff] %vm20, %v567
    %573 = vst.msk [vmem:[%s361 + $0x168] sm:$0xff] %vm20, %v569
    %v574 = vld [vmem:[%s529 + $0x1] sm:$0xff]
    %v575 = vld [vmem:[%s529 + $0x9] sm:$0xff]
    %578 = vrot.lane.b32.xlu0 %v574, 126
    %v579 = vpop.permute.xlu0 %578
    %580 = vrot.lane.b32.xlu0 %v575, 126
    %v581 = vpop.permute.xlu0 %580
    %584 = vst.msk [vmem:[%s361 + $0x170] sm:$0xff] %vm20, %v579
    %585 = vst.msk [vmem:[%s361 + $0x178] sm:$0xff] %vm20, %v581
    %v586 = vld [vmem:[%s529 + $0x2] sm:$0xff]
    %v587 = vld [vmem:[%s529 + $0xa] sm:$0xff]
    %588 = vst.msk [vmem:[%s361 + $0x180] sm:$0xff] %vm20, %v586
    %589 = vst.msk [vmem:[%s361 + $0x188] sm:$0xff] %vm20, %v587
    %v590 = vld [vmem:[%s529 + $0x2] sm:$0xff]
    %v591 = vld [vmem:[%s529 + $0xa] sm:$0xff]
    %594 = vrot.lane.b32.xlu0 %v590, 127
    %v595 = vpop.permute.xlu0 %594
    %596 = vrot.lane.b32.xlu0 %v591, 127
    %v597 = vpop.permute.xlu0 %596
    %600 = vst.msk [vmem:[%s361 + $0x190] sm:$0xff] %vm20, %v595
    %601 = vst.msk [vmem:[%s361 + $0x198] sm:$0xff] %vm20, %v597
    %v602 = vld [vmem:[%s529 + $0x2] sm:$0xff]
    %v603 = vld [vmem:[%s529 + $0xa] sm:$0xff]
    %606 = vrot.lane.b32.xlu0 %v602, 126
    %v607 = vpop.permute.xlu0 %606
    %608 = vrot.lane.b32.xlu0 %v603, 126
    %v609 = vpop.permute.xlu0 %608
    %612 = vst.msk [vmem:[%s361 + $0x1a0] sm:$0xff] %vm20, %v607
    %613 = vst.msk [vmem:[%s361 + $0x1a8] sm:$0xff] %vm20, %v609
    %s614 = scalar_lea.vmem %s0, 168
    %v615 = vld [vmem:[%s614] sm:$0xff]
    %v616 = vld [vmem:[%s614 + $0x8] sm:$0xff]
    %617 = vst.msk [vmem:[%s361 + $0x1b0] sm:$0xff] %vm20, %v615
    %618 = vst.msk [vmem:[%s361 + $0x1b8] sm:$0xff] %vm20, %v616
    %v619 = vld [vmem:[%s614] sm:$0xff]
    %v620 = vld [vmem:[%s614 + $0x8] sm:$0xff]
    %623 = vrot.lane.b32.xlu0 %v619, 127
    %v624 = vpop.permute.xlu0 %623
    %625 = vrot.lane.b32.xlu0 %v620, 127
    %v626 = vpop.permute.xlu0 %625
    %629 = vst.msk [vmem:[%s361 + $0x1c0] sm:$0xff] %vm20, %v624
    %630 = vst.msk [vmem:[%s361 + $0x1c8] sm:$0xff] %vm20, %v626
    %v631 = vld [vmem:[%s614] sm:$0xff]
    %v632 = vld [vmem:[%s614 + $0x8] sm:$0xff]
    %635 = vrot.lane.b32.xlu0 %v631, 126
    %v636 = vpop.permute.xlu0 %635
    %637 = vrot.lane.b32.xlu0 %v632, 126
    %v638 = vpop.permute.xlu0 %637
    %641 = vst.msk [vmem:[%s361 + $0x1d0] sm:$0xff] %vm20, %v636
    %642 = vst.msk [vmem:[%s361 + $0x1d8] sm:$0xff] %vm20, %v638
    %v643 = vld [vmem:[%s614 + $0x1] sm:$0xff]
    %v644 = vld [vmem:[%s614 + $0x9] sm:$0xff]
    %645 = vst.msk [vmem:[%s361 + $0x1e0] sm:$0xff] %vm20, %v643
    %646 = vst.msk [vmem:[%s361 + $0x1e8] sm:$0xff] %vm20, %v644
    %v647 = vld [vmem:[%s614 + $0x1] sm:$0xff]
    %v648 = vld [vmem:[%s614 + $0x9] sm:$0xff]
    %651 = vrot.lane.b32.xlu0 %v647, 127
    %v652 = vpop.permute.xlu0 %651
    %653 = vrot.lane.b32.xlu0 %v648, 127
    %v654 = vpop.permute.xlu0 %653
    %657 = vst.msk [vmem:[%s361 + $0x1f0] sm:$0xff] %vm20, %v652
    %658 = vst.msk [vmem:[%s361 + $0x1f8] sm:$0xff] %vm20, %v654
    %v659 = vld [vmem:[%s614 + $0x1] sm:$0xff]
    %v660 = vld [vmem:[%s614 + $0x9] sm:$0xff]
    %663 = vrot.lane.b32.xlu0 %v659, 126
    %v664 = vpop.permute.xlu0 %663
    %665 = vrot.lane.b32.xlu0 %v660, 126
    %v666 = vpop.permute.xlu0 %665
    %669 = vst.msk [vmem:[%s361 + $0x200] sm:$0xff] %vm20, %v664
    %670 = vst.msk [vmem:[%s361 + $0x208] sm:$0xff] %vm20, %v666
    %v671 = vld [vmem:[%s614 + $0x2] sm:$0xff]
    %v672 = vld [vmem:[%s614 + $0xa] sm:$0xff]
    %673 = vst.msk [vmem:[%s361 + $0x210] sm:$0xff] %vm20, %v671
    %674 = vst.msk [vmem:[%s361 + $0x218] sm:$0xff] %vm20, %v672
    %v675 = vld [vmem:[%s614 + $0x2] sm:$0xff]
    %v676 = vld [vmem:[%s614 + $0xa] sm:$0xff]
    %679 = vrot.lane.b32.xlu0 %v675, 127
    %v680 = vpop.permute.xlu0 %679
    %681 = vrot.lane.b32.xlu0 %v676, 127
    %v682 = vpop.permute.xlu0 %681
    %685 = vst.msk [vmem:[%s361 + $0x220] sm:$0xff] %vm20, %v680
    %686 = vst.msk [vmem:[%s361 + $0x228] sm:$0xff] %vm20, %v682
    %v687 = vld [vmem:[%s614 + $0x2] sm:$0xff]
    %v688 = vld [vmem:[%s614 + $0xa] sm:$0xff]
    %691 = vrot.lane.b32.xlu0 %v687, 126
    %v692 = vpop.permute.xlu0 %691
    %693 = vrot.lane.b32.xlu0 %v688, 126
    %v694 = vpop.permute.xlu0 %693
    %697 = vst.msk [vmem:[%s361 + $0x230] sm:$0xff] %vm20, %v692
    %698 = vst.msk [vmem:[%s361 + $0x238] sm:$0xff] %vm20, %v694
    %v699 = vld [vmem:[%s1] sm:$0xff]
    %v700 = vld [vmem:[%s1 + $0x8] sm:$0xff]
    %v701 = vld [vmem:[%s1 + $0x10] sm:$0xff]
    %v702 = vld [vmem:[%s1 + $0x18] sm:$0xff]
    %v703 = vld [vmem:[%s1 + $0x20] sm:$0xff]
    %v704 = vld [vmem:[%s1 + $0x28] sm:$0xff]
    %v705 = vld [vmem:[%s1 + $0x30] sm:$0xff]
    %v706 = vld [vmem:[%s1 + $0x38] sm:$0xff]
    %v707 = vld [vmem:[%s1 + $0x40] sm:$0xff]
    %v708 = vld [vmem:[%s1 + $0x48] sm:$0xff]
    %v709 = vld [vmem:[%s1 + $0x50] sm:$0xff]
    %v710 = vld [vmem:[%s1 + $0x58] sm:$0xff]
    %v711 = vld [vmem:[%s1 + $0x60] sm:$0xff]
    %v712 = vld [vmem:[%s1 + $0x68] sm:$0xff]
    %v713 = vld [vmem:[%s1 + $0x70] sm:$0xff]
    %v714 = vld [vmem:[%s1 + $0x78] sm:$0xff]
    %v715 = vld [vmem:[%s1 + $0x80] sm:$0xff]
    %v716 = vld [vmem:[%s1 + $0x88] sm:$0xff]
    %v717 = vld [vmem:[%s1 + $0x90] sm:$0xff]
    %v718 = vld [vmem:[%s1 + $0x98] sm:$0xff]
    %v719 = vld [vmem:[%s1 + $0xa0] sm:$0xff]
    %v720 = vld [vmem:[%s1 + $0xa8] sm:$0xff]
    %v721 = vld [vmem:[%s1 + $0xb0] sm:$0xff]
    %v722 = vld [vmem:[%s1 + $0xb8] sm:$0xff]
    %v723 = vld [vmem:[%s1 + $0xc0] sm:$0xff]
    %v724 = vld [vmem:[%s1 + $0xc8] sm:$0xff]
    %v725 = vld [vmem:[%s1 + $0xd0] sm:$0xff]
    %v726 = vld [vmem:[%s1 + $0xd8] sm:$0xff]
    %v727 = vld [vmem:[%s1 + $0xe0] sm:$0xff]
    %v728 = vld [vmem:[%s1 + $0xe8] sm:$0xff]
    %v729 = vld [vmem:[%s1 + $0xf0] sm:$0xff]
    %v730 = vld [vmem:[%s1 + $0xf8] sm:$0xff]
    %v731 = vld [vmem:[%s1 + $0x100] sm:$0xff]
    %v732 = vld [vmem:[%s1 + $0x108] sm:$0xff]
    %v733 = vld [vmem:[%s1 + $0x110] sm:$0xff]
    %v734 = vld [vmem:[%s1 + $0x118] sm:$0xff]
    %v735 = vld [vmem:[%s1 + $0x120] sm:$0xff]
    %v736 = vld [vmem:[%s1 + $0x128] sm:$0xff]
    %v737 = vld [vmem:[%s1 + $0x130] sm:$0xff]
    %v738 = vld [vmem:[%s1 + $0x138] sm:$0xff]
    %v739 = vld [vmem:[%s1 + $0x140] sm:$0xff]
    %v740 = vld [vmem:[%s1 + $0x148] sm:$0xff]
    %v741 = vld [vmem:[%s1 + $0x150] sm:$0xff]
    %v742 = vld [vmem:[%s1 + $0x158] sm:$0xff]
    %v743 = vld [vmem:[%s1 + $0x160] sm:$0xff]
    %v744 = vld [vmem:[%s1 + $0x168] sm:$0xff]
    %v745 = vld [vmem:[%s1 + $0x170] sm:$0xff]
    %v746 = vld [vmem:[%s1 + $0x178] sm:$0xff]
    %v747 = vld [vmem:[%s1 + $0x180] sm:$0xff]
    %v748 = vld [vmem:[%s1 + $0x188] sm:$0xff]
    %v749 = vld [vmem:[%s1 + $0x190] sm:$0xff]
    %v750 = vld [vmem:[%s1 + $0x198] sm:$0xff]
    %v751 = vld [vmem:[%s1 + $0x1a0] sm:$0xff]
    %v752 = vld [vmem:[%s1 + $0x1a8] sm:$0xff]
    %v753 = vld [vmem:[%s1 + $0x1b0] sm:$0xff]
    %v754 = vld [vmem:[%s1 + $0x1b8] sm:$0xff]
    %v755 = vld [vmem:[%s1 + $0x1c0] sm:$0xff]
    %v756 = vld [vmem:[%s1 + $0x1c8] sm:$0xff]
    %v757 = vld [vmem:[%s1 + $0x1d0] sm:$0xff]
    %v758 = vld [vmem:[%s1 + $0x1d8] sm:$0xff]
    %v759 = vld [vmem:[%s1 + $0x1e0] sm:$0xff]
    %v760 = vld [vmem:[%s1 + $0x1e8] sm:$0xff]
    %v761 = vld [vmem:[%s1 + $0x1f0] sm:$0xff]
    %v762 = vld [vmem:[%s1 + $0x1f8] sm:$0xff]
    %v763 = vld [vmem:[%s1 + $0x200] sm:$0xff]
    %v764 = vld [vmem:[%s1 + $0x208] sm:$0xff]
    %v765 = vld [vmem:[%s1 + $0x210] sm:$0xff]
    %v766 = vld [vmem:[%s1 + $0x218] sm:$0xff]
    %v767 = vld [vmem:[%s1 + $0x220] sm:$0xff]
    %v768 = vld [vmem:[%s1 + $0x228] sm:$0xff]
    %v769 = vld [vmem:[%s1 + $0x230] sm:$0xff]
    %v770 = vld [vmem:[%s1 + $0x238] sm:$0xff]
    %v771 = vld [vmem:[%s1 + $0x240] sm:$0xff]
    %v772 = vld [vmem:[%s1 + $0x248] sm:$0xff]
    %v773 = vld [vmem:[%s1 + $0x250] sm:$0xff]
    %v774 = vld [vmem:[%s1 + $0x258] sm:$0xff]
    %v775 = vld [vmem:[%s1 + $0x260] sm:$0xff]
    %v776 = vld [vmem:[%s1 + $0x268] sm:$0xff]
    %v777 = vld [vmem:[%s1 + $0x270] sm:$0xff]
    %v778 = vld [vmem:[%s1 + $0x278] sm:$0xff]
    %v779 = vld [vmem:[#allocation2] sm:$0xff]
    %v780 = vld [vmem:[#allocation2 + $0x8] sm:$0xff]
    %v781 = vld [vmem:[#allocation2 + $0x10] sm:$0xff]
    %v782 = vld [vmem:[#allocation2 + $0x18] sm:$0xff]
    %v783 = vld [vmem:[#allocation2 + $0x20] sm:$0xff]
    %v784 = vld [vmem:[#allocation2 + $0x28] sm:$0xff]
    %v785 = vld [vmem:[#allocation2 + $0x30] sm:$0xff]
    %v786 = vld [vmem:[#allocation2 + $0x38] sm:$0xff]
    %v787 = vld [vmem:[#allocation2 + $0x40] sm:$0xff]
    %v788 = vld [vmem:[#allocation2 + $0x48] sm:$0xff]
    %v789 = vld [vmem:[#allocation2 + $0x50] sm:$0xff]
    %v790 = vld [vmem:[#allocation2 + $0x58] sm:$0xff]
    %v791 = vld [vmem:[#allocation2 + $0x60] sm:$0xff]
    %v792 = vld [vmem:[#allocation2 + $0x68] sm:$0xff]
    %v793 = vld [vmem:[#allocation2 + $0x70] sm:$0xff]
    %v794 = vld [vmem:[#allocation2 + $0x78] sm:$0xff]
    %v795 = vld [vmem:[#allocation2 + $0x80] sm:$0xff]
    %v796 = vld [vmem:[#allocation2 + $0x88] sm:$0xff]
    %v797 = vld [vmem:[#allocation2 + $0x90] sm:$0xff]
    %v798 = vld [vmem:[#allocation2 + $0x98] sm:$0xff]
    %v799 = vld [vmem:[#allocation2 + $0xa0] sm:$0xff]
    %v800 = vld [vmem:[#allocation2 + $0xa8] sm:$0xff]
    %v801 = vld [vmem:[#allocation2 + $0xb0] sm:$0xff]
    %v802 = vld [vmem:[#allocation2 + $0xb8] sm:$0xff]
    %v803 = vld [vmem:[#allocation2 + $0xc0] sm:$0xff]
    %v804 = vld [vmem:[#allocation2 + $0xc8] sm:$0xff]
    %v805 = vld [vmem:[#allocation2 + $0xd0] sm:$0xff]
    %v806 = vld [vmem:[#allocation2 + $0xd8] sm:$0xff]
    %v807 = vld [vmem:[#allocation2 + $0xe0] sm:$0xff]
    %v808 = vld [vmem:[#allocation2 + $0xe8] sm:$0xff]
    %v809 = vld [vmem:[#allocation2 + $0xf0] sm:$0xff]
    %v810 = vld [vmem:[#allocation2 + $0xf8] sm:$0xff]
    %v811 = vld [vmem:[#allocation2 + $0x100] sm:$0xff]
    %v812 = vld [vmem:[#allocation2 + $0x108] sm:$0xff]
    %v813 = vld [vmem:[#allocation2 + $0x110] sm:$0xff]
    %v814 = vld [vmem:[#allocation2 + $0x118] sm:$0xff]
    %v815 = vld [vmem:[#allocation2 + $0x120] sm:$0xff]
    %v816 = vld [vmem:[#allocation2 + $0x128] sm:$0xff]
    %v817 = vld [vmem:[#allocation2 + $0x130] sm:$0xff]
    %v818 = vld [vmem:[#allocation2 + $0x138] sm:$0xff]
    %v819 = vld [vmem:[#allocation2 + $0x140] sm:$0xff]
    %v820 = vld [vmem:[#allocation2 + $0x148] sm:$0xff]
    %v821 = vld [vmem:[#allocation2 + $0x150] sm:$0xff]
    %v822 = vld [vmem:[#allocation2 + $0x158] sm:$0xff]
    %v823 = vld [vmem:[#allocation2 + $0x160] sm:$0xff]
    %v824 = vld [vmem:[#allocation2 + $0x168] sm:$0xff]
    %v825 = vld [vmem:[#allocation2 + $0x170] sm:$0xff]
    %v826 = vld [vmem:[#allocation2 + $0x178] sm:$0xff]
    %v827 = vld [vmem:[#allocation2 + $0x180] sm:$0xff]
    %v828 = vld [vmem:[#allocation2 + $0x188] sm:$0xff]
    %v829 = vld [vmem:[#allocation2 + $0x190] sm:$0xff]
    %v830 = vld [vmem:[#allocation2 + $0x198] sm:$0xff]
    %v831 = vld [vmem:[#allocation2 + $0x1a0] sm:$0xff]
    %v832 = vld [vmem:[#allocation2 + $0x1a8] sm:$0xff]
    %v833 = vld [vmem:[#allocation2 + $0x1b0] sm:$0xff]
    %v834 = vld [vmem:[#allocation2 + $0x1b8] sm:$0xff]
    %v835 = vld [vmem:[#allocation2 + $0x1c0] sm:$0xff]
    %v836 = vld [vmem:[#allocation2 + $0x1c8] sm:$0xff]
    %v837 = vld [vmem:[#allocation2 + $0x1d0] sm:$0xff]
    %v838 = vld [vmem:[#allocation2 + $0x1d8] sm:$0xff]
    %v839 = vld [vmem:[#allocation2 + $0x1e0] sm:$0xff]
    %v840 = vld [vmem:[#allocation2 + $0x1e8] sm:$0xff]
    %v841 = vld [vmem:[#allocation2 + $0x1f0] sm:$0xff]
    %v842 = vld [vmem:[#allocation2 + $0x1f8] sm:$0xff]
    %v843 = vld [vmem:[#allocation2 + $0x200] sm:$0xff]
    %v844 = vld [vmem:[#allocation2 + $0x208] sm:$0xff]
    %v845 = vld [vmem:[#allocation2 + $0x210] sm:$0xff]
    %v846 = vld [vmem:[#allocation2 + $0x218] sm:$0xff]
    %v847 = vld [vmem:[#allocation2 + $0x220] sm:$0xff]
    %v848 = vld [vmem:[#allocation2 + $0x228] sm:$0xff]
    %v849 = vld [vmem:[#allocation2 + $0x230] sm:$0xff]
    %v850 = vld [vmem:[#allocation2 + $0x238] sm:$0xff]
    %vm851 = vcmask 523264
    %v853 = vsel %vm851, %v703, 0
    %v856 = vsel %vm851, %v708, 0
    %v859 = vsel %vm851, %v713, 0
    %v862 = vsel %vm851, %v718, 0
    %v865 = vsel %vm851, %v723, 0
    %v868 = vsel %vm851, %v728, 0
    %v871 = vsel %vm851, %v733, 0
    %v874 = vsel %vm851, %v738, 0
    %v877 = vsel %vm851, %v743, 0
    %v880 = vsel %vm851, %v748, 0
    %v883 = vsel %vm851, %v753, 0
    %v886 = vsel %vm851, %v758, 0
    %v889 = vsel %vm851, %v763, 0
    %v892 = vsel %vm851, %v768, 0
    %v895 = vsel %vm851, %v773, 0
    %v898 = vsel %vm851, %v778, 0
    %900 = vmatpush.msra.mxu0 %v794
    %901 = vmatpush.msra.mxu0 %v793
    %902 = vmatpush.msra.mxu0 %v792
    %903 = vmatpush.msra.mxu0 %v791
    %904 = vmatpush.msra.mxu0 %v790
    %905 = vmatpush.msra.mxu0 %v789
    %906 = vmatpush.msra.mxu0 %v788
    %907 = vmatpush.msra.mxu0 %v787
    %908 = vmatpush.msra.mxu0 %v786
    %909 = vmatpush.msra.mxu0 %v785
    %910 = vmatpush.msra.mxu0 %v784
    %911 = vmatpush.msra.mxu0 %v783
    %912 = vmatpush.msra.mxu0 %v782
    %913 = vmatpush.msra.mxu0 %v781
    %914 = vmatpush.msra.mxu0 %v780
    %915 = vmatpush.msra.mxu0 %v779
    %916 = vmatmul.f32.gmra.mxu0 %v699
    %v917 = vpop.f32.mrf.mxu0
    %v918 = vadd.f32 0.0, %v917
    %919 = vmatmul.f32.gmra.mxu0 %v704
    %v920 = vpop.f32.mrf.mxu0
    %v921 = vadd.f32 0.0, %v920
    %922 = vmatmul.f32.gmra.mxu0 %v709
    %v923 = vpop.f32.mrf.mxu0
    %v924 = vadd.f32 0.0, %v923
    %925 = vmatmul.f32.gmra.mxu0 %v714
    %v926 = vpop.f32.mrf.mxu0
    %v927 = vadd.f32 0.0, %v926
    %928 = vmatmul.f32.gmra.mxu0 %v719
    %v929 = vpop.f32.mrf.mxu0
    %v930 = vadd.f32 0.0, %v929
    %931 = vmatmul.f32.gmra.mxu0 %v724
    %v932 = vpop.f32.mrf.mxu0
    %v933 = vadd.f32 0.0, %v932
    %934 = vmatmul.f32.gmra.mxu0 %v729
    %v935 = vpop.f32.mrf.mxu0
    %v936 = vadd.f32 0.0, %v935
    %937 = vmatmul.f32.gmra.mxu0 %v734
    %v938 = vpop.f32.mrf.mxu0
    %v939 = vadd.f32 0.0, %v938
    %940 = vmatmul.f32.gmra.mxu0 %v739
    %v941 = vpop.f32.mrf.mxu0
    %v942 = vadd.f32 0.0, %v941
    %943 = vmatmul.f32.gmra.mxu0 %v744
    %v944 = vpop.f32.mrf.mxu0
    %v945 = vadd.f32 0.0, %v944
    %946 = vmatmul.f32.gmra.mxu0 %v749
    %v947 = vpop.f32.mrf.mxu0
    %v948 = vadd.f32 0.0, %v947
    %949 = vmatmul.f32.gmra.mxu0 %v754
    %v950 = vpop.f32.mrf.mxu0
    %v951 = vadd.f32 0.0, %v950
    %952 = vmatmul.f32.gmra.mxu0 %v759
    %v953 = vpop.f32.mrf.mxu0
    %v954 = vadd.f32 0.0, %v953
    %955 = vmatmul.f32.gmra.mxu0 %v764
    %v956 = vpop.f32.mrf.mxu0
    %v957 = vadd.f32 0.0, %v956
    %958 = vmatmul.f32.gmra.mxu0 %v769
    %v959 = vpop.f32.mrf.mxu0
    %v960 = vadd.f32 0.0, %v959
    %961 = vmatmul.f32.gmra.mxu0 %v774
    %v962 = vpop.f32.mrf.mxu0
    %v963 = vadd.f32 0.0, %v962
    %964 = vdwg.mxu0
    %965 = vmatpush.msra.mxu0 %v810
    %966 = vmatpush.msra.mxu0 %v809
    %967 = vmatpush.msra.mxu0 %v808
    %968 = vmatpush.msra.mxu0 %v807
    %969 = vmatpush.msra.mxu0 %v806
    %970 = vmatpush.msra.mxu0 %v805
    %971 = vmatpush.msra.mxu0 %v804
    %972 = vmatpush.msra.mxu0 %v803
    %973 = vmatpush.msra.mxu0 %v802
    %974 = vmatpush.msra.mxu0 %v801
    %975 = vmatpush.msra.mxu0 %v800
    %976 = vmatpush.msra.mxu0 %v799
    %977 = vmatpush.msra.mxu0 %v798
    %978 = vmatpush.msra.mxu0 %v797
    %979 = vmatpush.msra.mxu0 %v796
    %980 = vmatpush.msra.mxu0 %v795
    %981 = vmatmul.f32.gmra.mxu0 %v700
    %v982 = vpop.f32.mrf.mxu0
    %v983 = vadd.f32 %v918, %v982
    %984 = vmatmul.f32.gmra.mxu0 %v705
    %v985 = vpop.f32.mrf.mxu0
    %v986 = vadd.f32 %v921, %v985
    %987 = vmatmul.f32.gmra.mxu0 %v710
    %v988 = vpop.f32.mrf.mxu0
    %v989 = vadd.f32 %v924, %v988
    %990 = vmatmul.f32.gmra.mxu0 %v715
    %v991 = vpop.f32.mrf.mxu0
    %v992 = vadd.f32 %v927, %v991
    %993 = vmatmul.f32.gmra.mxu0 %v720
    %v994 = vpop.f32.mrf.mxu0
    %v995 = vadd.f32 %v930, %v994
    %996 = vmatmul.f32.gmra.mxu0 %v725
    %v997 = vpop.f32.mrf.mxu0
    %v998 = vadd.f32 %v933, %v997
    %999 = vmatmul.f32.gmra.mxu0 %v730
    %v1000 = vpop.f32.mrf.mxu0
    %v1001 = vadd.f32 %v936, %v1000
    %1002 = vmatmul.f32.gmra.mxu0 %v735
    %v1003 = vpop.f32.mrf.mxu0
    %v1004 = vadd.f32 %v939, %v1003
    %1005 = vmatmul.f32.gmra.mxu0 %v740
    %v1006 = vpop.f32.mrf.mxu0
    %v1007 = vadd.f32 %v942, %v1006
    %1008 = vmatmul.f32.gmra.mxu0 %v745
    %v1009 = vpop.f32.mrf.mxu0
    %v1010 = vadd.f32 %v945, %v1009
    %1011 = vmatmul.f32.gmra.mxu0 %v750
    %v1012 = vpop.f32.mrf.mxu0
    %v1013 = vadd.f32 %v948, %v1012
    %1014 = vmatmul.f32.gmra.mxu0 %v755
    %v1015 = vpop.f32.mrf.mxu0
    %v1016 = vadd.f32 %v951, %v1015
    %1017 = vmatmul.f32.gmra.mxu0 %v760
    %v1018 = vpop.f32.mrf.mxu0
    %v1019 = vadd.f32 %v954, %v1018
    %1020 = vmatmul.f32.gmra.mxu0 %v765
    %v1021 = vpop.f32.mrf.mxu0
    %v1022 = vadd.f32 %v957, %v1021
    %1023 = vmatmul.f32.gmra.mxu0 %v770
    %v1024 = vpop.f32.mrf.mxu0
    %v1025 = vadd.f32 %v960, %v1024
    %1026 = vmatmul.f32.gmra.mxu0 %v775
    %v1027 = vpop.f32.mrf.mxu0
    %v1028 = vadd.f32 %v963, %v1027
    %1029 = vdwg.mxu0
    %1030 = vmatpush.msra.mxu0 %v826
    %1031 = vmatpush.msra.mxu0 %v825
    %1032 = vmatpush.msra.mxu0 %v824
    %1033 = vmatpush.msra.mxu0 %v823
    %1034 = vmatpush.msra.mxu0 %v822
    %1035 = vmatpush.msra.mxu0 %v821
    %1036 = vmatpush.msra.mxu0 %v820
    %1037 = vmatpush.msra.mxu0 %v819
    %1038 = vmatpush.msra.mxu0 %v818
    %1039 = vmatpush.msra.mxu0 %v817
    %1040 = vmatpush.msra.mxu0 %v816
    %1041 = vmatpush.msra.mxu0 %v815
    %1042 = vmatpush.msra.mxu0 %v814
    %1043 = vmatpush.msra.mxu0 %v813
    %1044 = vmatpush.msra.mxu0 %v812
    %1045 = vmatpush.msra.mxu0 %v811
    %1046 = vmatmul.f32.gmra.mxu0 %v701
    %v1047 = vpop.f32.mrf.mxu0
    %v1048 = vadd.f32 %v983, %v1047
    %1049 = vmatmul.f32.gmra.mxu0 %v706
    %v1050 = vpop.f32.mrf.mxu0
    %v1051 = vadd.f32 %v986, %v1050
    %1052 = vmatmul.f32.gmra.mxu0 %v711
    %v1053 = vpop.f32.mrf.mxu0
    %v1054 = vadd.f32 %v989, %v1053
    %1055 = vmatmul.f32.gmra.mxu0 %v716
    %v1056 = vpop.f32.mrf.mxu0
    %v1057 = vadd.f32 %v992, %v1056
    %1058 = vmatmul.f32.gmra.mxu0 %v721
    %v1059 = vpop.f32.mrf.mxu0
    %v1060 = vadd.f32 %v995, %v1059
    %1061 = vmatmul.f32.gmra.mxu0 %v726
    %v1062 = vpop.f32.mrf.mxu0
    %v1063 = vadd.f32 %v998, %v1062
    %1064 = vmatmul.f32.gmra.mxu0 %v731
    %v1065 = vpop.f32.mrf.mxu0
    %v1066 = vadd.f32 %v1001, %v1065
    %1067 = vmatmul.f32.gmra.mxu0 %v736
    %v1068 = vpop.f32.mrf.mxu0
    %v1069 = vadd.f32 %v1004, %v1068
    %1070 = vmatmul.f32.gmra.mxu0 %v741
    %v1071 = vpop.f32.mrf.mxu0
    %v1072 = vadd.f32 %v1007, %v1071
    %1073 = vmatmul.f32.gmra.mxu0 %v746
    %v1074 = vpop.f32.mrf.mxu0
    %v1075 = vadd.f32 %v1010, %v1074
    %1076 = vmatmul.f32.gmra.mxu0 %v751
    %v1077 = vpop.f32.mrf.mxu0
    %v1078 = vadd.f32 %v1013, %v1077
    %1079 = vmatmul.f32.gmra.mxu0 %v756
    %v1080 = vpop.f32.mrf.mxu0
    %v1081 = vadd.f32 %v1016, %v1080
    %1082 = vmatmul.f32.gmra.mxu0 %v761
    %v1083 = vpop.f32.mrf.mxu0
    %v1084 = vadd.f32 %v1019, %v1083
    %1085 = vmatmul.f32.gmra.mxu0 %v766
    %v1086 = vpop.f32.mrf.mxu0
    %v1087 = vadd.f32 %v1022, %v1086
    %1088 = vmatmul.f32.gmra.mxu0 %v771
    %v1089 = vpop.f32.mrf.mxu0
    %v1090 = vadd.f32 %v1025, %v1089
    %1091 = vmatmul.f32.gmra.mxu0 %v776
    %v1092 = vpop.f32.mrf.mxu0
    %v1093 = vadd.f32 %v1028, %v1092
    %1094 = vdwg.mxu0
    %1095 = vmatpush.msra.mxu0 %v842
    %1096 = vmatpush.msra.mxu0 %v841
    %1097 = vmatpush.msra.mxu0 %v840
    %1098 = vmatpush.msra.mxu0 %v839
    %1099 = vmatpush.msra.mxu0 %v838
    %1100 = vmatpush.msra.mxu0 %v837
    %1101 = vmatpush.msra.mxu0 %v836
    %1102 = vmatpush.msra.mxu0 %v835
    %1103 = vmatpush.msra.mxu0 %v834
    %1104 = vmatpush.msra.mxu0 %v833
    %1105 = vmatpush.msra.mxu0 %v832
    %1106 = vmatpush.msra.mxu0 %v831
    %1107 = vmatpush.msra.mxu0 %v830
    %1108 = vmatpush.msra.mxu0 %v829
    %1109 = vmatpush.msra.mxu0 %v828
    %1110 = vmatpush.msra.mxu0 %v827
    %1111 = vmatmul.f32.gmra.mxu0 %v702
    %v1112 = vpop.f32.mrf.mxu0
    %v1113 = vadd.f32 %v1048, %v1112
    %1114 = vmatmul.f32.gmra.mxu0 %v707
    %v1115 = vpop.f32.mrf.mxu0
    %v1116 = vadd.f32 %v1051, %v1115
    %1117 = vmatmul.f32.gmra.mxu0 %v712
    %v1118 = vpop.f32.mrf.mxu0
    %v1119 = vadd.f32 %v1054, %v1118
    %1120 = vmatmul.f32.gmra.mxu0 %v717
    %v1121 = vpop.f32.mrf.mxu0
    %v1122 = vadd.f32 %v1057, %v1121
    %1123 = vmatmul.f32.gmra.mxu0 %v722
    %v1124 = vpop.f32.mrf.mxu0
    %v1125 = vadd.f32 %v1060, %v1124
    %1126 = vmatmul.f32.gmra.mxu0 %v727
    %v1127 = vpop.f32.mrf.mxu0
    %v1128 = vadd.f32 %v1063, %v1127
    %1129 = vmatmul.f32.gmra.mxu0 %v732
    %v1130 = vpop.f32.mrf.mxu0
    %v1131 = vadd.f32 %v1066, %v1130
    %1132 = vmatmul.f32.gmra.mxu0 %v737
    %v1133 = vpop.f32.mrf.mxu0
    %v1134 = vadd.f32 %v1069, %v1133
    %1135 = vmatmul.f32.gmra.mxu0 %v742
    %v1136 = vpop.f32.mrf.mxu0
    %v1137 = vadd.f32 %v1072, %v1136
    %1138 = vmatmul.f32.gmra.mxu0 %v747
    %v1139 = vpop.f32.mrf.mxu0
    %v1140 = vadd.f32 %v1075, %v1139
    %1141 = vmatmul.f32.gmra.mxu0 %v752
    %v1142 = vpop.f32.mrf.mxu0
    %v1143 = vadd.f32 %v1078, %v1142
    %1144 = vmatmul.f32.gmra.mxu0 %v757
    %v1145 = vpop.f32.mrf.mxu0
    %v1146 = vadd.f32 %v1081, %v1145
    %1147 = vmatmul.f32.gmra.mxu0 %v762
    %v1148 = vpop.f32.mrf.mxu0
    %v1149 = vadd.f32 %v1084, %v1148
    %1150 = vmatmul.f32.gmra.mxu0 %v767
    %v1151 = vpop.f32.mrf.mxu0
    %v1152 = vadd.f32 %v1087, %v1151
    %1153 = vmatmul.f32.gmra.mxu0 %v772
    %v1154 = vpop.f32.mrf.mxu0
    %v1155 = vadd.f32 %v1090, %v1154
    %1156 = vmatmul.f32.gmra.mxu0 %v777
    %v1157 = vpop.f32.mrf.mxu0
    %v1158 = vadd.f32 %v1093, %v1157
    %1159 = vdwg.mxu0
    %1160 = vmatpush.msra.mxu0 0.0
    %1161 = vmatpush.msra.mxu0 0.0
    %1162 = vmatpush.msra.mxu0 0.0
    %1163 = vmatpush.msra.mxu0 0.0
    %1164 = vmatpush.msra.mxu0 0.0
    %1165 = vmatpush.msra.mxu0 0.0
    %1166 = vmatpush.msra.mxu0 0.0
    %1167 = vmatpush.msra.mxu0 0.0
    %1168 = vmatpush.msra.mxu0 %v850
    %1169 = vmatpush.msra.mxu0 %v849
    %1170 = vmatpush.msra.mxu0 %v848
    %1171 = vmatpush.msra.mxu0 %v847
    %1172 = vmatpush.msra.mxu0 %v846
    %1173 = vmatpush.msra.mxu0 %v845
    %1174 = vmatpush.msra.mxu0 %v844
    %1175 = vmatpush.msra.mxu0 %v843
    %1176 = vmatmul.f32.gmra.mxu0 %v853
    %v1177 = vpop.f32.mrf.mxu0
    %v1178 = vadd.f32 %v1113, %v1177
    %1179 = vmatmul.f32.gmra.mxu0 %v856
    %v1180 = vpop.f32.mrf.mxu0
    %v1181 = vadd.f32 %v1116, %v1180
    %1182 = vmatmul.f32.gmra.mxu0 %v859
    %v1183 = vpop.f32.mrf.mxu0
    %v1184 = vadd.f32 %v1119, %v1183
    %1185 = vmatmul.f32.gmra.mxu0 %v862
    %v1186 = vpop.f32.mrf.mxu0
    %v1187 = vadd.f32 %v1122, %v1186
    %1188 = vmatmul.f32.gmra.mxu0 %v865
    %v1189 = vpop.f32.mrf.mxu0
    %v1190 = vadd.f32 %v1125, %v1189
    %1191 = vmatmul.f32.gmra.mxu0 %v868
    %v1192 = vpop.f32.mrf.mxu0
    %v1193 = vadd.f32 %v1128, %v1192
    %1194 = vmatmul.f32.gmra.mxu0 %v871
    %v1195 = vpop.f32.mrf.mxu0
    %v1196 = vadd.f32 %v1131, %v1195
    %1197 = vmatmul.f32.gmra.mxu0 %v874
    %v1198 = vpop.f32.mrf.mxu0
    %v1199 = vadd.f32 %v1134, %v1198
    %1200 = vmatmul.f32.gmra.mxu0 %v877
    %v1201 = vpop.f32.mrf.mxu0
    %v1202 = vadd.f32 %v1137, %v1201
    %1203 = vmatmul.f32.gmra.mxu0 %v880
    %v1204 = vpop.f32.mrf.mxu0
    %v1205 = vadd.f32 %v1140, %v1204
    %1206 = vmatmul.f32.gmra.mxu0 %v883
    %v1207 = vpop.f32.mrf.mxu0
    %v1208 = vadd.f32 %v1143, %v1207
    %1209 = vmatmul.f32.gmra.mxu0 %v886
    %v1210 = vpop.f32.mrf.mxu0
    %v1211 = vadd.f32 %v1146, %v1210
    %1212 = vmatmul.f32.gmra.mxu0 %v889
    %v1213 = vpop.f32.mrf.mxu0
    %v1214 = vadd.f32 %v1149, %v1213
    %1215 = vmatmul.f32.gmra.mxu0 %v892
    %v1216 = vpop.f32.mrf.mxu0
    %v1217 = vadd.f32 %v1152, %v1216
    %1218 = vmatmul.f32.gmra.mxu0 %v895
    %v1219 = vpop.f32.mrf.mxu0
    %v1220 = vadd.f32 %v1155, %v1219
    %1221 = vmatmul.f32.gmra.mxu0 %v898
    %v1222 = vpop.f32.mrf.mxu0
    %v1223 = vadd.f32 %v1158, %v1222
    %1224 = vdwg.mxu0
    %1225 = vst.msk [vmem:[#allocation3] sm:$0xff] %vm20, %v1178
    %1226 = vst.msk [vmem:[#allocation3 + $0x8] sm:$0xff] %vm20, %v1181
    %1227 = vst.msk [vmem:[#allocation3 + $0x10] sm:$0xff] %vm20, %v1184
    %1228 = vst.msk [vmem:[#allocation3 + $0x18] sm:$0xff] %vm20, %v1187
    %1229 = vst.msk [vmem:[#allocation3 + $0x20] sm:$0xff] %vm20, %v1190
    %1230 = vst.msk [vmem:[#allocation3 + $0x28] sm:$0xff] %vm20, %v1193
    %1231 = vst.msk [vmem:[#allocation3 + $0x30] sm:$0xff] %vm20, %v1196
    %1232 = vst.msk [vmem:[#allocation3 + $0x38] sm:$0xff] %vm20, %v1199
    %1233 = vst.msk [vmem:[#allocation3 + $0x40] sm:$0xff] %vm20, %v1202
    %1234 = vst.msk [vmem:[#allocation3 + $0x48] sm:$0xff] %vm20, %v1205
    %1235 = vst.msk [vmem:[#allocation3 + $0x50] sm:$0xff] %vm20, %v1208
    %1236 = vst.msk [vmem:[#allocation3 + $0x58] sm:$0xff] %vm20, %v1211
    %1237 = vst.msk [vmem:[#allocation3 + $0x60] sm:$0xff] %vm20, %v1214
    %1238 = vst.msk [vmem:[#allocation3 + $0x68] sm:$0xff] %vm20, %v1217
    %1239 = vst.msk [vmem:[#allocation3 + $0x70] sm:$0xff] %vm20, %v1220
    %1240 = vst.msk [vmem:[#allocation3 + $0x78] sm:$0xff] %vm20, %v1223
    %v1241 = vld [vmem:[%s361] sm:$0xff]
    %v1242 = vld [vmem:[%s361 + $0x8] sm:$0xff]
    %v1243 = vld [vmem:[%s361 + $0x10] sm:$0xff]
    %v1244 = vld [vmem:[%s361 + $0x18] sm:$0xff]
    %v1245 = vld [vmem:[%s361 + $0x20] sm:$0xff]
    %v1246 = vld [vmem:[%s361 + $0x28] sm:$0xff]
    %v1247 = vld [vmem:[%s361 + $0x30] sm:$0xff]
    %v1248 = vld [vmem:[%s361 + $0x38] sm:$0xff]
    %v1249 = vld [vmem:[%s361 + $0x40] sm:$0xff]
    %v1250 = vld [vmem:[%s361 + $0x48] sm:$0xff]
    %v1251 = vld [vmem:[%s361 + $0x50] sm:$0xff]
    %v1252 = vld [vmem:[%s361 + $0x58] sm:$0xff]
    %v1253 = vld [vmem:[%s361 + $0x60] sm:$0xff]
    %v1254 = vld [vmem:[%s361 + $0x68] sm:$0xff]
    %v1255 = vld [vmem:[%s361 + $0x70] sm:$0xff]
    %v1256 = vld [vmem:[%s361 + $0x78] sm:$0xff]
    %v1257 = vld [vmem:[%s361 + $0x80] sm:$0xff]
    %v1258 = vld [vmem:[%s361 + $0x88] sm:$0xff]
    %v1259 = vld [vmem:[%s361 + $0x90] sm:$0xff]
    %v1260 = vld [vmem:[%s361 + $0x98] sm:$0xff]
    %v1261 = vld [vmem:[%s361 + $0xa0] sm:$0xff]
    %v1262 = vld [vmem:[%s361 + $0xa8] sm:$0xff]
    %v1263 = vld [vmem:[%s361 + $0xb0] sm:$0xff]
    %v1264 = vld [vmem:[%s361 + $0xb8] sm:$0xff]
    %v1265 = vld [vmem:[%s361 + $0xc0] sm:$0xff]
    %v1266 = vld [vmem:[%s361 + $0xc8] sm:$0xff]
    %v1267 = vld [vmem:[%s361 + $0xd0] sm:$0xff]
    %v1268 = vld [vmem:[%s361 + $0xd8] sm:$0xff]
    %v1269 = vld [vmem:[%s361 + $0xe0] sm:$0xff]
    %v1270 = vld [vmem:[%s361 + $0xe8] sm:$0xff]
    %v1271 = vld [vmem:[%s361 + $0xf0] sm:$0xff]
    %v1272 = vld [vmem:[%s361 + $0xf8] sm:$0xff]
    %v1273 = vld [vmem:[%s361 + $0x100] sm:$0xff]
    %v1274 = vld [vmem:[%s361 + $0x108] sm:$0xff]
    %v1275 = vld [vmem:[%s361 + $0x110] sm:$0xff]
    %v1276 = vld [vmem:[%s361 + $0x118] sm:$0xff]
    %v1277 = vld [vmem:[%s361 + $0x120] sm:$0xff]
    %v1278 = vld [vmem:[%s361 + $0x128] sm:$0xff]
    %v1279 = vld [vmem:[%s361 + $0x130] sm:$0xff]
    %v1280 = vld [vmem:[%s361 + $0x138] sm:$0xff]
    %v1281 = vld [vmem:[%s361 + $0x140] sm:$0xff]
    %v1282 = vld [vmem:[%s361 + $0x148] sm:$0xff]
    %v1283 = vld [vmem:[%s361 + $0x150] sm:$0xff]
    %v1284 = vld [vmem:[%s361 + $0x158] sm:$0xff]
    %v1285 = vld [vmem:[%s361 + $0x160] sm:$0xff]
    %v1286 = vld [vmem:[%s361 + $0x168] sm:$0xff]
    %v1287 = vld [vmem:[%s361 + $0x170] sm:$0xff]
    %v1288 = vld [vmem:[%s361 + $0x178] sm:$0xff]
    %v1289 = vld [vmem:[%s361 + $0x180] sm:$0xff]
    %v1290 = vld [vmem:[%s361 + $0x188] sm:$0xff]
    %v1291 = vld [vmem:[%s361 + $0x190] sm:$0xff]
    %v1292 = vld [vmem:[%s361 + $0x198] sm:$0xff]
    %v1293 = vld [vmem:[%s361 + $0x1a0] sm:$0xff]
    %v1294 = vld [vmem:[%s361 + $0x1a8] sm:$0xff]
    %v1295 = vld [vmem:[%s361 + $0x1b0] sm:$0xff]
    %v1296 = vld [vmem:[%s361 + $0x1b8] sm:$0xff]
    %v1297 = vld [vmem:[%s361 + $0x1c0] sm:$0xff]
    %v1298 = vld [vmem:[%s361 + $0x1c8] sm:$0xff]
    %v1299 = vld [vmem:[%s361 + $0x1d0] sm:$0xff]
    %v1300 = vld [vmem:[%s361 + $0x1d8] sm:$0xff]
    %v1301 = vld [vmem:[%s361 + $0x1e0] sm:$0xff]
    %v1302 = vld [vmem:[%s361 + $0x1e8] sm:$0xff]
    %v1303 = vld [vmem:[%s361 + $0x1f0] sm:$0xff]
    %v1304 = vld [vmem:[%s361 + $0x1f8] sm:$0xff]
    %v1305 = vld [vmem:[%s361 + $0x200] sm:$0xff]
    %v1306 = vld [vmem:[%s361 + $0x208] sm:$0xff]
    %v1307 = vld [vmem:[%s361 + $0x210] sm:$0xff]
    %v1308 = vld [vmem:[%s361 + $0x218] sm:$0xff]
    %v1309 = vld [vmem:[%s361 + $0x220] sm:$0xff]
    %v1310 = vld [vmem:[%s361 + $0x228] sm:$0xff]
    %v1311 = vld [vmem:[%s361 + $0x230] sm:$0xff]
    %v1312 = vld [vmem:[%s361 + $0x238] sm:$0xff]
    %1313 = vmatpush.msra.mxu0 %v1256
    %1314 = vmatpush.msra.mxu0 %v1255
    %1315 = vmatpush.msra.mxu0 %v1254
    %1316 = vmatpush.msra.mxu0 %v1253
    %1317 = vmatpush.msra.mxu0 %v1252
    %1318 = vmatpush.msra.mxu0 %v1251
    %1319 = vmatpush.msra.mxu0 %v1250
    %1320 = vmatpush.msra.mxu0 %v1249
    %1321 = vmatpush.msra.mxu0 %v1248
    %1322 = vmatpush.msra.mxu0 %v1247
    %1323 = vmatpush.msra.mxu0 %v1246
    %1324 = vmatpush.msra.mxu0 %v1245
    %1325 = vmatpush.msra.mxu0 %v1244
    %1326 = vmatpush.msra.mxu0 %v1243
    %1327 = vmatpush.msra.mxu0 %v1242
    %1328 = vmatpush.msra.mxu0 %v1241
    %1329 = vmatmul.f32.gmra.mxu0 %v699
    %v1330 = vpop.f32.mrf.mxu0
    %v1331 = vadd.f32 0.0, %v1330
    %1332 = vmatmul.f32.gmra.mxu0 %v704
    %v1333 = vpop.f32.mrf.mxu0
    %v1334 = vadd.f32 0.0, %v1333
    %1335 = vmatmul.f32.gmra.mxu0 %v709
    %v1336 = vpop.f32.mrf.mxu0
    %v1337 = vadd.f32 0.0, %v1336
    %1338 = vmatmul.f32.gmra.mxu0 %v714
    %v1339 = vpop.f32.mrf.mxu0
    %v1340 = vadd.f32 0.0, %v1339
    %1341 = vmatmul.f32.gmra.mxu0 %v719
    %v1342 = vpop.f32.mrf.mxu0
    %v1343 = vadd.f32 0.0, %v1342
    %1344 = vmatmul.f32.gmra.mxu0 %v724
    %v1345 = vpop.f32.mrf.mxu0
    %v1346 = vadd.f32 0.0, %v1345
    %1347 = vmatmul.f32.gmra.mxu0 %v729
    %v1348 = vpop.f32.mrf.mxu0
    %v1349 = vadd.f32 0.0, %v1348
    %1350 = vmatmul.f32.gmra.mxu0 %v734
    %v1351 = vpop.f32.mrf.mxu0
    %v1352 = vadd.f32 0.0, %v1351
    %1353 = vmatmul.f32.gmra.mxu0 %v739
    %v1354 = vpop.f32.mrf.mxu0
    %v1355 = vadd.f32 0.0, %v1354
    %1356 = vmatmul.f32.gmra.mxu0 %v744
    %v1357 = vpop.f32.mrf.mxu0
    %v1358 = vadd.f32 0.0, %v1357
    %1359 = vmatmul.f32.gmra.mxu0 %v749
    %v1360 = vpop.f32.mrf.mxu0
    %v1361 = vadd.f32 0.0, %v1360
    %1362 = vmatmul.f32.gmra.mxu0 %v754
    %v1363 = vpop.f32.mrf.mxu0
    %v1364 = vadd.f32 0.0, %v1363
    %1365 = vmatmul.f32.gmra.mxu0 %v759
    %v1366 = vpop.f32.mrf.mxu0
    %v1367 = vadd.f32 0.0, %v1366
    %1368 = vmatmul.f32.gmra.mxu0 %v764
    %v1369 = vpop.f32.mrf.mxu0
    %v1370 = vadd.f32 0.0, %v1369
    %1371 = vmatmul.f32.gmra.mxu0 %v769
    %v1372 = vpop.f32.mrf.mxu0
    %v1373 = vadd.f32 0.0, %v1372
    %1374 = vmatmul.f32.gmra.mxu0 %v774
    %v1375 = vpop.f32.mrf.mxu0
    %v1376 = vadd.f32 0.0, %v1375
    %1377 = vdwg.mxu0
    %1378 = vmatpush.msra.mxu0 %v1272
    %1379 = vmatpush.msra.mxu0 %v1271
    %1380 = vmatpush.msra.mxu0 %v1270
    %1381 = vmatpush.msra.mxu0 %v1269
    %1382 = vmatpush.msra.mxu0 %v1268
    %1383 = vmatpush.msra.mxu0 %v1267
    %1384 = vmatpush.msra.mxu0 %v1266
    %1385 = vmatpush.msra.mxu0 %v1265
    %1386 = vmatpush.msra.mxu0 %v1264
    %1387 = vmatpush.msra.mxu0 %v1263
    %1388 = vmatpush.msra.mxu0 %v1262
    %1389 = vmatpush.msra.mxu0 %v1261
    %1390 = vmatpush.msra.mxu0 %v1260
    %1391 = vmatpush.msra.mxu0 %v1259
    %1392 = vmatpush.msra.mxu0 %v1258
    %1393 = vmatpush.msra.mxu0 %v1257
    %1394 = vmatmul.f32.gmra.mxu0 %v700
    %v1395 = vpop.f32.mrf.mxu0
    %v1396 = vadd.f32 %v1331, %v1395
    %1397 = vmatmul.f32.gmra.mxu0 %v705
    %v1398 = vpop.f32.mrf.mxu0
    %v1399 = vadd.f32 %v1334, %v1398
    %1400 = vmatmul.f32.gmra.mxu0 %v710
    %v1401 = vpop.f32.mrf.mxu0
    %v1402 = vadd.f32 %v1337, %v1401
    %1403 = vmatmul.f32.gmra.mxu0 %v715
    %v1404 = vpop.f32.mrf.mxu0
    %v1405 = vadd.f32 %v1340, %v1404
    %1406 = vmatmul.f32.gmra.mxu0 %v720
    %v1407 = vpop.f32.mrf.mxu0
    %v1408 = vadd.f32 %v1343, %v1407
    %1409 = vmatmul.f32.gmra.mxu0 %v725
    %v1410 = vpop.f32.mrf.mxu0
    %v1411 = vadd.f32 %v1346, %v1410
    %1412 = vmatmul.f32.gmra.mxu0 %v730
    %v1413 = vpop.f32.mrf.mxu0
    %v1414 = vadd.f32 %v1349, %v1413
    %1415 = vmatmul.f32.gmra.mxu0 %v735
    %v1416 = vpop.f32.mrf.mxu0
    %v1417 = vadd.f32 %v1352, %v1416
    %1418 = vmatmul.f32.gmra.mxu0 %v740
    %v1419 = vpop.f32.mrf.mxu0
    %v1420 = vadd.f32 %v1355, %v1419
    %1421 = vmatmul.f32.gmra.mxu0 %v745
    %v1422 = vpop.f32.mrf.mxu0
    %v1423 = vadd.f32 %v1358, %v1422
    %1424 = vmatmul.f32.gmra.mxu0 %v750
    %v1425 = vpop.f32.mrf.mxu0
    %v1426 = vadd.f32 %v1361, %v1425
    %1427 = vmatmul.f32.gmra.mxu0 %v755
    %v1428 = vpop.f32.mrf.mxu0
    %v1429 = vadd.f32 %v1364, %v1428
    %1430 = vmatmul.f32.gmra.mxu0 %v760
    %v1431 = vpop.f32.mrf.mxu0
    %v1432 = vadd.f32 %v1367, %v1431
    %1433 = vmatmul.f32.gmra.mxu0 %v765
    %v1434 = vpop.f32.mrf.mxu0
    %v1435 = vadd.f32 %v1370, %v1434
    %1436 = vmatmul.f32.gmra.mxu0 %v770
    %v1437 = vpop.f32.mrf.mxu0
    %v1438 = vadd.f32 %v1373, %v1437
    %1439 = vmatmul.f32.gmra.mxu0 %v775
    %v1440 = vpop.f32.mrf.mxu0
    %v1441 = vadd.f32 %v1376, %v1440
    %1442 = vdwg.mxu0
    %1443 = vmatpush.msra.mxu0 %v1288
    %1444 = vmatpush.msra.mxu0 %v1287
    %1445 = vmatpush.msra.mxu0 %v1286
    %1446 = vmatpush.msra.mxu0 %v1285
    %1447 = vmatpush.msra.mxu0 %v1284
    %1448 = vmatpush.msra.mxu0 %v1283
    %1449 = vmatpush.msra.mxu0 %v1282
    %1450 = vmatpush.msra.mxu0 %v1281
    %1451 = vmatpush.msra.mxu0 %v1280
    %1452 = vmatpush.msra.mxu0 %v1279
    %1453 = vmatpush.msra.mxu0 %v1278
    %1454 = vmatpush.msra.mxu0 %v1277
    %1455 = vmatpush.msra.mxu0 %v1276
    %1456 = vmatpush.msra.mxu0 %v1275
    %1457 = vmatpush.msra.mxu0 %v1274
    %1458 = vmatpush.msra.mxu0 %v1273
    %1459 = vmatmul.f32.gmra.mxu0 %v701
    %v1460 = vpop.f32.mrf.mxu0
    %v1461 = vadd.f32 %v1396, %v1460
    %1462 = vmatmul.f32.gmra.mxu0 %v706
    %v1463 = vpop.f32.mrf.mxu0
    %v1464 = vadd.f32 %v1399, %v1463
    %1465 = vmatmul.f32.gmra.mxu0 %v711
    %v1466 = vpop.f32.mrf.mxu0
    %v1467 = vadd.f32 %v1402, %v1466
    %1468 = vmatmul.f32.gmra.mxu0 %v716
    %v1469 = vpop.f32.mrf.mxu0
    %v1470 = vadd.f32 %v1405, %v1469
    %1471 = vmatmul.f32.gmra.mxu0 %v721
    %v1472 = vpop.f32.mrf.mxu0
    %v1473 = vadd.f32 %v1408, %v1472
    %1474 = vmatmul.f32.gmra.mxu0 %v726
    %v1475 = vpop.f32.mrf.mxu0
    %v1476 = vadd.f32 %v1411, %v1475
    %1477 = vmatmul.f32.gmra.mxu0 %v731
    %v1478 = vpop.f32.mrf.mxu0
    %v1479 = vadd.f32 %v1414, %v1478
    %1480 = vmatmul.f32.gmra.mxu0 %v736
    %v1481 = vpop.f32.mrf.mxu0
    %v1482 = vadd.f32 %v1417, %v1481
    %1483 = vmatmul.f32.gmra.mxu0 %v741
    %v1484 = vpop.f32.mrf.mxu0
    %v1485 = vadd.f32 %v1420, %v1484
    %1486 = vmatmul.f32.gmra.mxu0 %v746
    %v1487 = vpop.f32.mrf.mxu0
    %v1488 = vadd.f32 %v1423, %v1487
    %1489 = vmatmul.f32.gmra.mxu0 %v751
    %v1490 = vpop.f32.mrf.mxu0
    %v1491 = vadd.f32 %v1426, %v1490
    %1492 = vmatmul.f32.gmra.mxu0 %v756
    %v1493 = vpop.f32.mrf.mxu0
    %v1494 = vadd.f32 %v1429, %v1493
    %1495 = vmatmul.f32.gmra.mxu0 %v761
    %v1496 = vpop.f32.mrf.mxu0
    %v1497 = vadd.f32 %v1432, %v1496
    %1498 = vmatmul.f32.gmra.mxu0 %v766
    %v1499 = vpop.f32.mrf.mxu0
    %v1500 = vadd.f32 %v1435, %v1499
    %1501 = vmatmul.f32.gmra.mxu0 %v771
    %v1502 = vpop.f32.mrf.mxu0
    %v1503 = vadd.f32 %v1438, %v1502
    %1504 = vmatmul.f32.gmra.mxu0 %v776
    %v1505 = vpop.f32.mrf.mxu0
    %v1506 = vadd.f32 %v1441, %v1505
    %1507 = vdwg.mxu0
    %1508 = vmatpush.msra.mxu0 %v1304
    %1509 = vmatpush.msra.mxu0 %v1303
    %1510 = vmatpush.msra.mxu0 %v1302
    %1511 = vmatpush.msra.mxu0 %v1301
    %1512 = vmatpush.msra.mxu0 %v1300
    %1513 = vmatpush.msra.mxu0 %v1299
    %1514 = vmatpush.msra.mxu0 %v1298
    %1515 = vmatpush.msra.mxu0 %v1297
    %1516 = vmatpush.msra.mxu0 %v1296
    %1517 = vmatpush.msra.mxu0 %v1295
    %1518 = vmatpush.msra.mxu0 %v1294
    %1519 = vmatpush.msra.mxu0 %v1293
    %1520 = vmatpush.msra.mxu0 %v1292
    %1521 = vmatpush.msra.mxu0 %v1291
    %1522 = vmatpush.msra.mxu0 %v1290
    %1523 = vmatpush.msra.mxu0 %v1289
    %1524 = vmatmul.f32.gmra.mxu0 %v702
    %v1525 = vpop.f32.mrf.mxu0
    %v1526 = vadd.f32 %v1461, %v1525
    %1527 = vmatmul.f32.gmra.mxu0 %v707
    %v1528 = vpop.f32.mrf.mxu0
    %v1529 = vadd.f32 %v1464, %v1528
    %1530 = vmatmul.f32.gmra.mxu0 %v712
    %v1531 = vpop.f32.mrf.mxu0
    %v1532 = vadd.f32 %v1467, %v1531
    %1533 = vmatmul.f32.gmra.mxu0 %v717
    %v1534 = vpop.f32.mrf.mxu0
    %v1535 = vadd.f32 %v1470, %v1534
    %1536 = vmatmul.f32.gmra.mxu0 %v722
    %v1537 = vpop.f32.mrf.mxu0
    %v1538 = vadd.f32 %v1473, %v1537
    %1539 = vmatmul.f32.gmra.mxu0 %v727
    %v1540 = vpop.f32.mrf.mxu0
    %v1541 = vadd.f32 %v1476, %v1540
    %1542 = vmatmul.f32.gmra.mxu0 %v732
    %v1543 = vpop.f32.mrf.mxu0
    %v1544 = vadd.f32 %v1479, %v1543
    %1545 = vmatmul.f32.gmra.mxu0 %v737
    %v1546 = vpop.f32.mrf.mxu0
    %v1547 = vadd.f32 %v1482, %v1546
    %1548 = vmatmul.f32.gmra.mxu0 %v742
    %v1549 = vpop.f32.mrf.mxu0
    %v1550 = vadd.f32 %v1485, %v1549
    %1551 = vmatmul.f32.gmra.mxu0 %v747
    %v1552 = vpop.f32.mrf.mxu0
    %v1553 = vadd.f32 %v1488, %v1552
    %1554 = vmatmul.f32.gmra.mxu0 %v752
    %v1555 = vpop.f32.mrf.mxu0
    %v1556 = vadd.f32 %v1491, %v1555
    %1557 = vmatmul.f32.gmra.mxu0 %v757
    %v1558 = vpop.f32.mrf.mxu0
    %v1559 = vadd.f32 %v1494, %v1558
    %1560 = vmatmul.f32.gmra.mxu0 %v762
    %v1561 = vpop.f32.mrf.mxu0
    %v1562 = vadd.f32 %v1497, %v1561
    %1563 = vmatmul.f32.gmra.mxu0 %v767
    %v1564 = vpop.f32.mrf.mxu0
    %v1565 = vadd.f32 %v1500, %v1564
    %1566 = vmatmul.f32.gmra.mxu0 %v772
    %v1567 = vpop.f32.mrf.mxu0
    %v1568 = vadd.f32 %v1503, %v1567
    %1569 = vmatmul.f32.gmra.mxu0 %v777
    %v1570 = vpop.f32.mrf.mxu0
    %v1571 = vadd.f32 %v1506, %v1570
    %1572 = vdwg.mxu0
    %1573 = vmatpush.msra.mxu0 0.0
    %1574 = vmatpush.msra.mxu0 0.0
    %1575 = vmatpush.msra.mxu0 0.0
    %1576 = vmatpush.msra.mxu0 0.0
    %1577 = vmatpush.msra.mxu0 0.0
    %1578 = vmatpush.msra.mxu0 0.0
    %1579 = vmatpush.msra.mxu0 0.0
    %1580 = vmatpush.msra.mxu0 0.0
    %1581 = vmatpush.msra.mxu0 %v1312
    %1582 = vmatpush.msra.mxu0 %v1311
    %1583 = vmatpush.msra.mxu0 %v1310
    %1584 = vmatpush.msra.mxu0 %v1309
    %1585 = vmatpush.msra.mxu0 %v1308
    %1586 = vmatpush.msra.mxu0 %v1307
    %1587 = vmatpush.msra.mxu0 %v1306
    %1588 = vmatpush.msra.mxu0 %v1305
    %1589 = vmatmul.f32.gmra.mxu0 %v853
    %v1590 = vpop.f32.mrf.mxu0
    %v1591 = vadd.f32 %v1526, %v1590
    %1592 = vmatmul.f32.gmra.mxu0 %v856
    %v1593 = vpop.f32.mrf.mxu0
    %v1594 = vadd.f32 %v1529, %v1593
    %1595 = vmatmul.f32.gmra.mxu0 %v859
    %v1596 = vpop.f32.mrf.mxu0
    %v1597 = vadd.f32 %v1532, %v1596
    %1598 = vmatmul.f32.gmra.mxu0 %v862
    %v1599 = vpop.f32.mrf.mxu0
    %v1600 = vadd.f32 %v1535, %v1599
    %1601 = vmatmul.f32.gmra.mxu0 %v865
    %v1602 = vpop.f32.mrf.mxu0
    %v1603 = vadd.f32 %v1538, %v1602
    %1604 = vmatmul.f32.gmra.mxu0 %v868
    %v1605 = vpop.f32.mrf.mxu0
    %v1606 = vadd.f32 %v1541, %v1605
    %1607 = vmatmul.f32.gmra.mxu0 %v871
    %v1608 = vpop.f32.mrf.mxu0
    %v1609 = vadd.f32 %v1544, %v1608
    %1610 = vmatmul.f32.gmra.mxu0 %v874
    %v1611 = vpop.f32.mrf.mxu0
    %v1612 = vadd.f32 %v1547, %v1611
    %1613 = vmatmul.f32.gmra.mxu0 %v877
    %v1614 = vpop.f32.mrf.mxu0
    %v1615 = vadd.f32 %v1550, %v1614
    %1616 = vmatmul.f32.gmra.mxu0 %v880
    %v1617 = vpop.f32.mrf.mxu0
    %v1618 = vadd.f32 %v1553, %v1617
    %1619 = vmatmul.f32.gmra.mxu0 %v883
    %v1620 = vpop.f32.mrf.mxu0
    %v1621 = vadd.f32 %v1556, %v1620
    %1622 = vmatmul.f32.gmra.mxu0 %v886
    %v1623 = vpop.f32.mrf.mxu0
    %v1624 = vadd.f32 %v1559, %v1623
    %1625 = vmatmul.f32.gmra.mxu0 %v889
    %v1626 = vpop.f32.mrf.mxu0
    %v1627 = vadd.f32 %v1562, %v1626
    %1628 = vmatmul.f32.gmra.mxu0 %v892
    %v1629 = vpop.f32.mrf.mxu0
    %v1630 = vadd.f32 %v1565, %v1629
    %1631 = vmatmul.f32.gmra.mxu0 %v895
    %v1632 = vpop.f32.mrf.mxu0
    %v1633 = vadd.f32 %v1568, %v1632
    %1634 = vmatmul.f32.gmra.mxu0 %v898
    %v1635 = vpop.f32.mrf.mxu0
    %v1636 = vadd.f32 %v1571, %v1635
    %1637 = vdwg.mxu0
    %1638 = vst.msk [vmem:[#allocation3 + $0x80] sm:$0xff] %vm20, %v1591
    %1639 = vst.msk [vmem:[#allocation3 + $0x88] sm:$0xff] %vm20, %v1594
    %1640 = vst.msk [vmem:[#allocation3 + $0x90] sm:$0xff] %vm20, %v1597
    %1641 = vst.msk [vmem:[#allocation3 + $0x98] sm:$0xff] %vm20, %v1600
    %1642 = vst.msk [vmem:[#allocation3 + $0xa0] sm:$0xff] %vm20, %v1603
    %1643 = vst.msk [vmem:[#allocation3 + $0xa8] sm:$0xff] %vm20, %v1606
    %1644 = vst.msk [vmem:[#allocation3 + $0xb0] sm:$0xff] %vm20, %v1609
    %1645 = vst.msk [vmem:[#allocation3 + $0xb8] sm:$0xff] %vm20, %v1612
    %1646 = vst.msk [vmem:[#allocation3 + $0xc0] sm:$0xff] %vm20, %v1615
    %1647 = vst.msk [vmem:[#allocation3 + $0xc8] sm:$0xff] %vm20, %v1618
    %1648 = vst.msk [vmem:[#allocation3 + $0xd0] sm:$0xff] %vm20, %v1621
    %1649 = vst.msk [vmem:[#allocation3 + $0xd8] sm:$0xff] %vm20, %v1624
    %1650 = vst.msk [vmem:[#allocation3 + $0xe0] sm:$0xff] %vm20, %v1627
    %1651 = vst.msk [vmem:[#allocation3 + $0xe8] sm:$0xff] %vm20, %v1630
    %1652 = vst.msk [vmem:[#allocation3 + $0xf0] sm:$0xff] %vm20, %v1633
    %1653 = vst.msk [vmem:[#allocation3 + $0xf8] sm:$0xff] %vm20, %v1636
    %v1654 = vld [vmem:[#allocation3] sm:$0xff]
    %v1655 = vld [vmem:[#allocation3 + $0x8] sm:$0xff]
    %v1656 = vld [vmem:[#allocation3 + $0x10] sm:$0xff]
    %v1657 = vld [vmem:[#allocation3 + $0x18] sm:$0xff]
    %v1658 = vld [vmem:[#allocation3 + $0x20] sm:$0xff]
    %v1659 = vld [vmem:[#allocation3 + $0x28] sm:$0xff]
    %v1660 = vld [vmem:[#allocation3 + $0x30] sm:$0xff]
    %v1661 = vld [vmem:[#allocation3 + $0x38] sm:$0xff]
    %v1662 = vld [vmem:[#allocation3 + $0x40] sm:$0xff]
    %v1663 = vld [vmem:[#allocation3 + $0x48] sm:$0xff]
    %v1664 = vld [vmem:[#allocation3 + $0x50] sm:$0xff]
    %v1665 = vld [vmem:[#allocation3 + $0x58] sm:$0xff]
    %v1666 = vld [vmem:[#allocation3 + $0x60] sm:$0xff]
    %v1667 = vld [vmem:[#allocation3 + $0x68] sm:$0xff]
    %v1668 = vld [vmem:[#allocation3 + $0x70] sm:$0xff]
    %v1669 = vld [vmem:[#allocation3 + $0x78] sm:$0xff]
    %v1670 = vld [vmem:[#allocation3 + $0x80] sm:$0xff]
    %v1671 = vld [vmem:[#allocation3 + $0x88] sm:$0xff]
    %v1672 = vld [vmem:[#allocation3 + $0x90] sm:$0xff]
    %v1673 = vld [vmem:[#allocation3 + $0x98] sm:$0xff]
    %v1674 = vld [vmem:[#allocation3 + $0xa0] sm:$0xff]
    %v1675 = vld [vmem:[#allocation3 + $0xa8] sm:$0xff]
    %v1676 = vld [vmem:[#allocation3 + $0xb0] sm:$0xff]
    %v1677 = vld [vmem:[#allocation3 + $0xb8] sm:$0xff]
    %v1678 = vld [vmem:[#allocation3 + $0xc0] sm:$0xff]
    %v1679 = vld [vmem:[#allocation3 + $0xc8] sm:$0xff]
    %v1680 = vld [vmem:[#allocation3 + $0xd0] sm:$0xff]
    %v1681 = vld [vmem:[#allocation3 + $0xd8] sm:$0xff]
    %v1682 = vld [vmem:[#allocation3 + $0xe0] sm:$0xff]
    %v1683 = vld [vmem:[#allocation3 + $0xe8] sm:$0xff]
    %v1684 = vld [vmem:[#allocation3 + $0xf0] sm:$0xff]
    %v1685 = vld [vmem:[#allocation3 + $0xf8] sm:$0xff]
    %v1686 = vld [vmem:[%s2] sm:$0xff]
    %v1687 = vld [vmem:[%s2 + $0x8] sm:$0xff]
    %v1688 = vld [vmem:[%s3] sm:$0xff]
    %v1689 = vld [vmem:[%s3 + $0x8] sm:$0xff]
    %v1690 = vld [vmem:[%s3 + $0x10] sm:$0xff]
    %v1691 = vld [vmem:[%s3 + $0x18] sm:$0xff]
    %v1692 = vld [vmem:[%s3 + $0x20] sm:$0xff]
    %v1693 = vld [vmem:[%s3 + $0x28] sm:$0xff]
    %v1694 = vld [vmem:[%s3 + $0x30] sm:$0xff]
    %v1695 = vld [vmem:[%s3 + $0x38] sm:$0xff]
    %v1696 = vld [vmem:[%s3 + $0x40] sm:$0xff]
    %v1697 = vld [vmem:[%s3 + $0x48] sm:$0xff]
    %v1698 = vld [vmem:[%s3 + $0x50] sm:$0xff]
    %v1699 = vld [vmem:[%s3 + $0x58] sm:$0xff]
    %v1700 = vld [vmem:[%s3 + $0x60] sm:$0xff]
    %v1701 = vld [vmem:[%s3 + $0x68] sm:$0xff]
    %v1702 = vld [vmem:[%s3 + $0x70] sm:$0xff]
    %v1703 = vld [vmem:[%s3 + $0x78] sm:$0xff]
    %v1704 = vld [vmem:[%s3 + $0x80] sm:$0xff]
    %v1705 = vld [vmem:[%s3 + $0x88] sm:$0xff]
    %v1706 = vld [vmem:[%s3 + $0x90] sm:$0xff]
    %v1707 = vld [vmem:[%s3 + $0x98] sm:$0xff]
    %v1708 = vld [vmem:[%s3 + $0xa0] sm:$0xff]
    %v1709 = vld [vmem:[%s3 + $0xa8] sm:$0xff]
    %v1710 = vld [vmem:[%s3 + $0xb0] sm:$0xff]
    %v1711 = vld [vmem:[%s3 + $0xb8] sm:$0xff]
    %v1712 = vld [vmem:[%s3 + $0xc0] sm:$0xff]
    %v1713 = vld [vmem:[%s3 + $0xc8] sm:$0xff]
    %v1714 = vld [vmem:[%s3 + $0xd0] sm:$0xff]
    %v1715 = vld [vmem:[%s3 + $0xd8] sm:$0xff]
    %v1716 = vld [vmem:[%s3 + $0xe0] sm:$0xff]
    %v1717 = vld [vmem:[%s3 + $0xe8] sm:$0xff]
    %v1718 = vld [vmem:[%s3 + $0xf0] sm:$0xff]
    %v1719 = vld [vmem:[%s3 + $0xf8] sm:$0xff]
    %v1721 = vsel %vm20, %v1654, 0
    %v1724 = vsel %vm20, %v1655, 0
    %v1727 = vsel %vm20, %v1656, 0
    %v1730 = vsel %vm20, %v1657, 0
    %v1733 = vsel %vm20, %v1658, 0
    %v1736 = vsel %vm20, %v1659, 0
    %v1739 = vsel %vm20, %v1660, 0
    %v1742 = vsel %vm20, %v1661, 0
    %v1745 = vsel %vm20, %v1662, 0
    %v1748 = vsel %vm20, %v1663, 0
    %v1751 = vsel %vm20, %v1664, 0
    %v1754 = vsel %vm20, %v1665, 0
    %v1757 = vsel %vm20, %v1666, 0
    %v1760 = vsel %vm20, %v1667, 0
    %v1763 = vsel %vm20, %v1668, 0
    %v1766 = vsel %vm20, %v1669, 0
    %v1769 = vsel %vm20, %v1670, 0
    %v1772 = vsel %vm20, %v1671, 0
    %v1775 = vsel %vm20, %v1672, 0
    %v1778 = vsel %vm20, %v1673, 0
    %v1781 = vsel %vm20, %v1674, 0
    %v1784 = vsel %vm20, %v1675, 0
    %v1787 = vsel %vm20, %v1676, 0
    %v1790 = vsel %vm20, %v1677, 0
    %v1793 = vsel %vm20, %v1678, 0
    %v1796 = vsel %vm20, %v1679, 0
    %v1799 = vsel %vm20, %v1680, 0
    %v1802 = vsel %vm20, %v1681, 0
    %v1805 = vsel %vm20, %v1682, 0
    %v1808 = vsel %vm20, %v1683, 0
    %v1811 = vsel %vm20, %v1684, 0
    %v1814 = vsel %vm20, %v1685, 0
    %1816 = vmatpush.msra.mxu0 0.0
    %1817 = vmatpush.msra.mxu0 0.0
    %1818 = vmatpush.msra.mxu0 0.0
    %1819 = vmatpush.msra.mxu0 0.0
    %1820 = vmatpush.msra.mxu0 0.0
    %1821 = vmatpush.msra.mxu0 0.0
    %1822 = vmatpush.msra.mxu0 0.0
    %1823 = vmatpush.msra.mxu0 0.0
    %1824 = vmatpush.msra.mxu0 0.0
    %1825 = vmatpush.msra.mxu0 0.0
    %1826 = vmatpush.msra.mxu0 0.0
    %1827 = vmatpush.msra.mxu0 0.0
    %1828 = vmatpush.msra.mxu0 0.0
    %1829 = vmatpush.msra.mxu0 0.0
    %1830 = vmatpush.msra.mxu0 %v1687
    %1831 = vmatpush.msra.mxu0 %v1686
    %1832 = vmatmul.f32.gmra.mxu0 %v1721
    %v1833 = vpop.f32.mrf.mxu0
    %v1834 = vadd.f32 %v1688, %v1833
    %1835 = vmatmul.f32.gmra.mxu0 %v1724
    %v1836 = vpop.f32.mrf.mxu0
    %v1837 = vadd.f32 %v1689, %v1836
    %1838 = vmatmul.f32.gmra.mxu0 %v1727
    %v1839 = vpop.f32.mrf.mxu0
    %v1840 = vadd.f32 %v1690, %v1839
    %1841 = vmatmul.f32.gmra.mxu0 %v1730
    %v1842 = vpop.f32.mrf.mxu0
    %v1843 = vadd.f32 %v1691, %v1842
    %1844 = vmatmul.f32.gmra.mxu0 %v1733
    %v1845 = vpop.f32.mrf.mxu0
    %v1846 = vadd.f32 %v1692, %v1845
    %1847 = vmatmul.f32.gmra.mxu0 %v1736
    %v1848 = vpop.f32.mrf.mxu0
    %v1849 = vadd.f32 %v1693, %v1848
    %1850 = vmatmul.f32.gmra.mxu0 %v1739
    %v1851 = vpop.f32.mrf.mxu0
    %v1852 = vadd.f32 %v1694, %v1851
    %1853 = vmatmul.f32.gmra.mxu0 %v1742
    %v1854 = vpop.f32.mrf.mxu0
    %v1855 = vadd.f32 %v1695, %v1854
    %1856 = vmatmul.f32.gmra.mxu0 %v1745
    %v1857 = vpop.f32.mrf.mxu0
    %v1858 = vadd.f32 %v1696, %v1857
    %1859 = vmatmul.f32.gmra.mxu0 %v1748
    %v1860 = vpop.f32.mrf.mxu0
    %v1861 = vadd.f32 %v1697, %v1860
    %1862 = vmatmul.f32.gmra.mxu0 %v1751
    %v1863 = vpop.f32.mrf.mxu0
    %v1864 = vadd.f32 %v1698, %v1863
    %1865 = vmatmul.f32.gmra.mxu0 %v1754
    %v1866 = vpop.f32.mrf.mxu0
    %v1867 = vadd.f32 %v1699, %v1866
    %1868 = vmatmul.f32.gmra.mxu0 %v1757
    %v1869 = vpop.f32.mrf.mxu0
    %v1870 = vadd.f32 %v1700, %v1869
    %1871 = vmatmul.f32.gmra.mxu0 %v1760
    %v1872 = vpop.f32.mrf.mxu0
    %v1873 = vadd.f32 %v1701, %v1872
    %1874 = vmatmul.f32.gmra.mxu0 %v1763
    %v1875 = vpop.f32.mrf.mxu0
    %v1876 = vadd.f32 %v1702, %v1875
    %1877 = vmatmul.f32.gmra.mxu0 %v1766
    %v1878 = vpop.f32.mrf.mxu0
    %v1879 = vadd.f32 %v1703, %v1878
    %1880 = vmatmul.f32.gmra.mxu0 %v1769
    %v1881 = vpop.f32.mrf.mxu0
    %v1882 = vadd.f32 %v1704, %v1881
    %1883 = vmatmul.f32.gmra.mxu0 %v1772
    %v1884 = vpop.f32.mrf.mxu0
    %v1885 = vadd.f32 %v1705, %v1884
    %1886 = vmatmul.f32.gmra.mxu0 %v1775
    %v1887 = vpop.f32.mrf.mxu0
    %v1888 = vadd.f32 %v1706, %v1887
    %1889 = vmatmul.f32.gmra.mxu0 %v1778
    %v1890 = vpop.f32.mrf.mxu0
    %v1891 = vadd.f32 %v1707, %v1890
    %1892 = vmatmul.f32.gmra.mxu0 %v1781
    %v1893 = vpop.f32.mrf.mxu0
    %v1894 = vadd.f32 %v1708, %v1893
    %1895 = vmatmul.f32.gmra.mxu0 %v1784
    %v1896 = vpop.f32.mrf.mxu0
    %v1897 = vadd.f32 %v1709, %v1896
    %1898 = vmatmul.f32.gmra.mxu0 %v1787
    %v1899 = vpop.f32.mrf.mxu0
    %v1900 = vadd.f32 %v1710, %v1899
    %1901 = vmatmul.f32.gmra.mxu0 %v1790
    %v1902 = vpop.f32.mrf.mxu0
    %v1903 = vadd.f32 %v1711, %v1902
    %1904 = vmatmul.f32.gmra.mxu0 %v1793
    %v1905 = vpop.f32.mrf.mxu0
    %v1906 = vadd.f32 %v1712, %v1905
    %1907 = vmatmul.f32.gmra.mxu0 %v1796
    %v1908 = vpop.f32.mrf.mxu0
    %v1909 = vadd.f32 %v1713, %v1908
    %1910 = vmatmul.f32.gmra.mxu0 %v1799
    %v1911 = vpop.f32.mrf.mxu0
    %v1912 = vadd.f32 %v1714, %v1911
    %1913 = vmatmul.f32.gmra.mxu0 %v1802
    %v1914 = vpop.f32.mrf.mxu0
    %v1915 = vadd.f32 %v1715, %v1914
    %1916 = vmatmul.f32.gmra.mxu0 %v1805
    %v1917 = vpop.f32.mrf.mxu0
    %v1918 = vadd.f32 %v1716, %v1917
    %1919 = vmatmul.f32.gmra.mxu0 %v1808
    %v1920 = vpop.f32.mrf.mxu0
    %v1921 = vadd.f32 %v1717, %v1920
    %1922 = vmatmul.f32.gmra.mxu0 %v1811
    %v1923 = vpop.f32.mrf.mxu0
    %v1924 = vadd.f32 %v1718, %v1923
    %1925 = vmatmul.f32.gmra.mxu0 %v1814
    %v1926 = vpop.f32.mrf.mxu0
    %v1927 = vadd.f32 %v1719, %v1926
    %1928 = vdwg.mxu0
    %vm1929 = vcmask 261120
    %1930 = vst.msk [vmem:[#allocation4] sm:$0xff] %vm1929, %v1834
    %1931 = vst.msk [vmem:[#allocation4 + $0x8] sm:$0xff] %vm1929, %v1837
    %1932 = vst.msk [vmem:[#allocation4 + $0x10] sm:$0xff] %vm1929, %v1840
    %1933 = vst.msk [vmem:[#allocation4 + $0x18] sm:$0xff] %vm1929, %v1843
    %1934 = vst.msk [vmem:[#allocation4 + $0x20] sm:$0xff] %vm1929, %v1846
    %1935 = vst.msk [vmem:[#allocation4 + $0x28] sm:$0xff] %vm1929, %v1849
    %1936 = vst.msk [vmem:[#allocation4 + $0x30] sm:$0xff] %vm1929, %v1852
    %1937 = vst.msk [vmem:[#allocation4 + $0x38] sm:$0xff] %vm1929, %v1855
    %1938 = vst.msk [vmem:[#allocation4 + $0x40] sm:$0xff] %vm1929, %v1858
    %1939 = vst.msk [vmem:[#allocation4 + $0x48] sm:$0xff] %vm1929, %v1861
    %1940 = vst.msk [vmem:[#allocation4 + $0x50] sm:$0xff] %vm1929, %v1864
    %1941 = vst.msk [vmem:[#allocation4 + $0x58] sm:$0xff] %vm1929, %v1867
    %1942 = vst.msk [vmem:[#allocation4 + $0x60] sm:$0xff] %vm1929, %v1870
    %1943 = vst.msk [vmem:[#allocation4 + $0x68] sm:$0xff] %vm1929, %v1873
    %1944 = vst.msk [vmem:[#allocation4 + $0x70] sm:$0xff] %vm1929, %v1876
    %1945 = vst.msk [vmem:[#allocation4 + $0x78] sm:$0xff] %vm1929, %v1879
    %1946 = vst.msk [vmem:[#allocation4 + $0x80] sm:$0xff] %vm1929, %v1882
    %1947 = vst.msk [vmem:[#allocation4 + $0x88] sm:$0xff] %vm1929, %v1885
    %1948 = vst.msk [vmem:[#allocation4 + $0x90] sm:$0xff] %vm1929, %v1888
    %1949 = vst.msk [vmem:[#allocation4 + $0x98] sm:$0xff] %vm1929, %v1891
    %1950 = vst.msk [vmem:[#allocation4 + $0xa0] sm:$0xff] %vm1929, %v1894
    %1951 = vst.msk [vmem:[#allocation4 + $0xa8] sm:$0xff] %vm1929, %v1897
    %1952 = vst.msk [vmem:[#allocation4 + $0xb0] sm:$0xff] %vm1929, %v1900
    %1953 = vst.msk [vmem:[#allocation4 + $0xb8] sm:$0xff] %vm1929, %v1903
    %1954 = vst.msk [vmem:[#allocation4 + $0xc0] sm:$0xff] %vm1929, %v1906
    %1955 = vst.msk [vmem:[#allocation4 + $0xc8] sm:$0xff] %vm1929, %v1909
    %1956 = vst.msk [vmem:[#allocation4 + $0xd0] sm:$0xff] %vm1929, %v1912
    %1957 = vst.msk [vmem:[#allocation4 + $0xd8] sm:$0xff] %vm1929, %v1915
    %1958 = vst.msk [vmem:[#allocation4 + $0xe0] sm:$0xff] %vm1929, %v1918
    %1959 = vst.msk [vmem:[#allocation4 + $0xe8] sm:$0xff] %vm1929, %v1921
    %1960 = vst.msk [vmem:[#allocation4 + $0xf0] sm:$0xff] %vm1929, %v1924
    %1961 = vst.msk [vmem:[#allocation4 + $0xf8] sm:$0xff] %vm1929, %v1927
    // Predicated region
    $region18: #{muzero_forward.1} parent=1 // pred_check
      _
    $region19: #{muzero_forward.1} parent=1 // pred_check_branch
      %1963 = sbr.rel (0) target = $region21
    $region20: #{muzero_forward.1} parent=1 // pred_region
      %1965 = vsyncadd [#allocation5], 0
      %s1966 = sshll.u32 [#allocation4], 4
      %s1967 = int_to_ptr.vmem [resolvable:$true] %s1966
      %s1968 = sshll.u32 %s4, 4
      %s1969 = int_to_ptr.hbm [resolvable:$true] %s1968
      %1974 = dma.vmem_to_hbm [thread:$0]  %s1967, 4096, %s1969, [#allocation5], 128, 128, 8
    $region21: #{muzero_forward.1} parent=1 // pred_fallthru
      _
    // Predicated region
    $region22: #{muzero_forward.1} parent=1 // pred_check
      _
    $region23: #{muzero_forward.1} parent=1 // pred_check_branch
      %1976 = sbr.rel (0) target = $region25
    $region24: #{muzero_forward.1} parent=1 // pred_region
      %1978 = dma.done [#allocation5], 4096
    $region25: #{muzero_forward.1} parent=1 // pred_fallthru
      _
    %1979 = vsyncpa [#allocation5], 1

</llo_original>
